<compile_context>
chip_gen: v7x
topology: tpu7x:2x2x1
jax: 0.10.0
libtpu: 0.0.40
codegen_flags: <defaults>
</compile_context>

<pallas_src>
import numpy as np
import jax
import jax.numpy as jnp
from jax.experimental import pallas as pl
from jax.experimental.pallas import tpu as pltpu

BN_EPS = 1e-5
LEAKY_SLOPE = 0.2


# ----------------------------------------------------------------------------
# In-kernel helper: training-mode BatchNorm (+affine) and activation on a
# (B, HW*C) slab whose columns are ordered (h, w, c) with c minor.
#   pool  : (HW*C, C) 0/1 matrix summing the columns of each channel (None=BN1d)
#   bcast : (C, HW*C) 0/1 matrix broadcasting per-channel scalars back
#   count : elements per channel = B*HW (python float, static)
# ----------------------------------------------------------------------------
def _bn_act(y, gamma, beta, pool, bcast, count, act):
    s1 = jnp.sum(y, axis=0, keepdims=True)            # single-pass stats
    s2 = jnp.sum(y * y, axis=0, keepdims=True)
    if pool is not None:
        s1 = jnp.dot(s1, pool, preferred_element_type=jnp.float32)
        s2 = jnp.dot(s2, pool, preferred_element_type=jnp.float32)
    inv_n = 1.0 / count
    mean = s1 * inv_n
    var = jnp.maximum(s2 * inv_n - mean * mean, 0.0)   # biased variance
    scale = gamma * jax.lax.rsqrt(var + BN_EPS)
    shift = beta - mean * scale
    if bcast is not None:
        scale = jnp.dot(scale, bcast, preferred_element_type=jnp.float32)
        shift = jnp.dot(shift, bcast, preferred_element_type=jnp.float32)
    y = y * scale + shift
    if act == "leaky_relu":
        return jnp.where(y >= 0.0, y, LEAKY_SLOPE * y)
    return 1.0 / (1.0 + jnp.exp(-y))                   # sigmoid


# ----------------------------------------------------------------------------
# The fused kernel: 5 chained MXU matmuls + BN + activation, all in VMEM.
# refs = (z, lin_w, bn0_g, bn0_b, [G, S, T, g, b] * 4, out)
# ----------------------------------------------------------------------------
def _generator_kernel(*refs):
    z_ref, lin_w_ref, g0_ref, b0_ref = refs[0:4]
    conv_refs = refs[4:-1]
    o_ref = refs[-1]
    B = z_ref.shape[0]

    # linear1 + BatchNorm1d + LeakyReLU.  (Linear bias omitted: it is a
    # per-feature constant and is exactly cancelled by the BN mean subtraction.)
    h = jnp.dot(z_ref[...], lin_w_ref[...], preferred_element_type=jnp.float32)
    h = _bn_act(h, g0_ref[...], b0_ref[...], None, None, float(B), "leaky_relu")

    # deconv1..deconv4: each ConvTranspose2d is one dense matmul with the
    # host-precomputed unrolled-conv matrix G (columns ordered (oh, ow, cout)).
    acts = ("leaky_relu", "leaky_relu", "leaky_relu", "sigmoid")
    for l in range(4):
        G_ref, S_ref, T_ref, g_ref, b_ref = conv_refs[5 * l:5 * l + 5]
        cout = g_ref.shape[1]
        hw = G_ref.shape[1] // cout
        y = jnp.dot(h, G_ref[...], preferred_element_type=jnp.float32)
        h = _bn_act(y, g_ref[...], b_ref[...], S_ref[...], T_ref[...],
                    float(B * hw), acts[l])

    o_ref[...] = h                                     # (B, 10*10*1)


# ----------------------------------------------------------------------------
# Host-side weight pre-lowering.
# ----------------------------------------------------------------------------
def _convt_as_dense_matrix(w_t, hin, win, chw_input):
    """Unrolled matrix of ConvTranspose2d(k=3, stride=1, pad=0, bias=False).

    w_t: (Cin, Cout, 3, 3) numpy array (PyTorch ConvTranspose2d layout).
    Input rows:  channel-major 'chw' (ci*Hin*Win + ih*Win + iw) for the first
                 deconv (matches torch's reshape after the Linear layer), else
                 spatial-major 'hwc' ((ih*Win+iw)*Cin + ci), the layout the
                 previous fused layer produces.
    Output cols: (oh*OW + ow)*Cout + co.
    """
    cin, cout, K, _ = w_t.shape
    oh_n, ow_n = hin + K - 1, win + K - 1
    G = np.zeros((hin * win * cin, oh_n * ow_n * cout), np.float32)
    for ih in range(hin):
        for iw in range(win):
            if chw_input:
                rows = np.arange(cin) * (hin * win) + ih * win + iw
            else:
                rows = (ih * win + iw) * cin + np.arange(cin)
            for kh in range(K):
                for kw in range(K):
                    oh, ow = ih + kh, iw + kw
                    cols = (oh * ow_n + ow) * cout + np.arange(cout)
                    G[np.ix_(rows, cols)] = w_t[:, :, kh, kw]
    return G


def make_params(key, z_dim, C):
    keys = jax.random.split(key, 16)

    def u(k, shape, scale=1.0):
        return (jax.random.uniform(k, shape, jnp.float32) * 2.0 - 1.0) * scale

    p = {"C": C}
    p["lin_w"] = u(keys[0], (z_dim, 4 * C), 1.0 / np.sqrt(z_dim))
    p["lin_b"] = u(keys[1], (4 * C,), 1.0 / np.sqrt(z_dim))   # reference only
    p["bn0_g"] = (1.0 + 0.1 * u(keys[2], (4 * C,))).reshape(1, 4 * C)
    p["bn0_b"] = (0.1 * u(keys[3], (4 * C,))).reshape(1, 4 * C)

    cins = [C, C // 2, C // 4, C // 8]
    couts = [C // 2, C // 4, C // 8, 1]
    hins = [2, 4, 6, 8]
    kidx = 4
    for l in range(4):
        cin, cout, hin = cins[l], couts[l], hins[l]
        w_t = u(keys[kidx], (cin, cout, 3, 3), 1.0 / np.sqrt(cin * 9.0))
        p[f"convT_w{l + 1}"] = w_t                            # reference only
        G = _convt_as_dense_matrix(np.asarray(w_t), hin, hin,
                                   chw_input=(l == 0))
        hw_out = (hin + 2) * (hin + 2)
        S = np.kron(np.ones((hw_out, 1), np.float32),
                    np.eye(cout, dtype=np.float32))           # (HW*C, C) pool
        p[f"G{l + 1}"] = jnp.asarray(G)
        p[f"S{l + 1}"] = jnp.asarray(S)
        p[f"T{l + 1}"] = jnp.asarray(np.ascontiguousarray(S.T))
        p[f"bn{l + 1}_g"] = (1.0 + 0.1 * u(keys[kidx + 1], (cout,))).reshape(1, cout)
        p[f"bn{l + 1}_b"] = (0.1 * u(keys[kidx + 2], (cout,))).reshape(1, cout)
        kidx += 3
    return p


# ----------------------------------------------------------------------------
# Full generator forward: exactly one pallas_call.
# ----------------------------------------------------------------------------
def generator_forward(params, x, y=None):
    # x: (B, z_dim, 1, 1) latent (module reshapes to (B, z_dim)); y unused
    # (num_condition is forced to 0 in the module __init__).
    B = x.shape[0]
    z = x.reshape(B, -1).astype(jnp.float32)

    flat = [z, params["lin_w"], params["bn0_g"], params["bn0_b"]]
    for l in range(1, 5):
        flat += [params[f"G{l}"], params[f"S{l}"], params[f"T{l}"],
                 params[f"bn{l}_g"], params[f"bn{l}_b"]]

    n_out = params["G4"].shape[1]                      # 10*10*1 = 100
    out = pl.pallas_call(
        _generator_kernel,
        out_shape=jax.ShapeDtypeStruct((B, n_out), jnp.float32),
        grid=(1,),
        in_specs=[pl.BlockSpec(a.shape, lambda i: (0, 0)) for a in flat],
        out_specs=pl.BlockSpec((B, n_out), lambda i: (0, 0)),
        compiler_params=pltpu.CompilerParams(
            dimension_semantics=("arbitrary",)),
    )(*flat)

    hw = int(round(n_out ** 0.5))
    return out.reshape(B, 1, hw, hw)                   # NCHW (B, 1, 10, 10)


# ----------------------------------------------------------------------------
# Pure-JAX reference (includes the Linear bias) used as an in-script check.
# ----------------------------------------------------------------------------
def _convt_ref(x, w):
    B, cin, H, W = x.shape
    cout = w.shape[1]
    out = jnp.zeros((B, cout, H + 2, W + 2), jnp.float32)
    for kh in range(3):
        for kw in range(3):
            yk = jnp.einsum("bchw,cd->bdhw", x, w[:, :, kh, kw],
                            precision=jax.lax.Precision.HIGHEST)
            out = out.at[:, :, kh:kh + H, kw:kw + W].add(yk)
    return out


def _reference_forward(params, x):
    B = x.shape[0]
    C = params["C"]
    z = x.reshape(B, -1)
    h = jnp.dot(z, params["lin_w"],
                precision=jax.lax.Precision.HIGHEST) + params["lin_b"]
    mean = jnp.mean(h, axis=0, keepdims=True)
    var = jnp.mean((h - mean) ** 2, axis=0, keepdims=True)
    h = (h - mean) * jax.lax.rsqrt(var + BN_EPS) * params["bn0_g"] + params["bn0_b"]
    h = jnp.where(h >= 0, h, LEAKY_SLOPE * h)
    h = h.reshape(B, C, 2, 2)
    for l in range(4):
        h = _convt_ref(h, params[f"convT_w{l + 1}"])
        mean = jnp.mean(h, axis=(0, 2, 3), keepdims=True)
        var = jnp.mean((h - mean) ** 2, axis=(0, 2, 3), keepdims=True)
        h = (h - mean) * jax.lax.rsqrt(var + BN_EPS)
        h = (h * params[f"bn{l + 1}_g"].reshape(1, -1, 1, 1)
             + params[f"bn{l + 1}_b"].reshape(1, -1, 1, 1))
        h = jnp.where(h >= 0, h, LEAKY_SLOPE * h) if l < 3 else jax.nn.sigmoid(h)
    return h


if __name__ == "__main__":
    # Module hyper-params consistent with the architecture:
    channels, factor, kernel_factor = 64, 2, 1
    z_dim, num_condition, num_pixels = 32, 5, 361
    C = channels // factor          # 32
    B = 8

    key = jax.random.PRNGKey(0)
    pkey, xkey, ykey = jax.random.split(key, 3)
    params = make_params(pkey, z_dim, C)

    x = jax.random.normal(xkey, (B, z_dim, 1, 1), jnp.float32)
    y = jax.random.normal(ykey, (B, num_condition), jnp.float32)  # unused

    out = jax.jit(lambda xx: generator_forward(params, xx, y))(x)
    out = jax.block_until_ready(out)

    assert out.shape == (B, 1, 10, 10), out.shape
    assert bool(jnp.all(jnp.isfinite(out)))
    assert bool(jnp.all((out >= 0.0) & (out <= 1.0)))   # sigmoid output range

    ref = _reference_forward(params, x)
    max_err = float(jnp.max(jnp.abs(out - ref)))
    assert max_err < 5e-3, f"mismatch vs pure-JAX reference: {max_err}"

    print("KERNEL_OK")
</pallas_src>

<mosaic_0001>
module attributes {stable_mosaic.version = 11 : i64} {
  func.func @_generator_kernel(%arg0: i32, %arg1: memref<8x32xf32, #tpu.memory_space<vmem>>, %arg2: memref<32x128xf32, #tpu.memory_space<vmem>>, %arg3: memref<1x128xf32, #tpu.memory_space<vmem>>, %arg4: memref<1x128xf32, #tpu.memory_space<vmem>>, %arg5: memref<128x256xf32, #tpu.memory_space<vmem>>, %arg6: memref<256x16xf32, #tpu.memory_space<vmem>>, %arg7: memref<16x256xf32, #tpu.memory_space<vmem>>, %arg8: memref<1x16xf32, #tpu.memory_space<vmem>>, %arg9: memref<1x16xf32, #tpu.memory_space<vmem>>, %arg10: memref<256x288xf32, #tpu.memory_space<vmem>>, %arg11: memref<288x8xf32, #tpu.memory_space<vmem>>, %arg12: memref<8x288xf32, #tpu.memory_space<vmem>>, %arg13: memref<1x8xf32, #tpu.memory_space<vmem>>, %arg14: memref<1x8xf32, #tpu.memory_space<vmem>>, %arg15: memref<288x256xf32, #tpu.memory_space<vmem>>, %arg16: memref<256x4xf32, #tpu.memory_space<vmem>>, %arg17: memref<4x256xf32, #tpu.memory_space<vmem>>, %arg18: memref<1x4xf32, #tpu.memory_space<vmem>>, %arg19: memref<1x4xf32, #tpu.memory_space<vmem>>, %arg20: memref<256x100xf32, #tpu.memory_space<vmem>>, %arg21: memref<100x1xf32, #tpu.memory_space<vmem>>, %arg22: memref<1x100xf32, #tpu.memory_space<vmem>>, %arg23: memref<1x1xf32, #tpu.memory_space<vmem>>, %arg24: memref<1x1xf32, #tpu.memory_space<vmem>>, %arg25: memref<8x100xf32, #tpu.memory_space<vmem>>) attributes {dimension_semantics = [#tpu.dimension_semantics<arbitrary>], iteration_bounds = array<i64: 1>, scalar_prefetch = 0 : i64, scratch_operands = 0 : i64, tpu.core_type = #tpu.core_type<tc>, window_params = [{pipeline_mode = #tpu.pipeline_mode<synchronous>, transform_indices = @transform_0, window_bounds = array<i64: 8, 32>}, {pipeline_mode = #tpu.pipeline_mode<synchronous>, transform_indices = @transform_1, window_bounds = array<i64: 32, 128>}, {pipeline_mode = #tpu.pipeline_mode<synchronous>, transform_indices = @transform_2, window_bounds = array<i64: 1, 128>}, {pipeline_mode = #tpu.pipeline_mode<synchronous>, transform_indices = @transform_3, window_bounds = array<i64: 1, 128>}, {pipeline_mode = #tpu.pipeline_mode<synchronous>, transform_indices = @transform_4, window_bounds = array<i64: 128, 256>}, {pipeline_mode = #tpu.pipeline_mode<synchronous>, transform_indices = @transform_5, window_bounds = array<i64: 256, 16>}, {pipeline_mode = #tpu.pipeline_mode<synchronous>, transform_indices = @transform_6, window_bounds = array<i64: 16, 256>}, {pipeline_mode = #tpu.pipeline_mode<synchronous>, transform_indices = @transform_7, window_bounds = array<i64: 1, 16>}, {pipeline_mode = #tpu.pipeline_mode<synchronous>, transform_indices = @transform_8, window_bounds = array<i64: 1, 16>}, {pipeline_mode = #tpu.pipeline_mode<synchronous>, transform_indices = @transform_9, window_bounds = array<i64: 256, 288>}, {pipeline_mode = #tpu.pipeline_mode<synchronous>, transform_indices = @transform_10, window_bounds = array<i64: 288, 8>}, {pipeline_mode = #tpu.pipeline_mode<synchronous>, transform_indices = @transform_11, window_bounds = array<i64: 8, 288>}, {pipeline_mode = #tpu.pipeline_mode<synchronous>, transform_indices = @transform_12, window_bounds = array<i64: 1, 8>}, {pipeline_mode = #tpu.pipeline_mode<synchronous>, transform_indices = @transform_13, window_bounds = array<i64: 1, 8>}, {pipeline_mode = #tpu.pipeline_mode<synchronous>, transform_indices = @transform_14, window_bounds = array<i64: 288, 256>}, {pipeline_mode = #tpu.pipeline_mode<synchronous>, transform_indices = @transform_15, window_bounds = array<i64: 256, 4>}, {pipeline_mode = #tpu.pipeline_mode<synchronous>, transform_indices = @transform_16, window_bounds = array<i64: 4, 256>}, {pipeline_mode = #tpu.pipeline_mode<synchronous>, transform_indices = @transform_17, window_bounds = array<i64: 1, 4>}, {pipeline_mode = #tpu.pipeline_mode<synchronous>, transform_indices = @transform_18, window_bounds = array<i64: 1, 4>}, {pipeline_mode = #tpu.pipeline_mode<synchronous>, transform_indices = @transform_19, window_bounds = array<i64: 256, 100>}, {pipeline_mode = #tpu.pipeline_mode<synchronous>, transform_indices = @transform_20, window_bounds = array<i64: 100, 1>}, {pipeline_mode = #tpu.pipeline_mode<synchronous>, transform_indices = @transform_21, window_bounds = array<i64: 1, 100>}, {pipeline_mode = #tpu.pipeline_mode<synchronous>, transform_indices = @transform_22, window_bounds = array<i64: 1, 1>}, {pipeline_mode = #tpu.pipeline_mode<synchronous>, transform_indices = @transform_23, window_bounds = array<i64: 1, 1>}, {pipeline_mode = #tpu.pipeline_mode<synchronous>, transform_indices = @transform_24, window_bounds = array<i64: 8, 100>}]} {
    %c0 = arith.constant 0 : index
    %c0_0 = arith.constant 0 : index
    %0 = vector.load %arg1[%c0, %c0_0] : memref<8x32xf32, #tpu.memory_space<vmem>>, vector<8x32xf32>
    %c0_1 = arith.constant 0 : index
    %c0_2 = arith.constant 0 : index
    %1 = vector.load %arg2[%c0_1, %c0_2] : memref<32x128xf32, #tpu.memory_space<vmem>>, vector<32x128xf32>
    %cst = arith.constant dense<0.000000e+00> : vector<8x128xf32>
    %2 = tpu.matmul %0, %1, %cst {dimension_numbers = #tpu.dot_dimension_numbers<[1], [0], [0], [1], [0, 0, 1, 1], [], []>} : vector<8x32xf32>, vector<32x128xf32>, vector<8x128xf32> -> vector<8x128xf32>
    %c0_3 = arith.constant 0 : index
    %c0_4 = arith.constant 0 : index
    %3 = vector.load %arg3[%c0_3, %c0_4] : memref<1x128xf32, #tpu.memory_space<vmem>>, vector<1x128xf32>
    %c0_5 = arith.constant 0 : index
    %c0_6 = arith.constant 0 : index
    %4 = vector.load %arg4[%c0_5, %c0_6] : memref<1x128xf32, #tpu.memory_space<vmem>>, vector<1x128xf32>
    %cst_7 = arith.constant dense<0.000000e+00> : vector<128xf32>
    %5 = vector.multi_reduction <add>, %2, %cst_7 [0] : vector<8x128xf32> to vector<128xf32>
    %6 = vector.shape_cast %5 : vector<128xf32> to vector<1x128xf32>
    %7 = arith.mulf %2, %2 : vector<8x128xf32>
    %cst_8 = arith.constant dense<0.000000e+00> : vector<128xf32>
    %8 = vector.multi_reduction <add>, %7, %cst_8 [0] : vector<8x128xf32> to vector<128xf32>
    %9 = vector.shape_cast %8 : vector<128xf32> to vector<1x128xf32>
    %cst_9 = arith.constant 1.250000e-01 : f32
    %10 = vector.broadcast %cst_9 : f32 to vector<1x128xf32>
    %11 = arith.mulf %6, %10 : vector<1x128xf32>
    %cst_10 = arith.constant 1.250000e-01 : f32
    %12 = vector.broadcast %cst_10 : f32 to vector<1x128xf32>
    %13 = arith.mulf %9, %12 : vector<1x128xf32>
    %14 = arith.mulf %11, %11 : vector<1x128xf32>
    %15 = arith.subf %13, %14 : vector<1x128xf32>
    %cst_11 = arith.constant 0.000000e+00 : f32
    %16 = vector.broadcast %cst_11 : f32 to vector<1x128xf32>
    %17 = arith.maximumf %15, %16 : vector<1x128xf32>
    %cst_12 = arith.constant 9.99999974E-6 : f32
    %18 = vector.broadcast %cst_12 : f32 to vector<1x128xf32>
    %19 = arith.addf %17, %18 : vector<1x128xf32>
    %20 = math.rsqrt %19 : vector<1x128xf32>
    %21 = arith.mulf %3, %20 : vector<1x128xf32>
    %22 = arith.mulf %11, %21 : vector<1x128xf32>
    %23 = arith.subf %4, %22 : vector<1x128xf32>
    %24 = vector.broadcast %21 : vector<1x128xf32> to vector<8x128xf32>
    %25 = arith.mulf %2, %24 : vector<8x128xf32>
    %26 = vector.broadcast %23 : vector<1x128xf32> to vector<8x128xf32>
    %27 = arith.addf %25, %26 : vector<8x128xf32>
    %cst_13 = arith.constant 0.000000e+00 : f32
    %28 = vector.broadcast %cst_13 : f32 to vector<8x128xf32>
    %29 = arith.cmpf oge, %27, %28 : vector<8x128xf32>
    %cst_14 = arith.constant 2.000000e-01 : f32
    %30 = vector.broadcast %cst_14 : f32 to vector<8x128xf32>
    %31 = arith.mulf %30, %27 : vector<8x128xf32>
    %32 = arith.select %29, %27, %31 : vector<8x128xi1>, vector<8x128xf32>
    %c0_15 = arith.constant 0 : index
    %c0_16 = arith.constant 0 : index
    %33 = vector.load %arg5[%c0_15, %c0_16] : memref<128x256xf32, #tpu.memory_space<vmem>>, vector<128x256xf32>
    %cst_17 = arith.constant dense<0.000000e+00> : vector<8x256xf32>
    %34 = tpu.matmul %32, %33, %cst_17 {dimension_numbers = #tpu.dot_dimension_numbers<[1], [0], [0], [1], [0, 0, 1, 1], [], []>} : vector<8x128xf32>, vector<128x256xf32>, vector<8x256xf32> -> vector<8x256xf32>
    %c0_18 = arith.constant 0 : index
    %c0_19 = arith.constant 0 : index
    %35 = vector.load %arg8[%c0_18, %c0_19] : memref<1x16xf32, #tpu.memory_space<vmem>>, vector<1x16xf32>
    %c0_20 = arith.constant 0 : index
    %c0_21 = arith.constant 0 : index
    %36 = vector.load %arg9[%c0_20, %c0_21] : memref<1x16xf32, #tpu.memory_space<vmem>>, vector<1x16xf32>
    %c0_22 = arith.constant 0 : index
    %c0_23 = arith.constant 0 : index
    %37 = vector.load %arg6[%c0_22, %c0_23] : memref<256x16xf32, #tpu.memory_space<vmem>>, vector<256x16xf32>
    %c0_24 = arith.constant 0 : index
    %c0_25 = arith.constant 0 : index
    %38 = vector.load %arg7[%c0_24, %c0_25] : memref<16x256xf32, #tpu.memory_space<vmem>>, vector<16x256xf32>
    %cst_26 = arith.constant dense<0.000000e+00> : vector<256xf32>
    %39 = vector.multi_reduction <add>, %34, %cst_26 [0] : vector<8x256xf32> to vector<256xf32>
    %40 = vector.shape_cast %39 : vector<256xf32> to vector<1x256xf32>
    %41 = arith.mulf %34, %34 : vector<8x256xf32>
    %cst_27 = arith.constant dense<0.000000e+00> : vector<256xf32>
    %42 = vector.multi_reduction <add>, %41, %cst_27 [0] : vector<8x256xf32> to vector<256xf32>
    %43 = vector.shape_cast %42 : vector<256xf32> to vector<1x256xf32>
    %cst_28 = arith.constant dense<0.000000e+00> : vector<1x16xf32>
    %44 = tpu.matmul %40, %37, %cst_28 {dimension_numbers = #tpu.dot_dimension_numbers<[1], [0], [0], [1], [0, 0, 1, 1], [], []>} : vector<1x256xf32>, vector<256x16xf32>, vector<1x16xf32> -> vector<1x16xf32>
    %cst_29 = arith.constant dense<0.000000e+00> : vector<1x16xf32>
    %45 = tpu.matmul %43, %37, %cst_29 {dimension_numbers = #tpu.dot_dimension_numbers<[1], [0], [0], [1], [0, 0, 1, 1], [], []>} : vector<1x256xf32>, vector<256x16xf32>, vector<1x16xf32> -> vector<1x16xf32>
    %cst_30 = arith.constant 7.812500e-03 : f32
    %46 = vector.broadcast %cst_30 : f32 to vector<1x16xf32>
    %47 = arith.mulf %44, %46 : vector<1x16xf32>
    %cst_31 = arith.constant 7.812500e-03 : f32
    %48 = vector.broadcast %cst_31 : f32 to vector<1x16xf32>
    %49 = arith.mulf %45, %48 : vector<1x16xf32>
    %50 = arith.mulf %47, %47 : vector<1x16xf32>
    %51 = arith.subf %49, %50 : vector<1x16xf32>
    %cst_32 = arith.constant 0.000000e+00 : f32
    %52 = vector.broadcast %cst_32 : f32 to vector<1x16xf32>
    %53 = arith.maximumf %51, %52 : vector<1x16xf32>
    %cst_33 = arith.constant 9.99999974E-6 : f32
    %54 = vector.broadcast %cst_33 : f32 to vector<1x16xf32>
    %55 = arith.addf %53, %54 : vector<1x16xf32>
    %56 = math.rsqrt %55 : vector<1x16xf32>
    %57 = arith.mulf %35, %56 : vector<1x16xf32>
    %58 = arith.mulf %47, %57 : vector<1x16xf32>
    %59 = arith.subf %36, %58 : vector<1x16xf32>
    %cst_34 = arith.constant dense<0.000000e+00> : vector<1x256xf32>
    %60 = tpu.matmul %57, %38, %cst_34 {dimension_numbers = #tpu.dot_dimension_numbers<[1], [0], [0], [1], [0, 0, 1, 1], [], []>} : vector<1x16xf32>, vector<16x256xf32>, vector<1x256xf32> -> vector<1x256xf32>
    %cst_35 = arith.constant dense<0.000000e+00> : vector<1x256xf32>
    %61 = tpu.matmul %59, %38, %cst_35 {dimension_numbers = #tpu.dot_dimension_numbers<[1], [0], [0], [1], [0, 0, 1, 1], [], []>} : vector<1x16xf32>, vector<16x256xf32>, vector<1x256xf32> -> vector<1x256xf32>
    %62 = vector.broadcast %60 : vector<1x256xf32> to vector<8x256xf32>
    %63 = arith.mulf %34, %62 : vector<8x256xf32>
    %64 = vector.broadcast %61 : vector<1x256xf32> to vector<8x256xf32>
    %65 = arith.addf %63, %64 : vector<8x256xf32>
    %cst_36 = arith.constant 0.000000e+00 : f32
    %66 = vector.broadcast %cst_36 : f32 to vector<8x256xf32>
    %67 = arith.cmpf oge, %65, %66 : vector<8x256xf32>
    %cst_37 = arith.constant 2.000000e-01 : f32
    %68 = vector.broadcast %cst_37 : f32 to vector<8x256xf32>
    %69 = arith.mulf %68, %65 : vector<8x256xf32>
    %70 = arith.select %67, %65, %69 : vector<8x256xi1>, vector<8x256xf32>
    %c0_38 = arith.constant 0 : index
    %c0_39 = arith.constant 0 : index
    %71 = vector.load %arg10[%c0_38, %c0_39] : memref<256x288xf32, #tpu.memory_space<vmem>>, vector<256x288xf32>
    %cst_40 = arith.constant dense<0.000000e+00> : vector<8x288xf32>
    %72 = tpu.matmul %70, %71, %cst_40 {dimension_numbers = #tpu.dot_dimension_numbers<[1], [0], [0], [1], [0, 0, 1, 1], [], []>} : vector<8x256xf32>, vector<256x288xf32>, vector<8x288xf32> -> vector<8x288xf32>
    %c0_41 = arith.constant 0 : index
    %c0_42 = arith.constant 0 : index
    %73 = vector.load %arg13[%c0_41, %c0_42] : memref<1x8xf32, #tpu.memory_space<vmem>>, vector<1x8xf32>
    %c0_43 = arith.constant 0 : index
    %c0_44 = arith.constant 0 : index
    %74 = vector.load %arg14[%c0_43, %c0_44] : memref<1x8xf32, #tpu.memory_space<vmem>>, vector<1x8xf32>
    %c0_45 = arith.constant 0 : index
    %c0_46 = arith.constant 0 : index
    %75 = vector.load %arg11[%c0_45, %c0_46] : memref<288x8xf32, #tpu.memory_space<vmem>>, vector<288x8xf32>
    %c0_47 = arith.constant 0 : index
    %c0_48 = arith.constant 0 : index
    %76 = vector.load %arg12[%c0_47, %c0_48] : memref<8x288xf32, #tpu.memory_space<vmem>>, vector<8x288xf32>
    %cst_49 = arith.constant dense<0.000000e+00> : vector<288xf32>
    %77 = vector.multi_reduction <add>, %72, %cst_49 [0] : vector<8x288xf32> to vector<288xf32>
    %78 = vector.shape_cast %77 : vector<288xf32> to vector<1x288xf32>
    %79 = arith.mulf %72, %72 : vector<8x288xf32>
    %cst_50 = arith.constant dense<0.000000e+00> : vector<288xf32>
    %80 = vector.multi_reduction <add>, %79, %cst_50 [0] : vector<8x288xf32> to vector<288xf32>
    %81 = vector.shape_cast %80 : vector<288xf32> to vector<1x288xf32>
    %cst_51 = arith.constant dense<0.000000e+00> : vector<1x8xf32>
    %82 = tpu.matmul %78, %75, %cst_51 {dimension_numbers = #tpu.dot_dimension_numbers<[1], [0], [0], [1], [0, 0, 1, 1], [], []>} : vector<1x288xf32>, vector<288x8xf32>, vector<1x8xf32> -> vector<1x8xf32>
    %cst_52 = arith.constant dense<0.000000e+00> : vector<1x8xf32>
    %83 = tpu.matmul %81, %75, %cst_52 {dimension_numbers = #tpu.dot_dimension_numbers<[1], [0], [0], [1], [0, 0, 1, 1], [], []>} : vector<1x288xf32>, vector<288x8xf32>, vector<1x8xf32> -> vector<1x8xf32>
    %cst_53 = arith.constant 0.00347222225 : f32
    %84 = vector.broadcast %cst_53 : f32 to vector<1x8xf32>
    %85 = arith.mulf %82, %84 : vector<1x8xf32>
    %cst_54 = arith.constant 0.00347222225 : f32
    %86 = vector.broadcast %cst_54 : f32 to vector<1x8xf32>
    %87 = arith.mulf %83, %86 : vector<1x8xf32>
    %88 = arith.mulf %85, %85 : vector<1x8xf32>
    %89 = arith.subf %87, %88 : vector<1x8xf32>
    %cst_55 = arith.constant 0.000000e+00 : f32
    %90 = vector.broadcast %cst_55 : f32 to vector<1x8xf32>
    %91 = arith.maximumf %89, %90 : vector<1x8xf32>
    %cst_56 = arith.constant 9.99999974E-6 : f32
    %92 = vector.broadcast %cst_56 : f32 to vector<1x8xf32>
    %93 = arith.addf %91, %92 : vector<1x8xf32>
    %94 = math.rsqrt %93 : vector<1x8xf32>
    %95 = arith.mulf %73, %94 : vector<1x8xf32>
    %96 = arith.mulf %85, %95 : vector<1x8xf32>
    %97 = arith.subf %74, %96 : vector<1x8xf32>
    %cst_57 = arith.constant dense<0.000000e+00> : vector<1x288xf32>
    %98 = tpu.matmul %95, %76, %cst_57 {dimension_numbers = #tpu.dot_dimension_numbers<[1], [0], [0], [1], [0, 0, 1, 1], [], []>} : vector<1x8xf32>, vector<8x288xf32>, vector<1x288xf32> -> vector<1x288xf32>
    %cst_58 = arith.constant dense<0.000000e+00> : vector<1x288xf32>
    %99 = tpu.matmul %97, %76, %cst_58 {dimension_numbers = #tpu.dot_dimension_numbers<[1], [0], [0], [1], [0, 0, 1, 1], [], []>} : vector<1x8xf32>, vector<8x288xf32>, vector<1x288xf32> -> vector<1x288xf32>
    %100 = vector.broadcast %98 : vector<1x288xf32> to vector<8x288xf32>
    %101 = arith.mulf %72, %100 : vector<8x288xf32>
    %102 = vector.broadcast %99 : vector<1x288xf32> to vector<8x288xf32>
    %103 = arith.addf %101, %102 : vector<8x288xf32>
    %cst_59 = arith.constant 0.000000e+00 : f32
    %104 = vector.broadcast %cst_59 : f32 to vector<8x288xf32>
    %105 = arith.cmpf oge, %103, %104 : vector<8x288xf32>
    %cst_60 = arith.constant 2.000000e-01 : f32
    %106 = vector.broadcast %cst_60 : f32 to vector<8x288xf32>
    %107 = arith.mulf %106, %103 : vector<8x288xf32>
    %108 = arith.select %105, %103, %107 : vector<8x288xi1>, vector<8x288xf32>
    %c0_61 = arith.constant 0 : index
    %c0_62 = arith.constant 0 : index
    %109 = vector.load %arg15[%c0_61, %c0_62] : memref<288x256xf32, #tpu.memory_space<vmem>>, vector<288x256xf32>
    %cst_63 = arith.constant dense<0.000000e+00> : vector<8x256xf32>
    %110 = tpu.matmul %108, %109, %cst_63 {dimension_numbers = #tpu.dot_dimension_numbers<[1], [0], [0], [1], [0, 0, 1, 1], [], []>} : vector<8x288xf32>, vector<288x256xf32>, vector<8x256xf32> -> vector<8x256xf32>
    %c0_64 = arith.constant 0 : index
    %c0_65 = arith.constant 0 : index
    %111 = vector.load %arg18[%c0_64, %c0_65] : memref<1x4xf32, #tpu.memory_space<vmem>>, vector<1x4xf32>
    %c0_66 = arith.constant 0 : index
    %c0_67 = arith.constant 0 : index
    %112 = vector.load %arg19[%c0_66, %c0_67] : memref<1x4xf32, #tpu.memory_space<vmem>>, vector<1x4xf32>
    %c0_68 = arith.constant 0 : index
    %c0_69 = arith.constant 0 : index
    %113 = vector.load %arg16[%c0_68, %c0_69] : memref<256x4xf32, #tpu.memory_space<vmem>>, vector<256x4xf32>
    %c0_70 = arith.constant 0 : index
    %c0_71 = arith.constant 0 : index
    %114 = vector.load %arg17[%c0_70, %c0_71] : memref<4x256xf32, #tpu.memory_space<vmem>>, vector<4x256xf32>
    %cst_72 = arith.constant dense<0.000000e+00> : vector<256xf32>
    %115 = vector.multi_reduction <add>, %110, %cst_72 [0] : vector<8x256xf32> to vector<256xf32>
    %116 = vector.shape_cast %115 : vector<256xf32> to vector<1x256xf32>
    %117 = arith.mulf %110, %110 : vector<8x256xf32>
    %cst_73 = arith.constant dense<0.000000e+00> : vector<256xf32>
    %118 = vector.multi_reduction <add>, %117, %cst_73 [0] : vector<8x256xf32> to vector<256xf32>
    %119 = vector.shape_cast %118 : vector<256xf32> to vector<1x256xf32>
    %cst_74 = arith.constant dense<0.000000e+00> : vector<1x4xf32>
    %120 = tpu.matmul %116, %113, %cst_74 {dimension_numbers = #tpu.dot_dimension_numbers<[1], [0], [0], [1], [0, 0, 1, 1], [], []>} : vector<1x256xf32>, vector<256x4xf32>, vector<1x4xf32> -> vector<1x4xf32>
    %cst_75 = arith.constant dense<0.000000e+00> : vector<1x4xf32>
    %121 = tpu.matmul %119, %113, %cst_75 {dimension_numbers = #tpu.dot_dimension_numbers<[1], [0], [0], [1], [0, 0, 1, 1], [], []>} : vector<1x256xf32>, vector<256x4xf32>, vector<1x4xf32> -> vector<1x4xf32>
    %cst_76 = arith.constant 0.001953125 : f32
    %122 = vector.broadcast %cst_76 : f32 to vector<1x4xf32>
    %123 = arith.mulf %120, %122 : vector<1x4xf32>
    %cst_77 = arith.constant 0.001953125 : f32
    %124 = vector.broadcast %cst_77 : f32 to vector<1x4xf32>
    %125 = arith.mulf %121, %124 : vector<1x4xf32>
    %126 = arith.mulf %123, %123 : vector<1x4xf32>
    %127 = arith.subf %125, %126 : vector<1x4xf32>
    %cst_78 = arith.constant 0.000000e+00 : f32
    %128 = vector.broadcast %cst_78 : f32 to vector<1x4xf32>
    %129 = arith.maximumf %127, %128 : vector<1x4xf32>
    %cst_79 = arith.constant 9.99999974E-6 : f32
    %130 = vector.broadcast %cst_79 : f32 to vector<1x4xf32>
    %131 = arith.addf %129, %130 : vector<1x4xf32>
    %132 = math.rsqrt %131 : vector<1x4xf32>
    %133 = arith.mulf %111, %132 : vector<1x4xf32>
    %134 = arith.mulf %123, %133 : vector<1x4xf32>
    %135 = arith.subf %112, %134 : vector<1x4xf32>
    %cst_80 = arith.constant dense<0.000000e+00> : vector<1x256xf32>
    %136 = tpu.matmul %133, %114, %cst_80 {dimension_numbers = #tpu.dot_dimension_numbers<[1], [0], [0], [1], [0, 0, 1, 1], [], []>} : vector<1x4xf32>, vector<4x256xf32>, vector<1x256xf32> -> vector<1x256xf32>
    %cst_81 = arith.constant dense<0.000000e+00> : vector<1x256xf32>
    %137 = tpu.matmul %135, %114, %cst_81 {dimension_numbers = #tpu.dot_dimension_numbers<[1], [0], [0], [1], [0, 0, 1, 1], [], []>} : vector<1x4xf32>, vector<4x256xf32>, vector<1x256xf32> -> vector<1x256xf32>
    %138 = vector.broadcast %136 : vector<1x256xf32> to vector<8x256xf32>
    %139 = arith.mulf %110, %138 : vector<8x256xf32>
    %140 = vector.broadcast %137 : vector<1x256xf32> to vector<8x256xf32>
    %141 = arith.addf %139, %140 : vector<8x256xf32>
    %cst_82 = arith.constant 0.000000e+00 : f32
    %142 = vector.broadcast %cst_82 : f32 to vector<8x256xf32>
    %143 = arith.cmpf oge, %141, %142 : vector<8x256xf32>
    %cst_83 = arith.constant 2.000000e-01 : f32
    %144 = vector.broadcast %cst_83 : f32 to vector<8x256xf32>
    %145 = arith.mulf %144, %141 : vector<8x256xf32>
    %146 = arith.select %143, %141, %145 : vector<8x256xi1>, vector<8x256xf32>
    %c0_84 = arith.constant 0 : index
    %c0_85 = arith.constant 0 : index
    %147 = vector.load %arg20[%c0_84, %c0_85] : memref<256x100xf32, #tpu.memory_space<vmem>>, vector<256x100xf32>
    %cst_86 = arith.constant dense<0.000000e+00> : vector<8x100xf32>
    %148 = tpu.matmul %146, %147, %cst_86 {dimension_numbers = #tpu.dot_dimension_numbers<[1], [0], [0], [1], [0, 0, 1, 1], [], []>} : vector<8x256xf32>, vector<256x100xf32>, vector<8x100xf32> -> vector<8x100xf32>
    %c0_87 = arith.constant 0 : index
    %c0_88 = arith.constant 0 : index
    %149 = vector.load %arg23[%c0_87, %c0_88] : memref<1x1xf32, #tpu.memory_space<vmem>>, vector<1x1xf32>
    %c0_89 = arith.constant 0 : index
    %c0_90 = arith.constant 0 : index
    %150 = vector.load %arg24[%c0_89, %c0_90] : memref<1x1xf32, #tpu.memory_space<vmem>>, vector<1x1xf32>
    %c0_91 = arith.constant 0 : index
    %c0_92 = arith.constant 0 : index
    %151 = vector.load %arg21[%c0_91, %c0_92] : memref<100x1xf32, #tpu.memory_space<vmem>>, vector<100x1xf32>
    %c0_93 = arith.constant 0 : index
    %c0_94 = arith.constant 0 : index
    %152 = vector.load %arg22[%c0_93, %c0_94] : memref<1x100xf32, #tpu.memory_space<vmem>>, vector<1x100xf32>
    %cst_95 = arith.constant dense<0.000000e+00> : vector<100xf32>
    %153 = vector.multi_reduction <add>, %148, %cst_95 [0] : vector<8x100xf32> to vector<100xf32>
    %154 = vector.shape_cast %153 : vector<100xf32> to vector<1x100xf32>
    %155 = arith.mulf %148, %148 : vector<8x100xf32>
    %cst_96 = arith.constant dense<0.000000e+00> : vector<100xf32>
    %156 = vector.multi_reduction <add>, %155, %cst_96 [0] : vector<8x100xf32> to vector<100xf32>
    %157 = vector.shape_cast %156 : vector<100xf32> to vector<1x100xf32>
    %cst_97 = arith.constant dense<0.000000e+00> : vector<1x1xf32>
    %158 = tpu.matmul %154, %151, %cst_97 {dimension_numbers = #tpu.dot_dimension_numbers<[1], [0], [0], [1], [0, 0, 1, 1], [], []>} : vector<1x100xf32>, vector<100x1xf32>, vector<1x1xf32> -> vector<1x1xf32>
    %cst_98 = arith.constant dense<0.000000e+00> : vector<1x1xf32>
    %159 = tpu.matmul %157, %151, %cst_98 {dimension_numbers = #tpu.dot_dimension_numbers<[1], [0], [0], [1], [0, 0, 1, 1], [], []>} : vector<1x100xf32>, vector<100x1xf32>, vector<1x1xf32> -> vector<1x1xf32>
    %cst_99 = arith.constant 1.250000e-03 : f32
    %160 = vector.broadcast %cst_99 : f32 to vector<1x1xf32>
    %161 = arith.mulf %158, %160 : vector<1x1xf32>
    %cst_100 = arith.constant 1.250000e-03 : f32
    %162 = vector.broadcast %cst_100 : f32 to vector<1x1xf32>
    %163 = arith.mulf %159, %162 : vector<1x1xf32>
    %164 = arith.mulf %161, %161 : vector<1x1xf32>
    %165 = arith.subf %163, %164 : vector<1x1xf32>
    %cst_101 = arith.constant 0.000000e+00 : f32
    %166 = vector.broadcast %cst_101 : f32 to vector<1x1xf32>
    %167 = arith.maximumf %165, %166 : vector<1x1xf32>
    %cst_102 = arith.constant 9.99999974E-6 : f32
    %168 = vector.broadcast %cst_102 : f32 to vector<1x1xf32>
    %169 = arith.addf %167, %168 : vector<1x1xf32>
    %170 = math.rsqrt %169 : vector<1x1xf32>
    %171 = arith.mulf %149, %170 : vector<1x1xf32>
    %172 = arith.mulf %161, %171 : vector<1x1xf32>
    %173 = arith.subf %150, %172 : vector<1x1xf32>
    %cst_103 = arith.constant dense<0.000000e+00> : vector<1x100xf32>
    %174 = tpu.matmul %171, %152, %cst_103 {dimension_numbers = #tpu.dot_dimension_numbers<[1], [0], [0], [1], [0, 0, 1, 1], [], []>} : vector<1x1xf32>, vector<1x100xf32>, vector<1x100xf32> -> vector<1x100xf32>
    %cst_104 = arith.constant dense<0.000000e+00> : vector<1x100xf32>
    %175 = tpu.matmul %173, %152, %cst_104 {dimension_numbers = #tpu.dot_dimension_numbers<[1], [0], [0], [1], [0, 0, 1, 1], [], []>} : vector<1x1xf32>, vector<1x100xf32>, vector<1x100xf32> -> vector<1x100xf32>
    %176 = vector.broadcast %174 : vector<1x100xf32> to vector<8x100xf32>
    %177 = arith.mulf %148, %176 : vector<8x100xf32>
    %178 = vector.broadcast %175 : vector<1x100xf32> to vector<8x100xf32>
    %179 = arith.addf %177, %178 : vector<8x100xf32>
    %cst_105 = arith.constant 0.000000e+00 : f32
    %180 = vector.broadcast %cst_105 : f32 to vector<8x100xf32>
    %181 = arith.subf %180, %179 : vector<8x100xf32>
    %182 = math.exp %181 : vector<8x100xf32>
    %cst_106 = arith.constant 1.000000e+00 : f32
    %183 = vector.broadcast %cst_106 : f32 to vector<8x100xf32>
    %184 = arith.addf %183, %182 : vector<8x100xf32>
    %cst_107 = arith.constant 1.000000e+00 : f32
    %185 = vector.broadcast %cst_107 : f32 to vector<8x100xf32>
    %186 = arith.divf %185, %184 : vector<8x100xf32>
    %c0_108 = arith.constant 0 : index
    %c0_109 = arith.constant 0 : index
    %187 = vector.load %arg25[%c0_108, %c0_109] : memref<8x100xf32, #tpu.memory_space<vmem>>, vector<8x100xf32>
    tpu.vector_store %arg25[%c0_108, %c0_109], %186 {strides = array<i32>} : memref<8x100xf32, #tpu.memory_space<vmem>>, vector<8x100xf32>,
    return
  }
  func.func @transform_0(%arg0: i32) -> (i32, i32) {
    %c0_i32 = arith.constant 0 : i32
    %c0_i32_0 = arith.constant 0 : i32
    %c0_i32_1 = arith.constant 0 : i32
    return %c0_i32, %c0_i32_0 : i32, i32
  }
  func.func @transform_1(%arg0: i32) -> (i32, i32) {
    %c0_i32 = arith.constant 0 : i32
    %c0_i32_0 = arith.constant 0 : i32
    %c0_i32_1 = arith.constant 0 : i32
    return %c0_i32, %c0_i32_0 : i32, i32
  }
  func.func @transform_2(%arg0: i32) -> (i32, i32) {
    %c0_i32 = arith.constant 0 : i32
    %c0_i32_0 = arith.constant 0 : i32
    %c0_i32_1 = arith.constant 0 : i32
    return %c0_i32, %c0_i32_0 : i32, i32
  }
  func.func @transform_3(%arg0: i32) -> (i32, i32) {
    %c0_i32 = arith.constant 0 : i32
    %c0_i32_0 = arith.constant 0 : i32
    %c0_i32_1 = arith.constant 0 : i32
    return %c0_i32, %c0_i32_0 : i32, i32
  }
  func.func @transform_4(%arg0: i32) -> (i32, i32) {
    %c0_i32 = arith.constant 0 : i32
    %c0_i32_0 = arith.constant 0 : i32
    %c0_i32_1 = arith.constant 0 : i32
    return %c0_i32, %c0_i32_0 : i32, i32
  }
  func.func @transform_5(%arg0: i32) -> (i32, i32) {
    %c0_i32 = arith.constant 0 : i32
    %c0_i32_0 = arith.constant 0 : i32
    %c0_i32_1 = arith.constant 0 : i32
    return %c0_i32, %c0_i32_0 : i32, i32
  }
  func.func @transform_6(%arg0: i32) -> (i32, i32) {
    %c0_i32 = arith.constant 0 : i32
    %c0_i32_0 = arith.constant 0 : i32
    %c0_i32_1 = arith.constant 0 : i32
    return %c0_i32, %c0_i32_0 : i32, i32
  }
  func.func @transform_7(%arg0: i32) -> (i32, i32) {
    %c0_i32 = arith.constant 0 : i32
    %c0_i32_0 = arith.constant 0 : i32
    %c0_i32_1 = arith.constant 0 : i32
    return %c0_i32, %c0_i32_0 : i32, i32
  }
  func.func @transform_8(%arg0: i32) -> (i32, i32) {
    %c0_i32 = arith.constant 0 : i32
    %c0_i32_0 = arith.constant 0 : i32
    %c0_i32_1 = arith.constant 0 : i32
    return %c0_i32, %c0_i32_0 : i32, i32
  }
  func.func @transform_9(%arg0: i32) -> (i32, i32) {
    %c0_i32 = arith.constant 0 : i32
    %c0_i32_0 = arith.constant 0 : i32
    %c0_i32_1 = arith.constant 0 : i32
    return %c0_i32, %c0_i32_0 : i32, i32
  }
  func.func @transform_10(%arg0: i32) -> (i32, i32) {
    %c0_i32 = arith.constant 0 : i32
    %c0_i32_0 = arith.constant 0 : i32
    %c0_i32_1 = arith.constant 0 : i32
    return %c0_i32, %c0_i32_0 : i32, i32
  }
  func.func @transform_11(%arg0: i32) -> (i32, i32) {
    %c0_i32 = arith.constant 0 : i32
    %c0_i32_0 = arith.constant 0 : i32
    %c0_i32_1 = arith.constant 0 : i32
    return %c0_i32, %c0_i32_0 : i32, i32
  }
  func.func @transform_12(%arg0: i32) -> (i32, i32) {
    %c0_i32 = arith.constant 0 : i32
    %c0_i32_0 = arith.constant 0 : i32
    %c0_i32_1 = arith.constant 0 : i32
    return %c0_i32, %c0_i32_0 : i32, i32
  }
  func.func @transform_13(%arg0: i32) -> (i32, i32) {
    %c0_i32 = arith.constant 0 : i32
    %c0_i32_0 = arith.constant 0 : i32
    %c0_i32_1 = arith.constant 0 : i32
    return %c0_i32, %c0_i32_0 : i32, i32
  }
  func.func @transform_14(%arg0: i32) -> (i32, i32) {
    %c0_i32 = arith.constant 0 : i32
    %c0_i32_0 = arith.constant 0 : i32
    %c0_i32_1 = arith.constant 0 : i32
    return %c0_i32, %c0_i32_0 : i32, i32
  }
  func.func @transform_15(%arg0: i32) -> (i32, i32) {
    %c0_i32 = arith.constant 0 : i32
    %c0_i32_0 = arith.constant 0 : i32
    %c0_i32_1 = arith.constant 0 : i32
    return %c0_i32, %c0_i32_0 : i32, i32
  }
  func.func @transform_16(%arg0: i32) -> (i32, i32) {
    %c0_i32 = arith.constant 0 : i32
    %c0_i32_0 = arith.constant 0 : i32
    %c0_i32_1 = arith.constant 0 : i32
    return %c0_i32, %c0_i32_0 : i32, i32
  }
  func.func @transform_17(%arg0: i32) -> (i32, i32) {
    %c0_i32 = arith.constant 0 : i32
    %c0_i32_0 = arith.constant 0 : i32
    %c0_i32_1 = arith.constant 0 : i32
    return %c0_i32, %c0_i32_0 : i32, i32
  }
  func.func @transform_18(%arg0: i32) -> (i32, i32) {
    %c0_i32 = arith.constant 0 : i32
    %c0_i32_0 = arith.constant 0 : i32
    %c0_i32_1 = arith.constant 0 : i32
    return %c0_i32, %c0_i32_0 : i32, i32
  }
  func.func @transform_19(%arg0: i32) -> (i32, i32) {
    %c0_i32 = arith.constant 0 : i32
    %c0_i32_0 = arith.constant 0 : i32
    %c0_i32_1 = arith.constant 0 : i32
    return %c0_i32, %c0_i32_0 : i32, i32
  }
  func.func @transform_20(%arg0: i32) -> (i32, i32) {
    %c0_i32 = arith.constant 0 : i32
    %c0_i32_0 = arith.constant 0 : i32
    %c0_i32_1 = arith.constant 0 : i32
    return %c0_i32, %c0_i32_0 : i32, i32
  }
  func.func @transform_21(%arg0: i32) -> (i32, i32) {
    %c0_i32 = arith.constant 0 : i32
    %c0_i32_0 = arith.constant 0 : i32
    %c0_i32_1 = arith.constant 0 : i32
    return %c0_i32, %c0_i32_0 : i32, i32
  }
  func.func @transform_22(%arg0: i32) -> (i32, i32) {
    %c0_i32 = arith.constant 0 : i32
    %c0_i32_0 = arith.constant 0 : i32
    %c0_i32_1 = arith.constant 0 : i32
    return %c0_i32, %c0_i32_0 : i32, i32
  }
  func.func @transform_23(%arg0: i32) -> (i32, i32) {
    %c0_i32 = arith.constant 0 : i32
    %c0_i32_0 = arith.constant 0 : i32
    %c0_i32_1 = arith.constant 0 : i32
    return %c0_i32, %c0_i32_0 : i32, i32
  }
  func.func @transform_24(%arg0: i32) -> (i32, i32) {
    %c0_i32 = arith.constant 0 : i32
    %c0_i32_0 = arith.constant 0 : i32
    %c0_i32_1 = arith.constant 0 : i32
    return %c0_i32, %c0_i32_0 : i32, i32
  }
}

</mosaic_0001>

<llo_original>
// kernel: _lambda_.1
$region0: #{_lambda_.1}
  #allocation0 [shape = 'u32[]', space=smem, size = 0x4, offset = 0x4, fixed_abs, tag = 'smem constant byte address 0x4 - core index']
  #allocation1 [shape = 'u32[144,128]{1,0:T(1,128)}', space=vmem, size = 0x12000, scoped, tag = 'internal scratch']
  #allocation2 [shape = 'f32[1,1]{1,0:T(1,128)S(1)}', space=vmem, size = 0x200, scoped, tag = 'scoped memory for _lambda_.1']
  #allocation3 [shape = 'f32[1,1]{1,0:T(1,128)S(1)}', space=vmem, size = 0x200, scoped, tag = 'scoped memory for _lambda_.1']
  %s0 = inlined_call_operand.vmem [shape: f32[8,32], index: 0, kind: input, shape index: {}]
  %s1 = inlined_call_operand.vmem [shape: f32[32,128], index: 1, kind: input, shape index: {}]
  %s2 = inlined_call_operand.vmem [shape: f32[1,128], index: 2, kind: input, shape index: {}]
  %s3 = inlined_call_operand.vmem [shape: f32[1,128], index: 3, kind: input, shape index: {}]
  %s4 = inlined_call_operand.hbm [shape: f32[128,256], index: 4, kind: input, shape index: {}]
  %s5 = inlined_call_operand.hbm [shape: f32[256,16], index: 5, kind: input, shape index: {}]
  %s6 = inlined_call_operand.vmem [shape: f32[16,256], index: 6, kind: input, shape index: {}]
  %s7 = inlined_call_operand.vmem [shape: f32[1,16], index: 7, kind: input, shape index: {}]
  %s8 = inlined_call_operand.vmem [shape: f32[1,16], index: 8, kind: input, shape index: {}]
  %s9 = inlined_call_operand.hbm [shape: f32[256,288], index: 9, kind: input, shape index: {}]
  %s10 = inlined_call_operand.hbm [shape: f32[288,8], index: 10, kind: input, shape index: {}]
  %s11 = inlined_call_operand.vmem [shape: f32[8,288], index: 11, kind: input, shape index: {}]
  %s12 = inlined_call_operand.vmem [shape: f32[1,8], index: 12, kind: input, shape index: {}]
  %s13 = inlined_call_operand.vmem [shape: f32[1,8], index: 13, kind: input, shape index: {}]
  %s14 = inlined_call_operand.hbm [shape: f32[288,256], index: 14, kind: input, shape index: {}]
  %s15 = inlined_call_operand.hbm [shape: f32[256,4], index: 15, kind: input, shape index: {}]
  %s16 = inlined_call_operand.vmem [shape: f32[4,256], index: 16, kind: input, shape index: {}]
  %s17 = inlined_call_operand.vmem [shape: f32[1,4], index: 17, kind: input, shape index: {}]
  %s18 = inlined_call_operand.vmem [shape: f32[1,4], index: 18, kind: input, shape index: {}]
  %s19 = inlined_call_operand.hbm [shape: f32[256,100], index: 19, kind: input, shape index: {}]
  %s20 = inlined_call_operand.vmem [shape: f32[100,1], index: 20, kind: input, shape index: {}]
  %s21 = inlined_call_operand.vmem [shape: f32[1,100], index: 21, kind: input, shape index: {}]
  %s22 = inlined_call_operand.<no memory space> [shape: f32[1,1], index: 22, kind: input, shape index: {}]
  %s23 = inlined_call_operand.<no memory space> [shape: f32[1,1], index: 23, kind: input, shape index: {}]
  %s24 = inlined_call_operand.vmem [shape: f32[8,100], index: 24, kind: output, shape index: {}]
  %s25 = sld [smem:[#allocation0]]
  $region134: #{_lambda_.1} parent=0
    _
  %s27 = ssub.s32 1, %s25
  %s28 = scalar_select 0, %s27, %s25
  %v29 = vstv %s22
  %30 = vst [vmem:[#allocation2] sm:$0x1] %v29
  %v31 = vstv %s23
  %32 = vst [vmem:[#allocation3] sm:$0x1] %v31
  $region1: #{_lambda_.1} parent=0
    #allocation4 [shape = 'u8[131072]{0}', space=vmem, size = 0x20000, scoped, tag = 'input window, operand 4, single buffered']
    #allocation5 [shape = 's32[1]{0}', space=sflag, size = 0x4, scoped, tag = 'scoped memory for _lambda_.1']
    #allocation6 [shape = 'u8[131072]{0}', space=vmem, size = 0x20000, scoped, tag = 'input window, operand 5, single buffered']
    #allocation7 [shape = 's32[1]{0}', space=sflag, size = 0x4, scoped, tag = 'scoped memory for _lambda_.1']
    #allocation8 [shape = 'u8[393216]{0}', space=vmem, size = 0x60000, scoped, tag = 'input window, operand 9, single buffered']
    #allocation9 [shape = 'u8[147456]{0}', space=vmem, size = 0x24000, scoped, tag = 'input window, operand 10, single buffered']
    #allocation10 [shape = 's32[1]{0}', space=sflag, size = 0x4, scoped, tag = 'scoped memory for _lambda_.1']
    #allocation11 [shape = 'u8[294912]{0}', space=vmem, size = 0x48000, scoped, tag = 'input window, operand 14, single buffered']
    #allocation12 [shape = 'u8[131072]{0}', space=vmem, size = 0x20000, scoped, tag = 'input window, operand 15, single buffered']
    #allocation13 [shape = 's32[1]{0}', space=sflag, size = 0x4, scoped, tag = 'scoped memory for _lambda_.1']
    #allocation14 [shape = 'u8[131072]{0}', space=vmem, size = 0x20000, scoped, tag = 'input window, operand 19, single buffered']
    %33 = vsyncpa [#allocation5], 0
    %34 = vsyncpa [#allocation7], 0
    %35 = vsyncpa [#allocation10], 0
    %36 = vsyncpa [#allocation13], 0
    // Predicated region
    $region2: #{_lambda_.1} parent=1 // pred_check
      _
    $region3: #{_lambda_.1} parent=1 // pred_check_branch
      %38 = sbr.rel (0) target = $region5
    $region4: #{_lambda_.1} parent=1 // pred_region
      _
    $region5: #{_lambda_.1} parent=1 // pred_fallthru
      _
    // Predicated region
    $region6: #{_lambda_.1} parent=1 // pred_check
      _
    $region7: #{_lambda_.1} parent=1 // pred_check_branch
      %40 = sbr.rel (0) target = $region9
    $region8: #{_lambda_.1} parent=1 // pred_region
      _
    $region9: #{_lambda_.1} parent=1 // pred_fallthru
      _
    // Predicated region
    $region10: #{_lambda_.1} parent=1 // pred_check
      _
    $region11: #{_lambda_.1} parent=1 // pred_check_branch
      %42 = sbr.rel (0) target = $region13
    $region12: #{_lambda_.1} parent=1 // pred_region
      _
    $region13: #{_lambda_.1} parent=1 // pred_fallthru
      _
    // Predicated region
    $region14: #{_lambda_.1} parent=1 // pred_check
      _
    $region15: #{_lambda_.1} parent=1 // pred_check_branch
      %44 = sbr.rel (0) target = $region17
    $region16: #{_lambda_.1} parent=1 // pred_region
      _
    $region17: #{_lambda_.1} parent=1 // pred_fallthru
      _
    // Predicated region
    $region18: #{_lambda_.1} parent=1 // pred_check
      _
    $region19: #{_lambda_.1} parent=1 // pred_check_branch
      %46 = sbr.rel (0) target = $region21
    $region20: #{_lambda_.1} parent=1 // pred_region
      %s48 = ssub.s32 4096, 4096
      %49 = vsyncadd [#allocation5], %s48
      %s50 = sshll.u32 [#allocation4], 4
      %s51 = int_to_ptr.vmem [resolvable:$true] %s50
      %56 = dma.hbm_to_vmem [thread:$0]  %s4, 4096, %s51, [#allocation5], 256, 256, 16
    $region21: #{_lambda_.1} parent=1 // pred_fallthru
      _
    // Predicated region
    $region22: #{_lambda_.1} parent=1 // pred_check
      _
    $region23: #{_lambda_.1} parent=1 // pred_check_branch
      %58 = sbr.rel (0) target = $region25
    $region24: #{_lambda_.1} parent=1 // pred_region
      %s60 = ssub.s32 4096, 4096
      %61 = vsyncadd [#allocation7], %s60
      %s62 = sshll.u32 [#allocation6], 4
      %s63 = int_to_ptr.vmem [resolvable:$true] %s62
      %68 = dma.hbm_to_vmem [thread:$0]  %s5, 4096, %s63, [#allocation7], 128, 128, 8
    $region25: #{_lambda_.1} parent=1 // pred_fallthru
      _
    // Predicated region
    $region26: #{_lambda_.1} parent=1 // pred_check
      _
    $region27: #{_lambda_.1} parent=1 // pred_check_branch
      %70 = sbr.rel (0) target = $region29
    $region28: #{_lambda_.1} parent=1 // pred_region
      _
    $region29: #{_lambda_.1} parent=1 // pred_fallthru
      _
    // Predicated region
    $region30: #{_lambda_.1} parent=1 // pred_check
      _
    $region31: #{_lambda_.1} parent=1 // pred_check_branch
      %72 = sbr.rel (0) target = $region33
    $region32: #{_lambda_.1} parent=1 // pred_region
      _
    $region33: #{_lambda_.1} parent=1 // pred_fallthru
      _
    // Predicated region
    $region34: #{_lambda_.1} parent=1 // pred_check
      _
    $region35: #{_lambda_.1} parent=1 // pred_check_branch
      %74 = sbr.rel (0) target = $region37
    $region36: #{_lambda_.1} parent=1 // pred_region
      _
    $region37: #{_lambda_.1} parent=1 // pred_fallthru
      _
    // Predicated region
    $region38: #{_lambda_.1} parent=1 // pred_check
      _
    $region39: #{_lambda_.1} parent=1 // pred_check_branch
      %76 = sbr.rel (0) target = $region41
    $region40: #{_lambda_.1} parent=1 // pred_region
      %s78 = ssub.s32 12288, 12288
      %79 = vsyncadd [#allocation7], %s78
      %s80 = sshll.u32 [#allocation8], 4
      %s81 = int_to_ptr.vmem [resolvable:$true] %s80
      %86 = dma.hbm_to_vmem [thread:$0]  %s9, 12288, %s81, [#allocation7], 384, 384, 24
    $region41: #{_lambda_.1} parent=1 // pred_fallthru
      _
    // Predicated region
    $region42: #{_lambda_.1} parent=1 // pred_check
      _
    $region43: #{_lambda_.1} parent=1 // pred_check_branch
      %88 = sbr.rel (0) target = $region45
    $region44: #{_lambda_.1} parent=1 // pred_region
      %s90 = ssub.s32 4608, 4608
      %91 = vsyncadd [#allocation10], %s90
      %s92 = sshll.u32 [#allocation9], 4
      %s93 = int_to_ptr.vmem [resolvable:$true] %s92
      %98 = dma.hbm_to_vmem [thread:$0]  %s10, 4608, %s93, [#allocation10], 128, 128, 8
    $region45: #{_lambda_.1} parent=1 // pred_fallthru
      _
    // Predicated region
    $region46: #{_lambda_.1} parent=1 // pred_check
      _
    $region47: #{_lambda_.1} parent=1 // pred_check_branch
      %100 = sbr.rel (0) target = $region49
    $region48: #{_lambda_.1} parent=1 // pred_region
      _
    $region49: #{_lambda_.1} parent=1 // pred_fallthru
      _
    // Predicated region
    $region50: #{_lambda_.1} parent=1 // pred_check
      _
    $region51: #{_lambda_.1} parent=1 // pred_check_branch
      %102 = sbr.rel (0) target = $region53
    $region52: #{_lambda_.1} parent=1 // pred_region
      _
    $region53: #{_lambda_.1} parent=1 // pred_fallthru
      _
    // Predicated region
    $region54: #{_lambda_.1} parent=1 // pred_check
      _
    $region55: #{_lambda_.1} parent=1 // pred_check_branch
      %104 = sbr.rel (0) target = $region57
    $region56: #{_lambda_.1} parent=1 // pred_region
      _
    $region57: #{_lambda_.1} parent=1 // pred_fallthru
      _
    // Predicated region
    $region58: #{_lambda_.1} parent=1 // pred_check
      _
    $region59: #{_lambda_.1} parent=1 // pred_check_branch
      %106 = sbr.rel (0) target = $region61
    $region60: #{_lambda_.1} parent=1 // pred_region
      %s108 = ssub.s32 9216, 9216
      %109 = vsyncadd [#allocation10], %s108
      %s110 = sshll.u32 [#allocation11], 4
      %s111 = int_to_ptr.vmem [resolvable:$true] %s110
      %116 = dma.hbm_to_vmem [thread:$0]  %s14, 9216, %s111, [#allocation10], 256, 256, 16
    $region61: #{_lambda_.1} parent=1 // pred_fallthru
      _
    // Predicated region
    $region62: #{_lambda_.1} parent=1 // pred_check
      _
    $region63: #{_lambda_.1} parent=1 // pred_check_branch
      %118 = sbr.rel (0) target = $region65
    $region64: #{_lambda_.1} parent=1 // pred_region
      %s120 = ssub.s32 4096, 4096
      %121 = vsyncadd [#allocation13], %s120
      %s122 = sshll.u32 [#allocation12], 4
      %s123 = int_to_ptr.vmem [resolvable:$true] %s122
      %128 = dma.hbm_to_vmem [thread:$0]  %s15, 4096, %s123, [#allocation13], 128, 128, 8
    $region65: #{_lambda_.1} parent=1 // pred_fallthru
      _
    // Predicated region
    $region66: #{_lambda_.1} parent=1 // pred_check
      _
    $region67: #{_lambda_.1} parent=1 // pred_check_branch
      %130 = sbr.rel (0) target = $region69
    $region68: #{_lambda_.1} parent=1 // pred_region
      _
    $region69: #{_lambda_.1} parent=1 // pred_fallthru
      _
    // Predicated region
    $region70: #{_lambda_.1} parent=1 // pred_check
      _
    $region71: #{_lambda_.1} parent=1 // pred_check_branch
      %132 = sbr.rel (0) target = $region73
    $region72: #{_lambda_.1} parent=1 // pred_region
      _
    $region73: #{_lambda_.1} parent=1 // pred_fallthru
      _
    // Predicated region
    $region74: #{_lambda_.1} parent=1 // pred_check
      _
    $region75: #{_lambda_.1} parent=1 // pred_check_branch
      %134 = sbr.rel (0) target = $region77
    $region76: #{_lambda_.1} parent=1 // pred_region
      _
    $region77: #{_lambda_.1} parent=1 // pred_fallthru
      _
    // Predicated region
    $region78: #{_lambda_.1} parent=1 // pred_check
      _
    $region79: #{_lambda_.1} parent=1 // pred_check_branch
      %136 = sbr.rel (0) target = $region81
    $region80: #{_lambda_.1} parent=1 // pred_region
      %s138 = ssub.s32 4096, 4096
      %139 = vsyncadd [#allocation13], %s138
      %s140 = sshll.u32 [#allocation14], 4
      %s141 = int_to_ptr.vmem [resolvable:$true] %s140
      %146 = dma.hbm_to_vmem [thread:$0]  %s19, 4096, %s141, [#allocation13], 128, 128, 8
    $region81: #{_lambda_.1} parent=1 // pred_fallthru
      _
    // Predicated region
    $region82: #{_lambda_.1} parent=1 // pred_check
      _
    $region83: #{_lambda_.1} parent=1 // pred_check_branch
      %148 = sbr.rel (0) target = $region85
    $region84: #{_lambda_.1} parent=1 // pred_region
      _
    $region85: #{_lambda_.1} parent=1 // pred_fallthru
      _
    // Predicated region
    $region86: #{_lambda_.1} parent=1 // pred_check
      _
    $region87: #{_lambda_.1} parent=1 // pred_check_branch
      %150 = sbr.rel (0) target = $region89
    $region88: #{_lambda_.1} parent=1 // pred_region
      _
    $region89: #{_lambda_.1} parent=1 // pred_fallthru
      _
    // Predicated region
    $region90: #{_lambda_.1} parent=1 // pred_check
      _
    $region91: #{_lambda_.1} parent=1 // pred_check_branch
      %152 = sbr.rel (0) target = $region93
    $region92: #{_lambda_.1} parent=1 // pred_region
      _
    $region93: #{_lambda_.1} parent=1 // pred_fallthru
      _
    // Predicated region
    $region94: #{_lambda_.1} parent=1 // pred_check
      _
    $region95: #{_lambda_.1} parent=1 // pred_check_branch
      %154 = sbr.rel (0) target = $region97
    $region96: #{_lambda_.1} parent=1 // pred_region
      _
    $region97: #{_lambda_.1} parent=1 // pred_fallthru
      _
    // Predicated region
    $region98: #{_lambda_.1} parent=1 // pred_check
      _
    $region99: #{_lambda_.1} parent=1 // pred_check_branch
      %156 = sbr.rel (0) target = $region101
    $region100: #{_lambda_.1} parent=1 // pred_region
      %157 = dma.done [#allocation5], 4096
    $region101: #{_lambda_.1} parent=1 // pred_fallthru
      _
    // Predicated region
    $region102: #{_lambda_.1} parent=1 // pred_check
      _
    $region103: #{_lambda_.1} parent=1 // pred_check_branch
      %159 = sbr.rel (0) target = $region105
    $region104: #{_lambda_.1} parent=1 // pred_region
      %160 = dma.done [#allocation7], 4096
    $region105: #{_lambda_.1} parent=1 // pred_fallthru
      _
    // Predicated region
    $region106: #{_lambda_.1} parent=1 // pred_check
      _
    $region107: #{_lambda_.1} parent=1 // pred_check_branch
      %162 = sbr.rel (0) target = $region109
    $region108: #{_lambda_.1} parent=1 // pred_region
      %163 = dma.done [#allocation7], 12288
    $region109: #{_lambda_.1} parent=1 // pred_fallthru
      _
    // Predicated region
    $region110: #{_lambda_.1} parent=1 // pred_check
      _
    $region111: #{_lambda_.1} parent=1 // pred_check_branch
      %165 = sbr.rel (0) target = $region113
    $region112: #{_lambda_.1} parent=1 // pred_region
      %166 = dma.done [#allocation10], 4608
    $region113: #{_lambda_.1} parent=1 // pred_fallthru
      _
    // Predicated region
    $region114: #{_lambda_.1} parent=1 // pred_check
      _
    $region115: #{_lambda_.1} parent=1 // pred_check_branch
      %168 = sbr.rel (0) target = $region117
    $region116: #{_lambda_.1} parent=1 // pred_region
      %169 = dma.done [#allocation10], 9216
    $region117: #{_lambda_.1} parent=1 // pred_fallthru
      _
    // Predicated region
    $region118: #{_lambda_.1} parent=1 // pred_check
      _
    $region119: #{_lambda_.1} parent=1 // pred_check_branch
      %171 = sbr.rel (0) target = $region121
    $region120: #{_lambda_.1} parent=1 // pred_region
      %172 = dma.done [#allocation13], 4096
    $region121: #{_lambda_.1} parent=1 // pred_fallthru
      _
    // Predicated region
    $region122: #{_lambda_.1} parent=1 // pred_check
      _
    $region123: #{_lambda_.1} parent=1 // pred_check_branch
      %174 = sbr.rel (0) target = $region125
    $region124: #{_lambda_.1} parent=1 // pred_region
      %175 = dma.done [#allocation13], 4096
    $region125: #{_lambda_.1} parent=1 // pred_fallthru
      _
    %v176 = vld [vmem:[%s0] sm:$0xff]
    %v177 = vld [vmem:[%s1] sm:$0xff]
    %v178 = vld [vmem:[%s1 + $0x8] sm:$0xff]
    %v179 = vld [vmem:[%s1 + $0x10] sm:$0xff]
    %v180 = vld [vmem:[%s1 + $0x18] sm:$0xff]
    %vm181 = vcmask 261120
    %v183 = vsel %vm181, %v176, 0
    %185 = vmatprep.subr.mxu0 0.0
    %186 = vmatpush1.msra.mxu0 %v177
    %187 = vmatprep.subr.mxu0 0.0
    %188 = vmatpush1.msra.mxu0 %v178
    %189 = vmatprep.subr.mxu0 0.0
    %190 = vmatpush1.msra.mxu0 %v179
    %191 = vmatprep.subr.mxu0 0.0
    %192 = vmatpush1.msra.mxu0 %v180
    %193 = vmatprep.subr.mxu0 0.0
    %194 = vmatpush1.msra.mxu0 0.0
    %195 = vmatprep.subr.mxu0 0.0
    %196 = vmatpush1.msra.mxu0 0.0
    %197 = vmatprep.subr.mxu0 0.0
    %198 = vmatpush1.msra.mxu0 0.0
    %199 = vmatprep.subr.mxu0 0.0
    %200 = vmatpush1.msra.mxu0 0.0
    %201 = vmatprep.subr.mxu0 0.0
    %202 = vmatpush1.msra.mxu0 0.0
    %203 = vmatprep.subr.mxu0 0.0
    %204 = vmatpush1.msra.mxu0 0.0
    %205 = vmatprep.subr.mxu0 0.0
    %206 = vmatpush1.msra.mxu0 0.0
    %207 = vmatprep.subr.mxu0 0.0
    %208 = vmatpush1.msra.mxu0 0.0
    %209 = vmatprep.subr.mxu0 0.0
    %210 = vmatpush1.msra.mxu0 0.0
    %211 = vmatprep.subr.mxu0 0.0
    %212 = vmatpush1.msra.mxu0 0.0
    %213 = vmatprep.subr.mxu0 0.0
    %214 = vmatpush1.msra.mxu0 0.0
    %215 = vmatprep.subr.mxu0 0.0
    %216 = vmatpush1.msra.mxu0 0.0
    %217 = vmatprep.subr.mxu0 0.0
    %218 = vmatpush1.msra.mxu0 0.0
    %219 = vmatprep.subr.mxu0 0.0
    %220 = vmatpush1.msra.mxu0 0.0
    %221 = vmatprep.subr.mxu0 0.0
    %222 = vmatpush1.msra.mxu0 0.0
    %223 = vmatprep.subr.mxu0 0.0
    %224 = vmatpush1.msra.mxu0 0.0
    %225 = vmatprep.subr.mxu0 0.0
    %226 = vmatpush1.msra.mxu0 0.0
    %227 = vmatprep.subr.mxu0 0.0
    %228 = vmatpush1.msra.mxu0 0.0
    %229 = vmatprep.subr.mxu0 0.0
    %230 = vmatpush1.msra.mxu0 0.0
    %231 = vmatprep.subr.mxu0 0.0
    %232 = vmatpush1.msra.mxu0 0.0
    %233 = vmatprep.subr.mxu0 0.0
    %234 = vmatpush1.msra.mxu0 0.0
    %235 = vmatprep.subr.mxu0 0.0
    %236 = vmatpush1.msra.mxu0 0.0
    %237 = vmatprep.subr.mxu0 0.0
    %238 = vmatpush1.msra.mxu0 0.0
    %239 = vmatprep.subr.mxu0 0.0
    %240 = vmatpush1.msra.mxu0 0.0
    %241 = vmatprep.subr.mxu0 0.0
    %242 = vmatpush1.msra.mxu0 0.0
    %243 = vmatprep.subr.mxu0 0.0
    %244 = vmatpush1.msra.mxu0 0.0
    %245 = vmatprep.subr.mxu0 0.0
    %246 = vmatpush1.msra.mxu0 0.0
    %247 = vmatprep.subr.mxu0 0.0
    %248 = vmatpush1.msra.mxu0 0.0
    %249 = vmatprep.mubr.f32.mxu0 0.0
    %250 = vmatmul.mubr.f32.gmra.mrb[0].mxu0 %v183
    %v251 = vpop.f32.mrb[0].mxu0
    %v252 = vadd.f32 0.0, %v251
    %v253 = vpop.f32.mrb[0].mxu0
    %254 = vdwg.mxu0
    %v255 = vld [vmem:[%s2] sm:$0x1]
    %v256 = vld [vmem:[%s3] sm:$0x1]
    %v257 = vrot.slane %v252, 4
    %v258 = vadd.f32 %v252, %v257
    %v259 = vrot.slane %v258, 2
    %v260 = vadd.f32 %v258, %v259
    %v261 = vrot.slane %v260, 1
    %v262 = vadd.f32 %v260, %v261
    %v263 = vmul.f32 %v252, %v252
    %v264 = vrot.slane %v263, 4
    %v265 = vadd.f32 %v263, %v264
    %v266 = vrot.slane %v265, 2
    %v267 = vadd.f32 %v265, %v266
    %v268 = vrot.slane %v267, 1
    %v269 = vadd.f32 %v267, %v268
    %v270 = vmul.f32 %v262, 0.125
    %v271 = vmul.f32 %v269, 0.125
    %v272 = vmul.f32 %v270, %v270
    %v273 = vsub.f32 %v271, %v272
    %v274 = vmax.f32 %v273, 0.0
    %v275 = vadd.f32 %v274, 1e-05
    %v276 = vrsqrt.pop %v275
    %v277 = vmul.f32 %v255, %v276
    %v278 = vmul.f32 %v270, %v277
    %v279 = vsub.f32 %v256, %v278
    %v281 = vlaneseq
    %v282 = vshrl.u32 %v281, 7
    %v283 = vsub.s32 0, %v282
    %v284 = vrot.slane %v277, %v283
    %v286 = vmul.f32 %v252, %v284
    %v288 = vlaneseq
    %v289 = vshrl.u32 %v288, 7
    %v290 = vsub.s32 0, %v289
    %v291 = vrot.slane %v279, %v290
    %v293 = vadd.f32 %v286, %v291
    %vm294 = vcmp.ge.f32.partialorder %v293, 0.0
    %v295 = vmul.f32 %v293, 0.2
    %v296 = vsel %vm294, %v293, %v295
    %v297 = vld [vmem:[#allocation4] sm:$0xff]
    %v298 = vld [vmem:[#allocation4 + $0x8] sm:$0xff]
    %v299 = vld [vmem:[#allocation4 + $0x10] sm:$0xff]
    %v300 = vld [vmem:[#allocation4 + $0x18] sm:$0xff]
    %v301 = vld [vmem:[#allocation4 + $0x20] sm:$0xff]
    %v302 = vld [vmem:[#allocation4 + $0x28] sm:$0xff]
    %v303 = vld [vmem:[#allocation4 + $0x30] sm:$0xff]
    %v304 = vld [vmem:[#allocation4 + $0x38] sm:$0xff]
    %v305 = vld [vmem:[#allocation4 + $0x40] sm:$0xff]
    %v306 = vld [vmem:[#allocation4 + $0x48] sm:$0xff]
    %v307 = vld [vmem:[#allocation4 + $0x50] sm:$0xff]
    %v308 = vld [vmem:[#allocation4 + $0x58] sm:$0xff]
    %v309 = vld [vmem:[#allocation4 + $0x60] sm:$0xff]
    %v310 = vld [vmem:[#allocation4 + $0x68] sm:$0xff]
    %v311 = vld [vmem:[#allocation4 + $0x70] sm:$0xff]
    %v312 = vld [vmem:[#allocation4 + $0x78] sm:$0xff]
    %v313 = vld [vmem:[#allocation4 + $0x80] sm:$0xff]
    %v314 = vld [vmem:[#allocation4 + $0x88] sm:$0xff]
    %v315 = vld [vmem:[#allocation4 + $0x90] sm:$0xff]
    %v316 = vld [vmem:[#allocation4 + $0x98] sm:$0xff]
    %v317 = vld [vmem:[#allocation4 + $0xa0] sm:$0xff]
    %v318 = vld [vmem:[#allocation4 + $0xa8] sm:$0xff]
    %v319 = vld [vmem:[#allocation4 + $0xb0] sm:$0xff]
    %v320 = vld [vmem:[#allocation4 + $0xb8] sm:$0xff]
    %v321 = vld [vmem:[#allocation4 + $0xc0] sm:$0xff]
    %v322 = vld [vmem:[#allocation4 + $0xc8] sm:$0xff]
    %v323 = vld [vmem:[#allocation4 + $0xd0] sm:$0xff]
    %v324 = vld [vmem:[#allocation4 + $0xd8] sm:$0xff]
    %v325 = vld [vmem:[#allocation4 + $0xe0] sm:$0xff]
    %v326 = vld [vmem:[#allocation4 + $0xe8] sm:$0xff]
    %v327 = vld [vmem:[#allocation4 + $0xf0] sm:$0xff]
    %v328 = vld [vmem:[#allocation4 + $0xf8] sm:$0xff]
    %329 = vmatprep.subr.mxu0 %v298
    %330 = vmatpush1.msra.mxu0 %v297
    %331 = vmatprep.subr.mxu0 %v300
    %332 = vmatpush1.msra.mxu0 %v299
    %333 = vmatprep.subr.mxu0 %v302
    %334 = vmatpush1.msra.mxu0 %v301
    %335 = vmatprep.subr.mxu0 %v304
    %336 = vmatpush1.msra.mxu0 %v303
    %337 = vmatprep.subr.mxu0 %v306
    %338 = vmatpush1.msra.mxu0 %v305
    %339 = vmatprep.subr.mxu0 %v308
    %340 = vmatpush1.msra.mxu0 %v307
    %341 = vmatprep.subr.mxu0 %v310
    %342 = vmatpush1.msra.mxu0 %v309
    %343 = vmatprep.subr.mxu0 %v312
    %344 = vmatpush1.msra.mxu0 %v311
    %345 = vmatprep.subr.mxu0 %v314
    %346 = vmatpush1.msra.mxu0 %v313
    %347 = vmatprep.subr.mxu0 %v316
    %348 = vmatpush1.msra.mxu0 %v315
    %349 = vmatprep.subr.mxu0 %v318
    %350 = vmatpush1.msra.mxu0 %v317
    %351 = vmatprep.subr.mxu0 %v320
    %352 = vmatpush1.msra.mxu0 %v319
    %353 = vmatprep.subr.mxu0 %v322
    %354 = vmatpush1.msra.mxu0 %v321
    %355 = vmatprep.subr.mxu0 %v324
    %356 = vmatpush1.msra.mxu0 %v323
    %357 = vmatprep.subr.mxu0 %v326
    %358 = vmatpush1.msra.mxu0 %v325
    %359 = vmatprep.subr.mxu0 %v328
    %360 = vmatpush1.msra.mxu0 %v327
    %361 = vmatprep.subr.mxu0 0.0
    %362 = vmatpush1.msra.mxu0 0.0
    %363 = vmatprep.subr.mxu0 0.0
    %364 = vmatpush1.msra.mxu0 0.0
    %365 = vmatprep.subr.mxu0 0.0
    %366 = vmatpush1.msra.mxu0 0.0
    %367 = vmatprep.subr.mxu0 0.0
    %368 = vmatpush1.msra.mxu0 0.0
    %369 = vmatprep.subr.mxu0 0.0
    %370 = vmatpush1.msra.mxu0 0.0
    %371 = vmatprep.subr.mxu0 0.0
    %372 = vmatpush1.msra.mxu0 0.0
    %373 = vmatprep.subr.mxu0 0.0
    %374 = vmatpush1.msra.mxu0 0.0
    %375 = vmatprep.subr.mxu0 0.0
    %376 = vmatpush1.msra.mxu0 0.0
    %377 = vmatprep.subr.mxu0 0.0
    %378 = vmatpush1.msra.mxu0 0.0
    %379 = vmatprep.subr.mxu0 0.0
    %380 = vmatpush1.msra.mxu0 0.0
    %381 = vmatprep.subr.mxu0 0.0
    %382 = vmatpush1.msra.mxu0 0.0
    %383 = vmatprep.subr.mxu0 0.0
    %384 = vmatpush1.msra.mxu0 0.0
    %385 = vmatprep.subr.mxu0 0.0
    %386 = vmatpush1.msra.mxu0 0.0
    %387 = vmatprep.subr.mxu0 0.0
    %388 = vmatpush1.msra.mxu0 0.0
    %389 = vmatprep.subr.mxu0 0.0
    %390 = vmatpush1.msra.mxu0 0.0
    %391 = vmatprep.subr.mxu0 0.0
    %392 = vmatpush1.msra.mxu0 0.0
    %393 = vmatprep.mubr.f32.mxu0 0.0
    %394 = vmatmul.mubr.f32.gmra.mrb[0].mxu0 %v296
    %v395 = vpop.f32.mrb[0].mxu0
    %v396 = vadd.f32 0.0, %v395
    %v397 = vpop.f32.mrb[0].mxu0
    %v398 = vadd.f32 0.0, %v397
    %399 = vdwg.mxu0
    %v400 = vld [vmem:[%s7] sm:$0x1]
    %v401 = vld [vmem:[%s8] sm:$0x1]
    %v402 = vld [vmem:[#allocation6] sm:$0xff]
    %v403 = vld [vmem:[#allocation6 + $0x8] sm:$0xff]
    %v404 = vld [vmem:[#allocation6 + $0x10] sm:$0xff]
    %v405 = vld [vmem:[#allocation6 + $0x18] sm:$0xff]
    %v406 = vld [vmem:[#allocation6 + $0x20] sm:$0xff]
    %v407 = vld [vmem:[#allocation6 + $0x28] sm:$0xff]
    %v408 = vld [vmem:[#allocation6 + $0x30] sm:$0xff]
    %v409 = vld [vmem:[#allocation6 + $0x38] sm:$0xff]
    %v410 = vld [vmem:[#allocation6 + $0x40] sm:$0xff]
    %v411 = vld [vmem:[#allocation6 + $0x48] sm:$0xff]
    %v412 = vld [vmem:[#allocation6 + $0x50] sm:$0xff]
    %v413 = vld [vmem:[#allocation6 + $0x58] sm:$0xff]
    %v414 = vld [vmem:[#allocation6 + $0x60] sm:$0xff]
    %v415 = vld [vmem:[#allocation6 + $0x68] sm:$0xff]
    %v416 = vld [vmem:[#allocation6 + $0x70] sm:$0xff]
    %v417 = vld [vmem:[#allocation6 + $0x78] sm:$0xff]
    %v418 = vld [vmem:[#allocation6 + $0x80] sm:$0xff]
    %v419 = vld [vmem:[#allocation6 + $0x88] sm:$0xff]
    %v420 = vld [vmem:[#allocation6 + $0x90] sm:$0xff]
    %v421 = vld [vmem:[#allocation6 + $0x98] sm:$0xff]
    %v422 = vld [vmem:[#allocation6 + $0xa0] sm:$0xff]
    %v423 = vld [vmem:[#allocation6 + $0xa8] sm:$0xff]
    %v424 = vld [vmem:[#allocation6 + $0xb0] sm:$0xff]
    %v425 = vld [vmem:[#allocation6 + $0xb8] sm:$0xff]
    %v426 = vld [vmem:[#allocation6 + $0xc0] sm:$0xff]
    %v427 = vld [vmem:[#allocation6 + $0xc8] sm:$0xff]
    %v428 = vld [vmem:[#allocation6 + $0xd0] sm:$0xff]
    %v429 = vld [vmem:[#allocation6 + $0xd8] sm:$0xff]
    %v430 = vld [vmem:[#allocation6 + $0xe0] sm:$0xff]
    %v431 = vld [vmem:[#allocation6 + $0xe8] sm:$0xff]
    %v432 = vld [vmem:[#allocation6 + $0xf0] sm:$0xff]
    %v433 = vld [vmem:[#allocation6 + $0xf8] sm:$0xff]
    %v434 = vld [vmem:[%s6] sm:$0xff]
    %v435 = vld [vmem:[%s6 + $0x8] sm:$0xff]
    %v436 = vld [vmem:[%s6 + $0x10] sm:$0xff]
    %v437 = vld [vmem:[%s6 + $0x18] sm:$0xff]
    %v438 = vrot.slane %v396, 4
    %v439 = vadd.f32 %v396, %v438
    %v440 = vrot.slane %v439, 2
    %v441 = vadd.f32 %v439, %v440
    %v442 = vrot.slane %v441, 1
    %v443 = vadd.f32 %v441, %v442
    %v444 = vrot.slane %v398, 4
    %v445 = vadd.f32 %v398, %v444
    %v446 = vrot.slane %v445, 2
    %v447 = vadd.f32 %v445, %v446
    %v448 = vrot.slane %v447, 1
    %v449 = vadd.f32 %v447, %v448
    %v450 = vmul.f32 %v396, %v396
    %v451 = vmul.f32 %v398, %v398
    %v452 = vrot.slane %v450, 4
    %v453 = vadd.f32 %v450, %v452
    %v454 = vrot.slane %v453, 2
    %v455 = vadd.f32 %v453, %v454
    %v456 = vrot.slane %v455, 1
    %v457 = vadd.f32 %v455, %v456
    %v458 = vrot.slane %v451, 4
    %v459 = vadd.f32 %v451, %v458
    %v460 = vrot.slane %v459, 2
    %v461 = vadd.f32 %v459, %v460
    %v462 = vrot.slane %v461, 1
    %v463 = vadd.f32 %v461, %v462
    %464 = vmatprep.subr.mxu0 0.0
    %465 = vmatpush1.msra.mxu0 %v402
    %466 = vmatprep.subr.mxu0 0.0
    %467 = vmatpush1.msra.mxu0 %v403
    %468 = vmatprep.subr.mxu0 0.0
    %469 = vmatpush1.msra.mxu0 %v404
    %470 = vmatprep.subr.mxu0 0.0
    %471 = vmatpush1.msra.mxu0 %v405
    %472 = vmatprep.subr.mxu0 0.0
    %473 = vmatpush1.msra.mxu0 %v406
    %474 = vmatprep.subr.mxu0 0.0
    %475 = vmatpush1.msra.mxu0 %v407
    %476 = vmatprep.subr.mxu0 0.0
    %477 = vmatpush1.msra.mxu0 %v408
    %478 = vmatprep.subr.mxu0 0.0
    %479 = vmatpush1.msra.mxu0 %v409
    %480 = vmatprep.subr.mxu0 0.0
    %481 = vmatpush1.msra.mxu0 %v410
    %482 = vmatprep.subr.mxu0 0.0
    %483 = vmatpush1.msra.mxu0 %v411
    %484 = vmatprep.subr.mxu0 0.0
    %485 = vmatpush1.msra.mxu0 %v412
    %486 = vmatprep.subr.mxu0 0.0
    %487 = vmatpush1.msra.mxu0 %v413
    %488 = vmatprep.subr.mxu0 0.0
    %489 = vmatpush1.msra.mxu0 %v414
    %490 = vmatprep.subr.mxu0 0.0
    %491 = vmatpush1.msra.mxu0 %v415
    %492 = vmatprep.subr.mxu0 0.0
    %493 = vmatpush1.msra.mxu0 %v416
    %494 = vmatprep.subr.mxu0 0.0
    %495 = vmatpush1.msra.mxu0 %v417
    %496 = vmatprep.subr.mxu0 0.0
    %497 = vmatpush1.msra.mxu0 %v418
    %498 = vmatprep.subr.mxu0 0.0
    %499 = vmatpush1.msra.mxu0 %v419
    %500 = vmatprep.subr.mxu0 0.0
    %501 = vmatpush1.msra.mxu0 %v420
    %502 = vmatprep.subr.mxu0 0.0
    %503 = vmatpush1.msra.mxu0 %v421
    %504 = vmatprep.subr.mxu0 0.0
    %505 = vmatpush1.msra.mxu0 %v422
    %506 = vmatprep.subr.mxu0 0.0
    %507 = vmatpush1.msra.mxu0 %v423
    %508 = vmatprep.subr.mxu0 0.0
    %509 = vmatpush1.msra.mxu0 %v424
    %510 = vmatprep.subr.mxu0 0.0
    %511 = vmatpush1.msra.mxu0 %v425
    %512 = vmatprep.subr.mxu0 0.0
    %513 = vmatpush1.msra.mxu0 %v426
    %514 = vmatprep.subr.mxu0 0.0
    %515 = vmatpush1.msra.mxu0 %v427
    %516 = vmatprep.subr.mxu0 0.0
    %517 = vmatpush1.msra.mxu0 %v428
    %518 = vmatprep.subr.mxu0 0.0
    %519 = vmatpush1.msra.mxu0 %v429
    %520 = vmatprep.subr.mxu0 0.0
    %521 = vmatpush1.msra.mxu0 %v430
    %522 = vmatprep.subr.mxu0 0.0
    %523 = vmatpush1.msra.mxu0 %v431
    %524 = vmatprep.subr.mxu0 0.0
    %525 = vmatpush1.msra.mxu0 %v432
    %526 = vmatprep.subr.mxu0 0.0
    %527 = vmatpush1.msra.mxu0 %v433
    %528 = vmatprep.mubr.f32.mxu0 %v449
    %529 = vmatmul.mubr.f32.gmra.mrb[0].mxu0 %v443
    %v530 = vpop.f32.mrb[0].mxu0
    %v531 = vadd.f32 0.0, %v530
    %v532 = vpop.f32.mrb[0].mxu0
    %533 = vdwg.mxu0
    %534 = vmatprep.subr.mxu0 0.0
    %535 = vmatpush1.msra.mxu0 %v402
    %536 = vmatprep.subr.mxu0 0.0
    %537 = vmatpush1.msra.mxu0 %v403
    %538 = vmatprep.subr.mxu0 0.0
    %539 = vmatpush1.msra.mxu0 %v404
    %540 = vmatprep.subr.mxu0 0.0
    %541 = vmatpush1.msra.mxu0 %v405
    %542 = vmatprep.subr.mxu0 0.0
    %543 = vmatpush1.msra.mxu0 %v406
    %544 = vmatprep.subr.mxu0 0.0
    %545 = vmatpush1.msra.mxu0 %v407
    %546 = vmatprep.subr.mxu0 0.0
    %547 = vmatpush1.msra.mxu0 %v408
    %548 = vmatprep.subr.mxu0 0.0
    %549 = vmatpush1.msra.mxu0 %v409
    %550 = vmatprep.subr.mxu0 0.0
    %551 = vmatpush1.msra.mxu0 %v410
    %552 = vmatprep.subr.mxu0 0.0
    %553 = vmatpush1.msra.mxu0 %v411
    %554 = vmatprep.subr.mxu0 0.0
    %555 = vmatpush1.msra.mxu0 %v412
    %556 = vmatprep.subr.mxu0 0.0
    %557 = vmatpush1.msra.mxu0 %v413
    %558 = vmatprep.subr.mxu0 0.0
    %559 = vmatpush1.msra.mxu0 %v414
    %560 = vmatprep.subr.mxu0 0.0
    %561 = vmatpush1.msra.mxu0 %v415
    %562 = vmatprep.subr.mxu0 0.0
    %563 = vmatpush1.msra.mxu0 %v416
    %564 = vmatprep.subr.mxu0 0.0
    %565 = vmatpush1.msra.mxu0 %v417
    %566 = vmatprep.subr.mxu0 0.0
    %567 = vmatpush1.msra.mxu0 %v418
    %568 = vmatprep.subr.mxu0 0.0
    %569 = vmatpush1.msra.mxu0 %v419
    %570 = vmatprep.subr.mxu0 0.0
    %571 = vmatpush1.msra.mxu0 %v420
    %572 = vmatprep.subr.mxu0 0.0
    %573 = vmatpush1.msra.mxu0 %v421
    %574 = vmatprep.subr.mxu0 0.0
    %575 = vmatpush1.msra.mxu0 %v422
    %576 = vmatprep.subr.mxu0 0.0
    %577 = vmatpush1.msra.mxu0 %v423
    %578 = vmatprep.subr.mxu0 0.0
    %579 = vmatpush1.msra.mxu0 %v424
    %580 = vmatprep.subr.mxu0 0.0
    %581 = vmatpush1.msra.mxu0 %v425
    %582 = vmatprep.subr.mxu0 0.0
    %583 = vmatpush1.msra.mxu0 %v426
    %584 = vmatprep.subr.mxu0 0.0
    %585 = vmatpush1.msra.mxu0 %v427
    %586 = vmatprep.subr.mxu0 0.0
    %587 = vmatpush1.msra.mxu0 %v428
    %588 = vmatprep.subr.mxu0 0.0
    %589 = vmatpush1.msra.mxu0 %v429
    %590 = vmatprep.subr.mxu0 0.0
    %591 = vmatpush1.msra.mxu0 %v430
    %592 = vmatprep.subr.mxu0 0.0
    %593 = vmatpush1.msra.mxu0 %v431
    %594 = vmatprep.subr.mxu0 0.0
    %595 = vmatpush1.msra.mxu0 %v432
    %596 = vmatprep.subr.mxu0 0.0
    %597 = vmatpush1.msra.mxu0 %v433
    %598 = vmatprep.mubr.f32.mxu0 %v463
    %599 = vmatmul.mubr.f32.gmra.mrb[0].mxu0 %v457
    %v600 = vpop.f32.mrb[0].mxu0
    %v601 = vadd.f32 0.0, %v600
    %v602 = vpop.f32.mrb[0].mxu0
    %603 = vdwg.mxu0
    %v604 = vmul.f32 %v531, 0.0078125
    %v605 = vmul.f32 %v601, 0.0078125
    %v606 = vmul.f32 %v604, %v604
    %v607 = vsub.f32 %v605, %v606
    %v608 = vmax.f32 %v607, 0.0
    %v609 = vadd.f32 %v608, 1e-05
    %v610 = vrsqrt.pop %v609
    %v611 = vmul.f32 %v400, %v610
    %v612 = vmul.f32 %v604, %v611
    %v613 = vsub.f32 %v401, %v612
    %vm614 = vcmask 130048
    %v616 = vsel %vm614, %v611, 0
    %618 = vmatprep.subr.mxu0 %v435
    %619 = vmatpush1.msra.mxu0 %v434
    %620 = vmatprep.subr.mxu0 %v437
    %621 = vmatpush1.msra.mxu0 %v436
    %622 = vmatprep.subr.mxu0 0.0
    %623 = vmatpush1.msra.mxu0 0.0
    %624 = vmatprep.subr.mxu0 0.0
    %625 = vmatpush1.msra.mxu0 0.0
    %626 = vmatprep.subr.mxu0 0.0
    %627 = vmatpush1.msra.mxu0 0.0
    %628 = vmatprep.subr.mxu0 0.0
    %629 = vmatpush1.msra.mxu0 0.0
    %630 = vmatprep.subr.mxu0 0.0
    %631 = vmatpush1.msra.mxu0 0.0
    %632 = vmatprep.subr.mxu0 0.0
    %633 = vmatpush1.msra.mxu0 0.0
    %634 = vmatprep.subr.mxu0 0.0
    %635 = vmatpush1.msra.mxu0 0.0
    %636 = vmatprep.subr.mxu0 0.0
    %637 = vmatpush1.msra.mxu0 0.0
    %638 = vmatprep.subr.mxu0 0.0
    %639 = vmatpush1.msra.mxu0 0.0
    %640 = vmatprep.subr.mxu0 0.0
    %641 = vmatpush1.msra.mxu0 0.0
    %642 = vmatprep.subr.mxu0 0.0
    %643 = vmatpush1.msra.mxu0 0.0
    %644 = vmatprep.subr.mxu0 0.0
    %645 = vmatpush1.msra.mxu0 0.0
    %646 = vmatprep.subr.mxu0 0.0
    %647 = vmatpush1.msra.mxu0 0.0
    %648 = vmatprep.subr.mxu0 0.0
    %649 = vmatpush1.msra.mxu0 0.0
    %650 = vmatprep.subr.mxu0 0.0
    %651 = vmatpush1.msra.mxu0 0.0
    %652 = vmatprep.subr.mxu0 0.0
    %653 = vmatpush1.msra.mxu0 0.0
    %654 = vmatprep.subr.mxu0 0.0
    %655 = vmatpush1.msra.mxu0 0.0
    %656 = vmatprep.subr.mxu0 0.0
    %657 = vmatpush1.msra.mxu0 0.0
    %658 = vmatprep.subr.mxu0 0.0
    %659 = vmatpush1.msra.mxu0 0.0
    %660 = vmatprep.subr.mxu0 0.0
    %661 = vmatpush1.msra.mxu0 0.0
    %662 = vmatprep.subr.mxu0 0.0
    %663 = vmatpush1.msra.mxu0 0.0
    %664 = vmatprep.subr.mxu0 0.0
    %665 = vmatpush1.msra.mxu0 0.0
    %666 = vmatprep.subr.mxu0 0.0
    %667 = vmatpush1.msra.mxu0 0.0
    %668 = vmatprep.subr.mxu0 0.0
    %669 = vmatpush1.msra.mxu0 0.0
    %670 = vmatprep.subr.mxu0 0.0
    %671 = vmatpush1.msra.mxu0 0.0
    %672 = vmatprep.subr.mxu0 0.0
    %673 = vmatpush1.msra.mxu0 0.0
    %674 = vmatprep.subr.mxu0 0.0
    %675 = vmatpush1.msra.mxu0 0.0
    %676 = vmatprep.subr.mxu0 0.0
    %677 = vmatpush1.msra.mxu0 0.0
    %678 = vmatprep.subr.mxu0 0.0
    %679 = vmatpush1.msra.mxu0 0.0
    %680 = vmatprep.subr.mxu0 0.0
    %681 = vmatpush1.msra.mxu0 0.0
    %682 = vmatprep.mubr.f32.mxu0 0.0
    %683 = vmatmul.mubr.f32.gmra.mrb[0].mxu0 %v616
    %v684 = vpop.f32.mrb[0].mxu0
    %v685 = vadd.f32 0.0, %v684
    %v686 = vpop.f32.mrb[0].mxu0
    %v687 = vadd.f32 0.0, %v686
    %688 = vdwg.mxu0
    %v690 = vsel %vm614, %v613, 0
    %692 = vmatprep.subr.mxu0 %v435
    %693 = vmatpush1.msra.mxu0 %v434
    %694 = vmatprep.subr.mxu0 %v437
    %695 = vmatpush1.msra.mxu0 %v436
    %696 = vmatprep.subr.mxu0 0.0
    %697 = vmatpush1.msra.mxu0 0.0
    %698 = vmatprep.subr.mxu0 0.0
    %699 = vmatpush1.msra.mxu0 0.0
    %700 = vmatprep.subr.mxu0 0.0
    %701 = vmatpush1.msra.mxu0 0.0
    %702 = vmatprep.subr.mxu0 0.0
    %703 = vmatpush1.msra.mxu0 0.0
    %704 = vmatprep.subr.mxu0 0.0
    %705 = vmatpush1.msra.mxu0 0.0
    %706 = vmatprep.subr.mxu0 0.0
    %707 = vmatpush1.msra.mxu0 0.0
    %708 = vmatprep.subr.mxu0 0.0
    %709 = vmatpush1.msra.mxu0 0.0
    %710 = vmatprep.subr.mxu0 0.0
    %711 = vmatpush1.msra.mxu0 0.0
    %712 = vmatprep.subr.mxu0 0.0
    %713 = vmatpush1.msra.mxu0 0.0
    %714 = vmatprep.subr.mxu0 0.0
    %715 = vmatpush1.msra.mxu0 0.0
    %716 = vmatprep.subr.mxu0 0.0
    %717 = vmatpush1.msra.mxu0 0.0
    %718 = vmatprep.subr.mxu0 0.0
    %719 = vmatpush1.msra.mxu0 0.0
    %720 = vmatprep.subr.mxu0 0.0
    %721 = vmatpush1.msra.mxu0 0.0
    %722 = vmatprep.subr.mxu0 0.0
    %723 = vmatpush1.msra.mxu0 0.0
    %724 = vmatprep.subr.mxu0 0.0
    %725 = vmatpush1.msra.mxu0 0.0
    %726 = vmatprep.subr.mxu0 0.0
    %727 = vmatpush1.msra.mxu0 0.0
    %728 = vmatprep.subr.mxu0 0.0
    %729 = vmatpush1.msra.mxu0 0.0
    %730 = vmatprep.subr.mxu0 0.0
    %731 = vmatpush1.msra.mxu0 0.0
    %732 = vmatprep.subr.mxu0 0.0
    %733 = vmatpush1.msra.mxu0 0.0
    %734 = vmatprep.subr.mxu0 0.0
    %735 = vmatpush1.msra.mxu0 0.0
    %736 = vmatprep.subr.mxu0 0.0
    %737 = vmatpush1.msra.mxu0 0.0
    %738 = vmatprep.subr.mxu0 0.0
    %739 = vmatpush1.msra.mxu0 0.0
    %740 = vmatprep.subr.mxu0 0.0
    %741 = vmatpush1.msra.mxu0 0.0
    %742 = vmatprep.subr.mxu0 0.0
    %743 = vmatpush1.msra.mxu0 0.0
    %744 = vmatprep.subr.mxu0 0.0
    %745 = vmatpush1.msra.mxu0 0.0
    %746 = vmatprep.subr.mxu0 0.0
    %747 = vmatpush1.msra.mxu0 0.0
    %748 = vmatprep.subr.mxu0 0.0
    %749 = vmatpush1.msra.mxu0 0.0
    %750 = vmatprep.subr.mxu0 0.0
    %751 = vmatpush1.msra.mxu0 0.0
    %752 = vmatprep.subr.mxu0 0.0
    %753 = vmatpush1.msra.mxu0 0.0
    %754 = vmatprep.subr.mxu0 0.0
    %755 = vmatpush1.msra.mxu0 0.0
    %756 = vmatprep.mubr.f32.mxu0 0.0
    %757 = vmatmul.mubr.f32.gmra.mrb[0].mxu0 %v690
    %v758 = vpop.f32.mrb[0].mxu0
    %v759 = vadd.f32 0.0, %v758
    %v760 = vpop.f32.mrb[0].mxu0
    %v761 = vadd.f32 0.0, %v760
    %762 = vdwg.mxu0
    %v763 = vlaneseq
    %v764 = vshrl.u32 %v763, 7
    %v765 = vsub.s32 0, %v764
    %v766 = vrot.slane %v685, %v765
    %v767 = vlaneseq
    %v768 = vshrl.u32 %v767, 7
    %v769 = vsub.s32 0, %v768
    %v770 = vrot.slane %v687, %v769
    %v771 = vmul.f32 %v396, %v766
    %v772 = vmul.f32 %v398, %v770
    %v773 = vlaneseq
    %v774 = vshrl.u32 %v773, 7
    %v775 = vsub.s32 0, %v774
    %v776 = vrot.slane %v759, %v775
    %v777 = vlaneseq
    %v778 = vshrl.u32 %v777, 7
    %v779 = vsub.s32 0, %v778
    %v780 = vrot.slane %v761, %v779
    %v781 = vadd.f32 %v771, %v776
    %v782 = vadd.f32 %v772, %v780
    %vm783 = vcmp.ge.f32.partialorder %v781, 0.0
    %vm784 = vcmp.ge.f32.partialorder %v782, 0.0
    %v785 = vmul.f32 %v781, 0.2
    %v786 = vmul.f32 %v782, 0.2
    %v787 = vsel %vm783, %v781, %v785
    %v788 = vsel %vm784, %v782, %v786
    %v789 = vld [vmem:[#allocation8] sm:$0xff]
    %v790 = vld [vmem:[#allocation8 + $0x8] sm:$0xff]
    %v791 = vld [vmem:[#allocation8 + $0x10] sm:$0xff]
    %v792 = vld [vmem:[#allocation8 + $0x18] sm:$0xff]
    %v793 = vld [vmem:[#allocation8 + $0x20] sm:$0xff]
    %v794 = vld [vmem:[#allocation8 + $0x28] sm:$0xff]
    %v795 = vld [vmem:[#allocation8 + $0x30] sm:$0xff]
    %v796 = vld [vmem:[#allocation8 + $0x38] sm:$0xff]
    %v797 = vld [vmem:[#allocation8 + $0x40] sm:$0xff]
    %v798 = vld [vmem:[#allocation8 + $0x48] sm:$0xff]
    %v799 = vld [vmem:[#allocation8 + $0x50] sm:$0xff]
    %v800 = vld [vmem:[#allocation8 + $0x58] sm:$0xff]
    %v801 = vld [vmem:[#allocation8 + $0x60] sm:$0xff]
    %v802 = vld [vmem:[#allocation8 + $0x68] sm:$0xff]
    %v803 = vld [vmem:[#allocation8 + $0x70] sm:$0xff]
    %v804 = vld [vmem:[#allocation8 + $0x78] sm:$0xff]
    %v805 = vld [vmem:[#allocation8 + $0x80] sm:$0xff]
    %v806 = vld [vmem:[#allocation8 + $0x88] sm:$0xff]
    %v807 = vld [vmem:[#allocation8 + $0x90] sm:$0xff]
    %v808 = vld [vmem:[#allocation8 + $0x98] sm:$0xff]
    %v809 = vld [vmem:[#allocation8 + $0xa0] sm:$0xff]
    %v810 = vld [vmem:[#allocation8 + $0xa8] sm:$0xff]
    %v811 = vld [vmem:[#allocation8 + $0xb0] sm:$0xff]
    %v812 = vld [vmem:[#allocation8 + $0xb8] sm:$0xff]
    %v813 = vld [vmem:[#allocation8 + $0xc0] sm:$0xff]
    %v814 = vld [vmem:[#allocation8 + $0xc8] sm:$0xff]
    %v815 = vld [vmem:[#allocation8 + $0xd0] sm:$0xff]
    %v816 = vld [vmem:[#allocation8 + $0xd8] sm:$0xff]
    %v817 = vld [vmem:[#allocation8 + $0xe0] sm:$0xff]
    %v818 = vld [vmem:[#allocation8 + $0xe8] sm:$0xff]
    %v819 = vld [vmem:[#allocation8 + $0xf0] sm:$0xff]
    %v820 = vld [vmem:[#allocation8 + $0xf8] sm:$0xff]
    %v821 = vld [vmem:[#allocation8 + $0x100] sm:$0xff]
    %v822 = vld [vmem:[#allocation8 + $0x108] sm:$0xff]
    %v823 = vld [vmem:[#allocation8 + $0x110] sm:$0xff]
    %v824 = vld [vmem:[#allocation8 + $0x118] sm:$0xff]
    %v825 = vld [vmem:[#allocation8 + $0x120] sm:$0xff]
    %v826 = vld [vmem:[#allocation8 + $0x128] sm:$0xff]
    %v827 = vld [vmem:[#allocation8 + $0x130] sm:$0xff]
    %v828 = vld [vmem:[#allocation8 + $0x138] sm:$0xff]
    %v829 = vld [vmem:[#allocation8 + $0x140] sm:$0xff]
    %v830 = vld [vmem:[#allocation8 + $0x148] sm:$0xff]
    %v831 = vld [vmem:[#allocation8 + $0x150] sm:$0xff]
    %v832 = vld [vmem:[#allocation8 + $0x158] sm:$0xff]
    %v833 = vld [vmem:[#allocation8 + $0x160] sm:$0xff]
    %v834 = vld [vmem:[#allocation8 + $0x168] sm:$0xff]
    %v835 = vld [vmem:[#allocation8 + $0x170] sm:$0xff]
    %v836 = vld [vmem:[#allocation8 + $0x178] sm:$0xff]
    %v837 = vld [vmem:[#allocation8 + $0x180] sm:$0xff]
    %v838 = vld [vmem:[#allocation8 + $0x188] sm:$0xff]
    %v839 = vld [vmem:[#allocation8 + $0x190] sm:$0xff]
    %v840 = vld [vmem:[#allocation8 + $0x198] sm:$0xff]
    %v841 = vld [vmem:[#allocation8 + $0x1a0] sm:$0xff]
    %v842 = vld [vmem:[#allocation8 + $0x1a8] sm:$0xff]
    %v843 = vld [vmem:[#allocation8 + $0x1b0] sm:$0xff]
    %v844 = vld [vmem:[#allocation8 + $0x1b8] sm:$0xff]
    %v845 = vld [vmem:[#allocation8 + $0x1c0] sm:$0xff]
    %v846 = vld [vmem:[#allocation8 + $0x1c8] sm:$0xff]
    %v847 = vld [vmem:[#allocation8 + $0x1d0] sm:$0xff]
    %v848 = vld [vmem:[#allocation8 + $0x1d8] sm:$0xff]
    %v849 = vld [vmem:[#allocation8 + $0x1e0] sm:$0xff]
    %v850 = vld [vmem:[#allocation8 + $0x1e8] sm:$0xff]
    %v851 = vld [vmem:[#allocation8 + $0x1f0] sm:$0xff]
    %v852 = vld [vmem:[#allocation8 + $0x1f8] sm:$0xff]
    %v853 = vld [vmem:[#allocation8 + $0x200] sm:$0xff]
    %v854 = vld [vmem:[#allocation8 + $0x208] sm:$0xff]
    %v855 = vld [vmem:[#allocation8 + $0x210] sm:$0xff]
    %v856 = vld [vmem:[#allocation8 + $0x218] sm:$0xff]
    %v857 = vld [vmem:[#allocation8 + $0x220] sm:$0xff]
    %v858 = vld [vmem:[#allocation8 + $0x228] sm:$0xff]
    %v859 = vld [vmem:[#allocation8 + $0x230] sm:$0xff]
    %v860 = vld [vmem:[#allocation8 + $0x238] sm:$0xff]
    %v861 = vld [vmem:[#allocation8 + $0x240] sm:$0xff]
    %v862 = vld [vmem:[#allocation8 + $0x248] sm:$0xff]
    %v863 = vld [vmem:[#allocation8 + $0x250] sm:$0xff]
    %v864 = vld [vmem:[#allocation8 + $0x258] sm:$0xff]
    %v865 = vld [vmem:[#allocation8 + $0x260] sm:$0xff]
    %v866 = vld [vmem:[#allocation8 + $0x268] sm:$0xff]
    %v867 = vld [vmem:[#allocation8 + $0x270] sm:$0xff]
    %v868 = vld [vmem:[#allocation8 + $0x278] sm:$0xff]
    %v869 = vld [vmem:[#allocation8 + $0x280] sm:$0xff]
    %v870 = vld [vmem:[#allocation8 + $0x288] sm:$0xff]
    %v871 = vld [vmem:[#allocation8 + $0x290] sm:$0xff]
    %v872 = vld [vmem:[#allocation8 + $0x298] sm:$0xff]
    %v873 = vld [vmem:[#allocation8 + $0x2a0] sm:$0xff]
    %v874 = vld [vmem:[#allocation8 + $0x2a8] sm:$0xff]
    %v875 = vld [vmem:[#allocation8 + $0x2b0] sm:$0xff]
    %v876 = vld [vmem:[#allocation8 + $0x2b8] sm:$0xff]
    %v877 = vld [vmem:[#allocation8 + $0x2c0] sm:$0xff]
    %v878 = vld [vmem:[#allocation8 + $0x2c8] sm:$0xff]
    %v879 = vld [vmem:[#allocation8 + $0x2d0] sm:$0xff]
    %v880 = vld [vmem:[#allocation8 + $0x2d8] sm:$0xff]
    %v881 = vld [vmem:[#allocation8 + $0x2e0] sm:$0xff]
    %v882 = vld [vmem:[#allocation8 + $0x2e8] sm:$0xff]
    %v883 = vld [vmem:[#allocation8 + $0x2f0] sm:$0xff]
    %v884 = vld [vmem:[#allocation8 + $0x2f8] sm:$0xff]
    %885 = vmatprep.subr.mxu0 %v790
    %886 = vmatpush1.msra.mxu0 %v789
    %887 = vmatprep.subr.mxu0 %v793
    %888 = vmatpush1.msra.mxu0 %v792
    %889 = vmatprep.subr.mxu0 %v796
    %890 = vmatpush1.msra.mxu0 %v795
    %891 = vmatprep.subr.mxu0 %v799
    %892 = vmatpush1.msra.mxu0 %v798
    %893 = vmatprep.subr.mxu0 %v802
    %894 = vmatpush1.msra.mxu0 %v801
    %895 = vmatprep.subr.mxu0 %v805
    %896 = vmatpush1.msra.mxu0 %v804
    %897 = vmatprep.subr.mxu0 %v808
    %898 = vmatpush1.msra.mxu0 %v807
    %899 = vmatprep.subr.mxu0 %v811
    %900 = vmatpush1.msra.mxu0 %v810
    %901 = vmatprep.subr.mxu0 %v814
    %902 = vmatpush1.msra.mxu0 %v813
    %903 = vmatprep.subr.mxu0 %v817
    %904 = vmatpush1.msra.mxu0 %v816
    %905 = vmatprep.subr.mxu0 %v820
    %906 = vmatpush1.msra.mxu0 %v819
    %907 = vmatprep.subr.mxu0 %v823
    %908 = vmatpush1.msra.mxu0 %v822
    %909 = vmatprep.subr.mxu0 %v826
    %910 = vmatpush1.msra.mxu0 %v825
    %911 = vmatprep.subr.mxu0 %v829
    %912 = vmatpush1.msra.mxu0 %v828
    %913 = vmatprep.subr.mxu0 %v832
    %914 = vmatpush1.msra.mxu0 %v831
    %915 = vmatprep.subr.mxu0 %v835
    %916 = vmatpush1.msra.mxu0 %v834
    %917 = vmatprep.subr.mxu0 %v838
    %918 = vmatpush1.msra.mxu0 %v837
    %919 = vmatprep.subr.mxu0 %v841
    %920 = vmatpush1.msra.mxu0 %v840
    %921 = vmatprep.subr.mxu0 %v844
    %922 = vmatpush1.msra.mxu0 %v843
    %923 = vmatprep.subr.mxu0 %v847
    %924 = vmatpush1.msra.mxu0 %v846
    %925 = vmatprep.subr.mxu0 %v850
    %926 = vmatpush1.msra.mxu0 %v849
    %927 = vmatprep.subr.mxu0 %v853
    %928 = vmatpush1.msra.mxu0 %v852
    %929 = vmatprep.subr.mxu0 %v856
    %930 = vmatpush1.msra.mxu0 %v855
    %931 = vmatprep.subr.mxu0 %v859
    %932 = vmatpush1.msra.mxu0 %v858
    %933 = vmatprep.subr.mxu0 %v862
    %934 = vmatpush1.msra.mxu0 %v861
    %935 = vmatprep.subr.mxu0 %v865
    %936 = vmatpush1.msra.mxu0 %v864
    %937 = vmatprep.subr.mxu0 %v868
    %938 = vmatpush1.msra.mxu0 %v867
    %939 = vmatprep.subr.mxu0 %v871
    %940 = vmatpush1.msra.mxu0 %v870
    %941 = vmatprep.subr.mxu0 %v874
    %942 = vmatpush1.msra.mxu0 %v873
    %943 = vmatprep.subr.mxu0 %v877
    %944 = vmatpush1.msra.mxu0 %v876
    %945 = vmatprep.subr.mxu0 %v880
    %946 = vmatpush1.msra.mxu0 %v879
    %947 = vmatprep.subr.mxu0 %v883
    %948 = vmatpush1.msra.mxu0 %v882
    %949 = vmatprep.mubr.f32.mxu0 %v788
    %950 = vmatmul.mubr.f32.gmra.mrb[0].mxu0 %v787
    %v951 = vpop.f32.mrb[0].mxu0
    %v952 = vadd.f32 0.0, %v951
    %v953 = vpop.f32.mrb[0].mxu0
    %v954 = vadd.f32 0.0, %v953
    %955 = vdwg.mxu0
    %956 = vmatprep.subr.mxu0 0.0
    %957 = vmatpush1.msra.mxu0 %v791
    %958 = vmatprep.subr.mxu0 0.0
    %959 = vmatpush1.msra.mxu0 %v794
    %960 = vmatprep.subr.mxu0 0.0
    %961 = vmatpush1.msra.mxu0 %v797
    %962 = vmatprep.subr.mxu0 0.0
    %963 = vmatpush1.msra.mxu0 %v800
    %964 = vmatprep.subr.mxu0 0.0
    %965 = vmatpush1.msra.mxu0 %v803
    %966 = vmatprep.subr.mxu0 0.0
    %967 = vmatpush1.msra.mxu0 %v806
    %968 = vmatprep.subr.mxu0 0.0
    %969 = vmatpush1.msra.mxu0 %v809
    %970 = vmatprep.subr.mxu0 0.0
    %971 = vmatpush1.msra.mxu0 %v812
    %972 = vmatprep.subr.mxu0 0.0
    %973 = vmatpush1.msra.mxu0 %v815
    %974 = vmatprep.subr.mxu0 0.0
    %975 = vmatpush1.msra.mxu0 %v818
    %976 = vmatprep.subr.mxu0 0.0
    %977 = vmatpush1.msra.mxu0 %v821
    %978 = vmatprep.subr.mxu0 0.0
    %979 = vmatpush1.msra.mxu0 %v824
    %980 = vmatprep.subr.mxu0 0.0
    %981 = vmatpush1.msra.mxu0 %v827
    %982 = vmatprep.subr.mxu0 0.0
    %983 = vmatpush1.msra.mxu0 %v830
    %984 = vmatprep.subr.mxu0 0.0
    %985 = vmatpush1.msra.mxu0 %v833
    %986 = vmatprep.subr.mxu0 0.0
    %987 = vmatpush1.msra.mxu0 %v836
    %988 = vmatprep.subr.mxu0 0.0
    %989 = vmatpush1.msra.mxu0 %v839
    %990 = vmatprep.subr.mxu0 0.0
    %991 = vmatpush1.msra.mxu0 %v842
    %992 = vmatprep.subr.mxu0 0.0
    %993 = vmatpush1.msra.mxu0 %v845
    %994 = vmatprep.subr.mxu0 0.0
    %995 = vmatpush1.msra.mxu0 %v848
    %996 = vmatprep.subr.mxu0 0.0
    %997 = vmatpush1.msra.mxu0 %v851
    %998 = vmatprep.subr.mxu0 0.0
    %999 = vmatpush1.msra.mxu0 %v854
    %1000 = vmatprep.subr.mxu0 0.0
    %1001 = vmatpush1.msra.mxu0 %v857
    %1002 = vmatprep.subr.mxu0 0.0
    %1003 = vmatpush1.msra.mxu0 %v860
    %1004 = vmatprep.subr.mxu0 0.0
    %1005 = vmatpush1.msra.mxu0 %v863
    %1006 = vmatprep.subr.mxu0 0.0
    %1007 = vmatpush1.msra.mxu0 %v866
    %1008 = vmatprep.subr.mxu0 0.0
    %1009 = vmatpush1.msra.mxu0 %v869
    %1010 = vmatprep.subr.mxu0 0.0
    %1011 = vmatpush1.msra.mxu0 %v872
    %1012 = vmatprep.subr.mxu0 0.0
    %1013 = vmatpush1.msra.mxu0 %v875
    %1014 = vmatprep.subr.mxu0 0.0
    %1015 = vmatpush1.msra.mxu0 %v878
    %1016 = vmatprep.subr.mxu0 0.0
    %1017 = vmatpush1.msra.mxu0 %v881
    %1018 = vmatprep.subr.mxu0 0.0
    %1019 = vmatpush1.msra.mxu0 %v884
    %1020 = vmatprep.mubr.f32.mxu0 %v788
    %1021 = vmatmul.mubr.f32.gmra.mrb[0].mxu0 %v787
    %v1022 = vpop.f32.mrb[0].mxu0
    %v1023 = vadd.f32 0.0, %v1022
    %v1024 = vpop.f32.mrb[0].mxu0
    %1025 = vdwg.mxu0
    %v1026 = vld [vmem:[%s12] sm:$0x1]
    %v1027 = vld [vmem:[%s13] sm:$0x1]
    %v1028 = vld [vmem:[#allocation9] sm:$0xff]
    %v1029 = vld [vmem:[#allocation9 + $0x8] sm:$0xff]
    %v1030 = vld [vmem:[#allocation9 + $0x10] sm:$0xff]
    %v1031 = vld [vmem:[#allocation9 + $0x18] sm:$0xff]
    %v1032 = vld [vmem:[#allocation9 + $0x20] sm:$0xff]
    %v1033 = vld [vmem:[#allocation9 + $0x28] sm:$0xff]
    %v1034 = vld [vmem:[#allocation9 + $0x30] sm:$0xff]
    %v1035 = vld [vmem:[#allocation9 + $0x38] sm:$0xff]
    %v1036 = vld [vmem:[#allocation9 + $0x40] sm:$0xff]
    %v1037 = vld [vmem:[#allocation9 + $0x48] sm:$0xff]
    %v1038 = vld [vmem:[#allocation9 + $0x50] sm:$0xff]
    %v1039 = vld [vmem:[#allocation9 + $0x58] sm:$0xff]
    %v1040 = vld [vmem:[#allocation9 + $0x60] sm:$0xff]
    %v1041 = vld [vmem:[#allocation9 + $0x68] sm:$0xff]
    %v1042 = vld [vmem:[#allocation9 + $0x70] sm:$0xff]
    %v1043 = vld [vmem:[#allocation9 + $0x78] sm:$0xff]
    %v1044 = vld [vmem:[#allocation9 + $0x80] sm:$0xff]
    %v1045 = vld [vmem:[#allocation9 + $0x88] sm:$0xff]
    %v1046 = vld [vmem:[#allocation9 + $0x90] sm:$0xff]
    %v1047 = vld [vmem:[#allocation9 + $0x98] sm:$0xff]
    %v1048 = vld [vmem:[#allocation9 + $0xa0] sm:$0xff]
    %v1049 = vld [vmem:[#allocation9 + $0xa8] sm:$0xff]
    %v1050 = vld [vmem:[#allocation9 + $0xb0] sm:$0xff]
    %v1051 = vld [vmem:[#allocation9 + $0xb8] sm:$0xff]
    %v1052 = vld [vmem:[#allocation9 + $0xc0] sm:$0xff]
    %v1053 = vld [vmem:[#allocation9 + $0xc8] sm:$0xff]
    %v1054 = vld [vmem:[#allocation9 + $0xd0] sm:$0xff]
    %v1055 = vld [vmem:[#allocation9 + $0xd8] sm:$0xff]
    %v1056 = vld [vmem:[#allocation9 + $0xe0] sm:$0xff]
    %v1057 = vld [vmem:[#allocation9 + $0xe8] sm:$0xff]
    %v1058 = vld [vmem:[#allocation9 + $0xf0] sm:$0xff]
    %v1059 = vld [vmem:[#allocation9 + $0xf8] sm:$0xff]
    %v1060 = vld [vmem:[#allocation9 + $0x100] sm:$0xff]
    %v1061 = vld [vmem:[#allocation9 + $0x108] sm:$0xff]
    %v1062 = vld [vmem:[#allocation9 + $0x110] sm:$0xff]
    %v1063 = vld [vmem:[#allocation9 + $0x118] sm:$0xff]
    %v1064 = vld [vmem:[%s11] sm:$0xff]
    %v1065 = vld [vmem:[%s11 + $0x8] sm:$0xff]
    %v1066 = vld [vmem:[%s11 + $0x10] sm:$0xff]
    %v1067 = vrot.slane %v952, 4
    %v1068 = vadd.f32 %v952, %v1067
    %v1069 = vrot.slane %v1068, 2
    %v1070 = vadd.f32 %v1068, %v1069
    %v1071 = vrot.slane %v1070, 1
    %v1072 = vadd.f32 %v1070, %v1071
    %v1073 = vrot.slane %v954, 4
    %v1074 = vadd.f32 %v954, %v1073
    %v1075 = vrot.slane %v1074, 2
    %v1076 = vadd.f32 %v1074, %v1075
    %v1077 = vrot.slane %v1076, 1
    %v1078 = vadd.f32 %v1076, %v1077
    %v1079 = vsel %vm181, %v1023, 0.0
    %v1080 = vrot.slane %v1079, 4
    %v1081 = vadd.f32 %v1079, %v1080
    %v1082 = vrot.slane %v1081, 2
    %v1083 = vadd.f32 %v1081, %v1082
    %v1084 = vrot.slane %v1083, 1
    %v1085 = vadd.f32 %v1083, %v1084
    %v1086 = vmul.f32 %v952, %v952
    %v1087 = vmul.f32 %v954, %v954
    %v1088 = vmul.f32 %v1023, %v1023
    %v1089 = vrot.slane %v1086, 4
    %v1090 = vadd.f32 %v1086, %v1089
    %v1091 = vrot.slane %v1090, 2
    %v1092 = vadd.f32 %v1090, %v1091
    %v1093 = vrot.slane %v1092, 1
    %v1094 = vadd.f32 %v1092, %v1093
    %v1095 = vrot.slane %v1087, 4
    %v1096 = vadd.f32 %v1087, %v1095
    %v1097 = vrot.slane %v1096, 2
    %v1098 = vadd.f32 %v1096, %v1097
    %v1099 = vrot.slane %v1098, 1
    %v1100 = vadd.f32 %v1098, %v1099
    %v1101 = vsel %vm181, %v1088, 0.0
    %v1102 = vrot.slane %v1101, 4
    %v1103 = vadd.f32 %v1101, %v1102
    %v1104 = vrot.slane %v1103, 2
    %v1105 = vadd.f32 %v1103, %v1104
    %v1106 = vrot.slane %v1105, 1
    %v1107 = vadd.f32 %v1105, %v1106
    %v1109 = vsel %vm181, %v1085, 0
    %1111 = vmatprep.subr.mxu0 0.0
    %1112 = vmatpush1.msra.mxu0 %v1028
    %1113 = vmatprep.subr.mxu0 0.0
    %1114 = vmatpush1.msra.mxu0 %v1029
    %1115 = vmatprep.subr.mxu0 0.0
    %1116 = vmatpush1.msra.mxu0 %v1030
    %1117 = vmatprep.subr.mxu0 0.0
    %1118 = vmatpush1.msra.mxu0 %v1031
    %1119 = vmatprep.subr.mxu0 0.0
    %1120 = vmatpush1.msra.mxu0 %v1032
    %1121 = vmatprep.subr.mxu0 0.0
    %1122 = vmatpush1.msra.mxu0 %v1033
    %1123 = vmatprep.subr.mxu0 0.0
    %1124 = vmatpush1.msra.mxu0 %v1034
    %1125 = vmatprep.subr.mxu0 0.0
    %1126 = vmatpush1.msra.mxu0 %v1035
    %1127 = vmatprep.subr.mxu0 0.0
    %1128 = vmatpush1.msra.mxu0 %v1036
    %1129 = vmatprep.subr.mxu0 0.0
    %1130 = vmatpush1.msra.mxu0 %v1037
    %1131 = vmatprep.subr.mxu0 0.0
    %1132 = vmatpush1.msra.mxu0 %v1038
    %1133 = vmatprep.subr.mxu0 0.0
    %1134 = vmatpush1.msra.mxu0 %v1039
    %1135 = vmatprep.subr.mxu0 0.0
    %1136 = vmatpush1.msra.mxu0 %v1040
    %1137 = vmatprep.subr.mxu0 0.0
    %1138 = vmatpush1.msra.mxu0 %v1041
    %1139 = vmatprep.subr.mxu0 0.0
    %1140 = vmatpush1.msra.mxu0 %v1042
    %1141 = vmatprep.subr.mxu0 0.0
    %1142 = vmatpush1.msra.mxu0 %v1043
    %1143 = vmatprep.subr.mxu0 0.0
    %1144 = vmatpush1.msra.mxu0 %v1044
    %1145 = vmatprep.subr.mxu0 0.0
    %1146 = vmatpush1.msra.mxu0 %v1045
    %1147 = vmatprep.subr.mxu0 0.0
    %1148 = vmatpush1.msra.mxu0 %v1046
    %1149 = vmatprep.subr.mxu0 0.0
    %1150 = vmatpush1.msra.mxu0 %v1047
    %1151 = vmatprep.subr.mxu0 0.0
    %1152 = vmatpush1.msra.mxu0 %v1048
    %1153 = vmatprep.subr.mxu0 0.0
    %1154 = vmatpush1.msra.mxu0 %v1049
    %1155 = vmatprep.subr.mxu0 0.0
    %1156 = vmatpush1.msra.mxu0 %v1050
    %1157 = vmatprep.subr.mxu0 0.0
    %1158 = vmatpush1.msra.mxu0 %v1051
    %1159 = vmatprep.subr.mxu0 0.0
    %1160 = vmatpush1.msra.mxu0 %v1052
    %1161 = vmatprep.subr.mxu0 0.0
    %1162 = vmatpush1.msra.mxu0 %v1053
    %1163 = vmatprep.subr.mxu0 0.0
    %1164 = vmatpush1.msra.mxu0 %v1054
    %1165 = vmatprep.subr.mxu0 0.0
    %1166 = vmatpush1.msra.mxu0 %v1055
    %1167 = vmatprep.subr.mxu0 0.0
    %1168 = vmatpush1.msra.mxu0 %v1056
    %1169 = vmatprep.subr.mxu0 0.0
    %1170 = vmatpush1.msra.mxu0 %v1057
    %1171 = vmatprep.subr.mxu0 0.0
    %1172 = vmatpush1.msra.mxu0 %v1058
    %1173 = vmatprep.subr.mxu0 0.0
    %1174 = vmatpush1.msra.mxu0 %v1059
    %1175 = vmatprep.mubr.f32.mxu0 %v1078
    %1176 = vmatmul.mubr.f32.gmra.mrb[0].mxu0 %v1072
    %v1177 = vpop.f32.mrb[0].mxu0
    %v1178 = vadd.f32 0.0, %v1177
    %v1179 = vpop.f32.mrb[0].mxu0
    %1180 = vdwg.mxu0
    %1181 = vmatprep.subr.mxu0 0.0
    %1182 = vmatpush1.msra.mxu0 %v1060
    %1183 = vmatprep.subr.mxu0 0.0
    %1184 = vmatpush1.msra.mxu0 %v1061
    %1185 = vmatprep.subr.mxu0 0.0
    %1186 = vmatpush1.msra.mxu0 %v1062
    %1187 = vmatprep.subr.mxu0 0.0
    %1188 = vmatpush1.msra.mxu0 %v1063
    %1189 = vmatprep.subr.mxu0 0.0
    %1190 = vmatpush1.msra.mxu0 0.0
    %1191 = vmatprep.subr.mxu0 0.0
    %1192 = vmatpush1.msra.mxu0 0.0
    %1193 = vmatprep.subr.mxu0 0.0
    %1194 = vmatpush1.msra.mxu0 0.0
    %1195 = vmatprep.subr.mxu0 0.0
    %1196 = vmatpush1.msra.mxu0 0.0
    %1197 = vmatprep.subr.mxu0 0.0
    %1198 = vmatpush1.msra.mxu0 0.0
    %1199 = vmatprep.subr.mxu0 0.0
    %1200 = vmatpush1.msra.mxu0 0.0
    %1201 = vmatprep.subr.mxu0 0.0
    %1202 = vmatpush1.msra.mxu0 0.0
    %1203 = vmatprep.subr.mxu0 0.0
    %1204 = vmatpush1.msra.mxu0 0.0
    %1205 = vmatprep.subr.mxu0 0.0
    %1206 = vmatpush1.msra.mxu0 0.0
    %1207 = vmatprep.subr.mxu0 0.0
    %1208 = vmatpush1.msra.mxu0 0.0
    %1209 = vmatprep.subr.mxu0 0.0
    %1210 = vmatpush1.msra.mxu0 0.0
    %1211 = vmatprep.subr.mxu0 0.0
    %1212 = vmatpush1.msra.mxu0 0.0
    %1213 = vmatprep.subr.mxu0 0.0
    %1214 = vmatpush1.msra.mxu0 0.0
    %1215 = vmatprep.subr.mxu0 0.0
    %1216 = vmatpush1.msra.mxu0 0.0
    %1217 = vmatprep.subr.mxu0 0.0
    %1218 = vmatpush1.msra.mxu0 0.0
    %1219 = vmatprep.subr.mxu0 0.0
    %1220 = vmatpush1.msra.mxu0 0.0
    %1221 = vmatprep.subr.mxu0 0.0
    %1222 = vmatpush1.msra.mxu0 0.0
    %1223 = vmatprep.subr.mxu0 0.0
    %1224 = vmatpush1.msra.mxu0 0.0
    %1225 = vmatprep.subr.mxu0 0.0
    %1226 = vmatpush1.msra.mxu0 0.0
    %1227 = vmatprep.subr.mxu0 0.0
    %1228 = vmatpush1.msra.mxu0 0.0
    %1229 = vmatprep.subr.mxu0 0.0
    %1230 = vmatpush1.msra.mxu0 0.0
    %1231 = vmatprep.subr.mxu0 0.0
    %1232 = vmatpush1.msra.mxu0 0.0
    %1233 = vmatprep.subr.mxu0 0.0
    %1234 = vmatpush1.msra.mxu0 0.0
    %1235 = vmatprep.subr.mxu0 0.0
    %1236 = vmatpush1.msra.mxu0 0.0
    %1237 = vmatprep.subr.mxu0 0.0
    %1238 = vmatpush1.msra.mxu0 0.0
    %1239 = vmatprep.subr.mxu0 0.0
    %1240 = vmatpush1.msra.mxu0 0.0
    %1241 = vmatprep.subr.mxu0 0.0
    %1242 = vmatpush1.msra.mxu0 0.0
    %1243 = vmatprep.subr.mxu0 0.0
    %1244 = vmatpush1.msra.mxu0 0.0
    %1245 = vmatprep.mubr.f32.mxu0 0.0
    %1246 = vmatmul.mubr.f32.gmra.mrb[0].mxu0 %v1109
    %v1247 = vpop.f32.mrb[0].mxu0
    %v1248 = vadd.f32 %v1178, %v1247
    %v1249 = vpop.f32.mrb[0].mxu0
    %1250 = vdwg.mxu0
    %v1252 = vsel %vm181, %v1107, 0
    %1254 = vmatprep.subr.mxu0 0.0
    %1255 = vmatpush1.msra.mxu0 %v1028
    %1256 = vmatprep.subr.mxu0 0.0
    %1257 = vmatpush1.msra.mxu0 %v1029
    %1258 = vmatprep.subr.mxu0 0.0
    %1259 = vmatpush1.msra.mxu0 %v1030
    %1260 = vmatprep.subr.mxu0 0.0
    %1261 = vmatpush1.msra.mxu0 %v1031
    %1262 = vmatprep.subr.mxu0 0.0
    %1263 = vmatpush1.msra.mxu0 %v1032
    %1264 = vmatprep.subr.mxu0 0.0
    %1265 = vmatpush1.msra.mxu0 %v1033
    %1266 = vmatprep.subr.mxu0 0.0
    %1267 = vmatpush1.msra.mxu0 %v1034
    %1268 = vmatprep.subr.mxu0 0.0
    %1269 = vmatpush1.msra.mxu0 %v1035
    %1270 = vmatprep.subr.mxu0 0.0
    %1271 = vmatpush1.msra.mxu0 %v1036
    %1272 = vmatprep.subr.mxu0 0.0
    %1273 = vmatpush1.msra.mxu0 %v1037
    %1274 = vmatprep.subr.mxu0 0.0
    %1275 = vmatpush1.msra.mxu0 %v1038
    %1276 = vmatprep.subr.mxu0 0.0
    %1277 = vmatpush1.msra.mxu0 %v1039
    %1278 = vmatprep.subr.mxu0 0.0
    %1279 = vmatpush1.msra.mxu0 %v1040
    %1280 = vmatprep.subr.mxu0 0.0
    %1281 = vmatpush1.msra.mxu0 %v1041
    %1282 = vmatprep.subr.mxu0 0.0
    %1283 = vmatpush1.msra.mxu0 %v1042
    %1284 = vmatprep.subr.mxu0 0.0
    %1285 = vmatpush1.msra.mxu0 %v1043
    %1286 = vmatprep.subr.mxu0 0.0
    %1287 = vmatpush1.msra.mxu0 %v1044
    %1288 = vmatprep.subr.mxu0 0.0
    %1289 = vmatpush1.msra.mxu0 %v1045
    %1290 = vmatprep.subr.mxu0 0.0
    %1291 = vmatpush1.msra.mxu0 %v1046
    %1292 = vmatprep.subr.mxu0 0.0
    %1293 = vmatpush1.msra.mxu0 %v1047
    %1294 = vmatprep.subr.mxu0 0.0
    %1295 = vmatpush1.msra.mxu0 %v1048
    %1296 = vmatprep.subr.mxu0 0.0
    %1297 = vmatpush1.msra.mxu0 %v1049
    %1298 = vmatprep.subr.mxu0 0.0
    %1299 = vmatpush1.msra.mxu0 %v1050
    %1300 = vmatprep.subr.mxu0 0.0
    %1301 = vmatpush1.msra.mxu0 %v1051
    %1302 = vmatprep.subr.mxu0 0.0
    %1303 = vmatpush1.msra.mxu0 %v1052
    %1304 = vmatprep.subr.mxu0 0.0
    %1305 = vmatpush1.msra.mxu0 %v1053
    %1306 = vmatprep.subr.mxu0 0.0
    %1307 = vmatpush1.msra.mxu0 %v1054
    %1308 = vmatprep.subr.mxu0 0.0
    %1309 = vmatpush1.msra.mxu0 %v1055
    %1310 = vmatprep.subr.mxu0 0.0
    %1311 = vmatpush1.msra.mxu0 %v1056
    %1312 = vmatprep.subr.mxu0 0.0
    %1313 = vmatpush1.msra.mxu0 %v1057
    %1314 = vmatprep.subr.mxu0 0.0
    %1315 = vmatpush1.msra.mxu0 %v1058
    %1316 = vmatprep.subr.mxu0 0.0
    %1317 = vmatpush1.msra.mxu0 %v1059
    %1318 = vmatprep.mubr.f32.mxu0 %v1100
    %1319 = vmatmul.mubr.f32.gmra.mrb[0].mxu0 %v1094
    %v1320 = vpop.f32.mrb[0].mxu0
    %v1321 = vadd.f32 0.0, %v1320
    %v1322 = vpop.f32.mrb[0].mxu0
    %1323 = vdwg.mxu0
    %1324 = vmatprep.subr.mxu0 0.0
    %1325 = vmatpush1.msra.mxu0 %v1060
    %1326 = vmatprep.subr.mxu0 0.0
    %1327 = vmatpush1.msra.mxu0 %v1061
    %1328 = vmatprep.subr.mxu0 0.0
    %1329 = vmatpush1.msra.mxu0 %v1062
    %1330 = vmatprep.subr.mxu0 0.0
    %1331 = vmatpush1.msra.mxu0 %v1063
    %1332 = vmatprep.subr.mxu0 0.0
    %1333 = vmatpush1.msra.mxu0 0.0
    %1334 = vmatprep.subr.mxu0 0.0
    %1335 = vmatpush1.msra.mxu0 0.0
    %1336 = vmatprep.subr.mxu0 0.0
    %1337 = vmatpush1.msra.mxu0 0.0
    %1338 = vmatprep.subr.mxu0 0.0
    %1339 = vmatpush1.msra.mxu0 0.0
    %1340 = vmatprep.subr.mxu0 0.0
    %1341 = vmatpush1.msra.mxu0 0.0
    %1342 = vmatprep.subr.mxu0 0.0
    %1343 = vmatpush1.msra.mxu0 0.0
    %1344 = vmatprep.subr.mxu0 0.0
    %1345 = vmatpush1.msra.mxu0 0.0
    %1346 = vmatprep.subr.mxu0 0.0
    %1347 = vmatpush1.msra.mxu0 0.0
    %1348 = vmatprep.subr.mxu0 0.0
    %1349 = vmatpush1.msra.mxu0 0.0
    %1350 = vmatprep.subr.mxu0 0.0
    %1351 = vmatpush1.msra.mxu0 0.0
    %1352 = vmatprep.subr.mxu0 0.0
    %1353 = vmatpush1.msra.mxu0 0.0
    %1354 = vmatprep.subr.mxu0 0.0
    %1355 = vmatpush1.msra.mxu0 0.0
    %1356 = vmatprep.subr.mxu0 0.0
    %1357 = vmatpush1.msra.mxu0 0.0
    %1358 = vmatprep.subr.mxu0 0.0
    %1359 = vmatpush1.msra.mxu0 0.0
    %1360 = vmatprep.subr.mxu0 0.0
    %1361 = vmatpush1.msra.mxu0 0.0
    %1362 = vmatprep.subr.mxu0 0.0
    %1363 = vmatpush1.msra.mxu0 0.0
    %1364 = vmatprep.subr.mxu0 0.0
    %1365 = vmatpush1.msra.mxu0 0.0
    %1366 = vmatprep.subr.mxu0 0.0
    %1367 = vmatpush1.msra.mxu0 0.0
    %1368 = vmatprep.subr.mxu0 0.0
    %1369 = vmatpush1.msra.mxu0 0.0
    %1370 = vmatprep.subr.mxu0 0.0
    %1371 = vmatpush1.msra.mxu0 0.0
    %1372 = vmatprep.subr.mxu0 0.0
    %1373 = vmatpush1.msra.mxu0 0.0
    %1374 = vmatprep.subr.mxu0 0.0
    %1375 = vmatpush1.msra.mxu0 0.0
    %1376 = vmatprep.subr.mxu0 0.0
    %1377 = vmatpush1.msra.mxu0 0.0
    %1378 = vmatprep.subr.mxu0 0.0
    %1379 = vmatpush1.msra.mxu0 0.0
    %1380 = vmatprep.subr.mxu0 0.0
    %1381 = vmatpush1.msra.mxu0 0.0
    %1382 = vmatprep.subr.mxu0 0.0
    %1383 = vmatpush1.msra.mxu0 0.0
    %1384 = vmatprep.subr.mxu0 0.0
    %1385 = vmatpush1.msra.mxu0 0.0
    %1386 = vmatprep.subr.mxu0 0.0
    %1387 = vmatpush1.msra.mxu0 0.0
    %1388 = vmatprep.mubr.f32.mxu0 0.0
    %1389 = vmatmul.mubr.f32.gmra.mrb[0].mxu0 %v1252
    %v1390 = vpop.f32.mrb[0].mxu0
    %v1391 = vadd.f32 %v1321, %v1390
    %v1392 = vpop.f32.mrb[0].mxu0
    %1393 = vdwg.mxu0
    %v1394 = vmul.f32 %v1248, 0.0034722222
    %v1395 = vmul.f32 %v1391, 0.0034722222
    %v1396 = vmul.f32 %v1394, %v1394
    %v1397 = vsub.f32 %v1395, %v1396
    %v1398 = vmax.f32 %v1397, 0.0
    %v1399 = vadd.f32 %v1398, 1e-05
    %v1400 = vrsqrt.pop %v1399
    %v1401 = vmul.f32 %v1026, %v1400
    %v1402 = vmul.f32 %v1394, %v1401
    %v1403 = vsub.f32 %v1027, %v1402
    %vm1404 = vcmask 64512
    %v1406 = vsel %vm1404, %v1401, 0
    %1408 = vmatprep.subr.mxu0 %v1065
    %1409 = vmatpush1.msra.mxu0 %v1064
    %1410 = vmatprep.subr.mxu0 0.0
    %1411 = vmatpush1.msra.mxu0 0.0
    %1412 = vmatprep.subr.mxu0 0.0
    %1413 = vmatpush1.msra.mxu0 0.0
    %1414 = vmatprep.subr.mxu0 0.0
    %1415 = vmatpush1.msra.mxu0 0.0
    %1416 = vmatprep.subr.mxu0 0.0
    %1417 = vmatpush1.msra.mxu0 0.0
    %1418 = vmatprep.subr.mxu0 0.0
    %1419 = vmatpush1.msra.mxu0 0.0
    %1420 = vmatprep.subr.mxu0 0.0
    %1421 = vmatpush1.msra.mxu0 0.0
    %1422 = vmatprep.subr.mxu0 0.0
    %1423 = vmatpush1.msra.mxu0 0.0
    %1424 = vmatprep.subr.mxu0 0.0
    %1425 = vmatpush1.msra.mxu0 0.0
    %1426 = vmatprep.subr.mxu0 0.0
    %1427 = vmatpush1.msra.mxu0 0.0
    %1428 = vmatprep.subr.mxu0 0.0
    %1429 = vmatpush1.msra.mxu0 0.0
    %1430 = vmatprep.subr.mxu0 0.0
    %1431 = vmatpush1.msra.mxu0 0.0
    %1432 = vmatprep.subr.mxu0 0.0
    %1433 = vmatpush1.msra.mxu0 0.0
    %1434 = vmatprep.subr.mxu0 0.0
    %1435 = vmatpush1.msra.mxu0 0.0
    %1436 = vmatprep.subr.mxu0 0.0
    %1437 = vmatpush1.msra.mxu0 0.0
    %1438 = vmatprep.subr.mxu0 0.0
    %1439 = vmatpush1.msra.mxu0 0.0
    %1440 = vmatprep.subr.mxu0 0.0
    %1441 = vmatpush1.msra.mxu0 0.0
    %1442 = vmatprep.subr.mxu0 0.0
    %1443 = vmatpush1.msra.mxu0 0.0
    %1444 = vmatprep.subr.mxu0 0.0
    %1445 = vmatpush1.msra.mxu0 0.0
    %1446 = vmatprep.subr.mxu0 0.0
    %1447 = vmatpush1.msra.mxu0 0.0
    %1448 = vmatprep.subr.mxu0 0.0
    %1449 = vmatpush1.msra.mxu0 0.0
    %1450 = vmatprep.subr.mxu0 0.0
    %1451 = vmatpush1.msra.mxu0 0.0
    %1452 = vmatprep.subr.mxu0 0.0
    %1453 = vmatpush1.msra.mxu0 0.0
    %1454 = vmatprep.subr.mxu0 0.0
    %1455 = vmatpush1.msra.mxu0 0.0
    %1456 = vmatprep.subr.mxu0 0.0
    %1457 = vmatpush1.msra.mxu0 0.0
    %1458 = vmatprep.subr.mxu0 0.0
    %1459 = vmatpush1.msra.mxu0 0.0
    %1460 = vmatprep.subr.mxu0 0.0
    %1461 = vmatpush1.msra.mxu0 0.0
    %1462 = vmatprep.subr.mxu0 0.0
    %1463 = vmatpush1.msra.mxu0 0.0
    %1464 = vmatprep.subr.mxu0 0.0
    %1465 = vmatpush1.msra.mxu0 0.0
    %1466 = vmatprep.subr.mxu0 0.0
    %1467 = vmatpush1.msra.mxu0 0.0
    %1468 = vmatprep.subr.mxu0 0.0
    %1469 = vmatpush1.msra.mxu0 0.0
    %1470 = vmatprep.subr.mxu0 0.0
    %1471 = vmatpush1.msra.mxu0 0.0
    %1472 = vmatprep.mubr.f32.mxu0 0.0
    %1473 = vmatmul.mubr.f32.gmra.mrb[0].mxu0 %v1406
    %v1474 = vpop.f32.mrb[0].mxu0
    %v1475 = vadd.f32 0.0, %v1474
    %v1476 = vpop.f32.mrb[0].mxu0
    %v1477 = vadd.f32 0.0, %v1476
    %1478 = vdwg.mxu0
    %1479 = vmatprep.subr.mxu0 0.0
    %1480 = vmatpush1.msra.mxu0 %v1066
    %1481 = vmatprep.subr.mxu0 0.0
    %1482 = vmatpush1.msra.mxu0 0.0
    %1483 = vmatprep.subr.mxu0 0.0
    %1484 = vmatpush1.msra.mxu0 0.0
    %1485 = vmatprep.subr.mxu0 0.0
    %1486 = vmatpush1.msra.mxu0 0.0
    %1487 = vmatprep.subr.mxu0 0.0
    %1488 = vmatpush1.msra.mxu0 0.0
    %1489 = vmatprep.subr.mxu0 0.0
    %1490 = vmatpush1.msra.mxu0 0.0
    %1491 = vmatprep.subr.mxu0 0.0
    %1492 = vmatpush1.msra.mxu0 0.0
    %1493 = vmatprep.subr.mxu0 0.0
    %1494 = vmatpush1.msra.mxu0 0.0
    %1495 = vmatprep.subr.mxu0 0.0
    %1496 = vmatpush1.msra.mxu0 0.0
    %1497 = vmatprep.subr.mxu0 0.0
    %1498 = vmatpush1.msra.mxu0 0.0
    %1499 = vmatprep.subr.mxu0 0.0
    %1500 = vmatpush1.msra.mxu0 0.0
    %1501 = vmatprep.subr.mxu0 0.0
    %1502 = vmatpush1.msra.mxu0 0.0
    %1503 = vmatprep.subr.mxu0 0.0
    %1504 = vmatpush1.msra.mxu0 0.0
    %1505 = vmatprep.subr.mxu0 0.0
    %1506 = vmatpush1.msra.mxu0 0.0
    %1507 = vmatprep.subr.mxu0 0.0
    %1508 = vmatpush1.msra.mxu0 0.0
    %1509 = vmatprep.subr.mxu0 0.0
    %1510 = vmatpush1.msra.mxu0 0.0
    %1511 = vmatprep.subr.mxu0 0.0
    %1512 = vmatpush1.msra.mxu0 0.0
    %1513 = vmatprep.subr.mxu0 0.0
    %1514 = vmatpush1.msra.mxu0 0.0
    %1515 = vmatprep.subr.mxu0 0.0
    %1516 = vmatpush1.msra.mxu0 0.0
    %1517 = vmatprep.subr.mxu0 0.0
    %1518 = vmatpush1.msra.mxu0 0.0
    %1519 = vmatprep.subr.mxu0 0.0
    %1520 = vmatpush1.msra.mxu0 0.0
    %1521 = vmatprep.subr.mxu0 0.0
    %1522 = vmatpush1.msra.mxu0 0.0
    %1523 = vmatprep.subr.mxu0 0.0
    %1524 = vmatpush1.msra.mxu0 0.0
    %1525 = vmatprep.subr.mxu0 0.0
    %1526 = vmatpush1.msra.mxu0 0.0
    %1527 = vmatprep.subr.mxu0 0.0
    %1528 = vmatpush1.msra.mxu0 0.0
    %1529 = vmatprep.subr.mxu0 0.0
    %1530 = vmatpush1.msra.mxu0 0.0
    %1531 = vmatprep.subr.mxu0 0.0
    %1532 = vmatpush1.msra.mxu0 0.0
    %1533 = vmatprep.subr.mxu0 0.0
    %1534 = vmatpush1.msra.mxu0 0.0
    %1535 = vmatprep.subr.mxu0 0.0
    %1536 = vmatpush1.msra.mxu0 0.0
    %1537 = vmatprep.subr.mxu0 0.0
    %1538 = vmatpush1.msra.mxu0 0.0
    %1539 = vmatprep.subr.mxu0 0.0
    %1540 = vmatpush1.msra.mxu0 0.0
    %1541 = vmatprep.subr.mxu0 0.0
    %1542 = vmatpush1.msra.mxu0 0.0
    %1543 = vmatprep.mubr.f32.mxu0 0.0
    %1544 = vmatmul.mubr.f32.gmra.mrb[0].mxu0 %v1406
    %v1545 = vpop.f32.mrb[0].mxu0
    %v1546 = vadd.f32 0.0, %v1545
    %v1547 = vpop.f32.mrb[0].mxu0
    %1548 = vdwg.mxu0
    %v1550 = vsel %vm1404, %v1403, 0
    %1552 = vmatprep.subr.mxu0 %v1065
    %1553 = vmatpush1.msra.mxu0 %v1064
    %1554 = vmatprep.subr.mxu0 0.0
    %1555 = vmatpush1.msra.mxu0 0.0
    %1556 = vmatprep.subr.mxu0 0.0
    %1557 = vmatpush1.msra.mxu0 0.0
    %1558 = vmatprep.subr.mxu0 0.0
    %1559 = vmatpush1.msra.mxu0 0.0
    %1560 = vmatprep.subr.mxu0 0.0
    %1561 = vmatpush1.msra.mxu0 0.0
    %1562 = vmatprep.subr.mxu0 0.0
    %1563 = vmatpush1.msra.mxu0 0.0
    %1564 = vmatprep.subr.mxu0 0.0
    %1565 = vmatpush1.msra.mxu0 0.0
    %1566 = vmatprep.subr.mxu0 0.0
    %1567 = vmatpush1.msra.mxu0 0.0
    %1568 = vmatprep.subr.mxu0 0.0
    %1569 = vmatpush1.msra.mxu0 0.0
    %1570 = vmatprep.subr.mxu0 0.0
    %1571 = vmatpush1.msra.mxu0 0.0
    %1572 = vmatprep.subr.mxu0 0.0
    %1573 = vmatpush1.msra.mxu0 0.0
    %1574 = vmatprep.subr.mxu0 0.0
    %1575 = vmatpush1.msra.mxu0 0.0
    %1576 = vmatprep.subr.mxu0 0.0
    %1577 = vmatpush1.msra.mxu0 0.0
    %1578 = vmatprep.subr.mxu0 0.0
    %1579 = vmatpush1.msra.mxu0 0.0
    %1580 = vmatprep.subr.mxu0 0.0
    %1581 = vmatpush1.msra.mxu0 0.0
    %1582 = vmatprep.subr.mxu0 0.0
    %1583 = vmatpush1.msra.mxu0 0.0
    %1584 = vmatprep.subr.mxu0 0.0
    %1585 = vmatpush1.msra.mxu0 0.0
    %1586 = vmatprep.subr.mxu0 0.0
    %1587 = vmatpush1.msra.mxu0 0.0
    %1588 = vmatprep.subr.mxu0 0.0
    %1589 = vmatpush1.msra.mxu0 0.0
    %1590 = vmatprep.subr.mxu0 0.0
    %1591 = vmatpush1.msra.mxu0 0.0
    %1592 = vmatprep.subr.mxu0 0.0
    %1593 = vmatpush1.msra.mxu0 0.0
    %1594 = vmatprep.subr.mxu0 0.0
    %1595 = vmatpush1.msra.mxu0 0.0
    %1596 = vmatprep.subr.mxu0 0.0
    %1597 = vmatpush1.msra.mxu0 0.0
    %1598 = vmatprep.subr.mxu0 0.0
    %1599 = vmatpush1.msra.mxu0 0.0
    %1600 = vmatprep.subr.mxu0 0.0
    %1601 = vmatpush1.msra.mxu0 0.0
    %1602 = vmatprep.subr.mxu0 0.0
    %1603 = vmatpush1.msra.mxu0 0.0
    %1604 = vmatprep.subr.mxu0 0.0
    %1605 = vmatpush1.msra.mxu0 0.0
    %1606 = vmatprep.subr.mxu0 0.0
    %1607 = vmatpush1.msra.mxu0 0.0
    %1608 = vmatprep.subr.mxu0 0.0
    %1609 = vmatpush1.msra.mxu0 0.0
    %1610 = vmatprep.subr.mxu0 0.0
    %1611 = vmatpush1.msra.mxu0 0.0
    %1612 = vmatprep.subr.mxu0 0.0
    %1613 = vmatpush1.msra.mxu0 0.0
    %1614 = vmatprep.subr.mxu0 0.0
    %1615 = vmatpush1.msra.mxu0 0.0
    %1616 = vmatprep.mubr.f32.mxu0 0.0
    %1617 = vmatmul.mubr.f32.gmra.mrb[0].mxu0 %v1550
    %v1618 = vpop.f32.mrb[0].mxu0
    %v1619 = vadd.f32 0.0, %v1618
    %v1620 = vpop.f32.mrb[0].mxu0
    %v1621 = vadd.f32 0.0, %v1620
    %1622 = vdwg.mxu0
    %1623 = vmatprep.subr.mxu0 0.0
    %1624 = vmatpush1.msra.mxu0 %v1066
    %1625 = vmatprep.subr.mxu0 0.0
    %1626 = vmatpush1.msra.mxu0 0.0
    %1627 = vmatprep.subr.mxu0 0.0
    %1628 = vmatpush1.msra.mxu0 0.0
    %1629 = vmatprep.subr.mxu0 0.0
    %1630 = vmatpush1.msra.mxu0 0.0
    %1631 = vmatprep.subr.mxu0 0.0
    %1632 = vmatpush1.msra.mxu0 0.0
    %1633 = vmatprep.subr.mxu0 0.0
    %1634 = vmatpush1.msra.mxu0 0.0
    %1635 = vmatprep.subr.mxu0 0.0
    %1636 = vmatpush1.msra.mxu0 0.0
    %1637 = vmatprep.subr.mxu0 0.0
    %1638 = vmatpush1.msra.mxu0 0.0
    %1639 = vmatprep.subr.mxu0 0.0
    %1640 = vmatpush1.msra.mxu0 0.0
    %1641 = vmatprep.subr.mxu0 0.0
    %1642 = vmatpush1.msra.mxu0 0.0
    %1643 = vmatprep.subr.mxu0 0.0
    %1644 = vmatpush1.msra.mxu0 0.0
    %1645 = vmatprep.subr.mxu0 0.0
    %1646 = vmatpush1.msra.mxu0 0.0
    %1647 = vmatprep.subr.mxu0 0.0
    %1648 = vmatpush1.msra.mxu0 0.0
    %1649 = vmatprep.subr.mxu0 0.0
    %1650 = vmatpush1.msra.mxu0 0.0
    %1651 = vmatprep.subr.mxu0 0.0
    %1652 = vmatpush1.msra.mxu0 0.0
    %1653 = vmatprep.subr.mxu0 0.0
    %1654 = vmatpush1.msra.mxu0 0.0
    %1655 = vmatprep.subr.mxu0 0.0
    %1656 = vmatpush1.msra.mxu0 0.0
    %1657 = vmatprep.subr.mxu0 0.0
    %1658 = vmatpush1.msra.mxu0 0.0
    %1659 = vmatprep.subr.mxu0 0.0
    %1660 = vmatpush1.msra.mxu0 0.0
    %1661 = vmatprep.subr.mxu0 0.0
    %1662 = vmatpush1.msra.mxu0 0.0
    %1663 = vmatprep.subr.mxu0 0.0
    %1664 = vmatpush1.msra.mxu0 0.0
    %1665 = vmatprep.subr.mxu0 0.0
    %1666 = vmatpush1.msra.mxu0 0.0
    %1667 = vmatprep.subr.mxu0 0.0
    %1668 = vmatpush1.msra.mxu0 0.0
    %1669 = vmatprep.subr.mxu0 0.0
    %1670 = vmatpush1.msra.mxu0 0.0
    %1671 = vmatprep.subr.mxu0 0.0
    %1672 = vmatpush1.msra.mxu0 0.0
    %1673 = vmatprep.subr.mxu0 0.0
    %1674 = vmatpush1.msra.mxu0 0.0
    %1675 = vmatprep.subr.mxu0 0.0
    %1676 = vmatpush1.msra.mxu0 0.0
    %1677 = vmatprep.subr.mxu0 0.0
    %1678 = vmatpush1.msra.mxu0 0.0
    %1679 = vmatprep.subr.mxu0 0.0
    %1680 = vmatpush1.msra.mxu0 0.0
    %1681 = vmatprep.subr.mxu0 0.0
    %1682 = vmatpush1.msra.mxu0 0.0
    %1683 = vmatprep.subr.mxu0 0.0
    %1684 = vmatpush1.msra.mxu0 0.0
    %1685 = vmatprep.subr.mxu0 0.0
    %1686 = vmatpush1.msra.mxu0 0.0
    %1687 = vmatprep.mubr.f32.mxu0 0.0
    %1688 = vmatmul.mubr.f32.gmra.mrb[0].mxu0 %v1550
    %v1689 = vpop.f32.mrb[0].mxu0
    %v1690 = vadd.f32 0.0, %v1689
    %v1691 = vpop.f32.mrb[0].mxu0
    %1692 = vdwg.mxu0
    %v1693 = vlaneseq
    %v1694 = vshrl.u32 %v1693, 7
    %v1695 = vsub.s32 0, %v1694
    %v1696 = vrot.slane %v1475, %v1695
    %v1697 = vlaneseq
    %v1698 = vshrl.u32 %v1697, 7
    %v1699 = vsub.s32 0, %v1698
    %v1700 = vrot.slane %v1477, %v1699
    %v1701 = vlaneseq
    %v1702 = vshrl.u32 %v1701, 7
    %v1703 = vsub.s32 0, %v1702
    %v1704 = vrot.slane %v1546, %v1703
    %v1705 = vmul.f32 %v952, %v1696
    %v1706 = vmul.f32 %v954, %v1700
    %v1707 = vmul.f32 %v1023, %v1704
    %v1708 = vlaneseq
    %v1709 = vshrl.u32 %v1708, 7
    %v1710 = vsub.s32 0, %v1709
    %v1711 = vrot.slane %v1619, %v1710
    %v1712 = vlaneseq
    %v1713 = vshrl.u32 %v1712, 7
    %v1714 = vsub.s32 0, %v1713
    %v1715 = vrot.slane %v1621, %v1714
    %v1716 = vlaneseq
    %v1717 = vshrl.u32 %v1716, 7
    %v1718 = vsub.s32 0, %v1717
    %v1719 = vrot.slane %v1690, %v1718
    %v1720 = vadd.f32 %v1705, %v1711
    %v1721 = vadd.f32 %v1706, %v1715
    %v1722 = vadd.f32 %v1707, %v1719
    %vm1723 = vcmp.ge.f32.partialorder %v1720, 0.0
    %vm1724 = vcmp.ge.f32.partialorder %v1721, 0.0
    %vm1725 = vcmp.ge.f32.partialorder %v1722, 0.0
    %v1726 = vmul.f32 %v1720, 0.2
    %v1727 = vmul.f32 %v1721, 0.2
    %v1728 = vmul.f32 %v1722, 0.2
    %v1729 = vsel %vm1723, %v1720, %v1726
    %v1730 = vsel %vm1724, %v1721, %v1727
    %v1731 = vsel %vm1725, %v1722, %v1728
    %v1732 = vld [vmem:[#allocation11] sm:$0xff]
    %v1733 = vld [vmem:[#allocation11 + $0x8] sm:$0xff]
    %v1734 = vld [vmem:[#allocation11 + $0x10] sm:$0xff]
    %v1735 = vld [vmem:[#allocation11 + $0x18] sm:$0xff]
    %v1736 = vld [vmem:[#allocation11 + $0x20] sm:$0xff]
    %v1737 = vld [vmem:[#allocation11 + $0x28] sm:$0xff]
    %v1738 = vld [vmem:[#allocation11 + $0x30] sm:$0xff]
    %v1739 = vld [vmem:[#allocation11 + $0x38] sm:$0xff]
    %v1740 = vld [vmem:[#allocation11 + $0x40] sm:$0xff]
    %v1741 = vld [vmem:[#allocation11 + $0x48] sm:$0xff]
    %v1742 = vld [vmem:[#allocation11 + $0x50] sm:$0xff]
    %v1743 = vld [vmem:[#allocation11 + $0x58] sm:$0xff]
    %v1744 = vld [vmem:[#allocation11 + $0x60] sm:$0xff]
    %v1745 = vld [vmem:[#allocation11 + $0x68] sm:$0xff]
    %v1746 = vld [vmem:[#allocation11 + $0x70] sm:$0xff]
    %v1747 = vld [vmem:[#allocation11 + $0x78] sm:$0xff]
    %v1748 = vld [vmem:[#allocation11 + $0x80] sm:$0xff]
    %v1749 = vld [vmem:[#allocation11 + $0x88] sm:$0xff]
    %v1750 = vld [vmem:[#allocation11 + $0x90] sm:$0xff]
    %v1751 = vld [vmem:[#allocation11 + $0x98] sm:$0xff]
    %v1752 = vld [vmem:[#allocation11 + $0xa0] sm:$0xff]
    %v1753 = vld [vmem:[#allocation11 + $0xa8] sm:$0xff]
    %v1754 = vld [vmem:[#allocation11 + $0xb0] sm:$0xff]
    %v1755 = vld [vmem:[#allocation11 + $0xb8] sm:$0xff]
    %v1756 = vld [vmem:[#allocation11 + $0xc0] sm:$0xff]
    %v1757 = vld [vmem:[#allocation11 + $0xc8] sm:$0xff]
    %v1758 = vld [vmem:[#allocation11 + $0xd0] sm:$0xff]
    %v1759 = vld [vmem:[#allocation11 + $0xd8] sm:$0xff]
    %v1760 = vld [vmem:[#allocation11 + $0xe0] sm:$0xff]
    %v1761 = vld [vmem:[#allocation11 + $0xe8] sm:$0xff]
    %v1762 = vld [vmem:[#allocation11 + $0xf0] sm:$0xff]
    %v1763 = vld [vmem:[#allocation11 + $0xf8] sm:$0xff]
    %v1764 = vld [vmem:[#allocation11 + $0x100] sm:$0xff]
    %v1765 = vld [vmem:[#allocation11 + $0x108] sm:$0xff]
    %v1766 = vld [vmem:[#allocation11 + $0x110] sm:$0xff]
    %v1767 = vld [vmem:[#allocation11 + $0x118] sm:$0xff]
    %v1768 = vld [vmem:[#allocation11 + $0x120] sm:$0xff]
    %v1769 = vld [vmem:[#allocation11 + $0x128] sm:$0xff]
    %v1770 = vld [vmem:[#allocation11 + $0x130] sm:$0xff]
    %v1771 = vld [vmem:[#allocation11 + $0x138] sm:$0xff]
    %v1772 = vld [vmem:[#allocation11 + $0x140] sm:$0xff]
    %v1773 = vld [vmem:[#allocation11 + $0x148] sm:$0xff]
    %v1774 = vld [vmem:[#allocation11 + $0x150] sm:$0xff]
    %v1775 = vld [vmem:[#allocation11 + $0x158] sm:$0xff]
    %v1776 = vld [vmem:[#allocation11 + $0x160] sm:$0xff]
    %v1777 = vld [vmem:[#allocation11 + $0x168] sm:$0xff]
    %v1778 = vld [vmem:[#allocation11 + $0x170] sm:$0xff]
    %v1779 = vld [vmem:[#allocation11 + $0x178] sm:$0xff]
    %v1780 = vld [vmem:[#allocation11 + $0x180] sm:$0xff]
    %v1781 = vld [vmem:[#allocation11 + $0x188] sm:$0xff]
    %v1782 = vld [vmem:[#allocation11 + $0x190] sm:$0xff]
    %v1783 = vld [vmem:[#allocation11 + $0x198] sm:$0xff]
    %v1784 = vld [vmem:[#allocation11 + $0x1a0] sm:$0xff]
    %v1785 = vld [vmem:[#allocation11 + $0x1a8] sm:$0xff]
    %v1786 = vld [vmem:[#allocation11 + $0x1b0] sm:$0xff]
    %v1787 = vld [vmem:[#allocation11 + $0x1b8] sm:$0xff]
    %v1788 = vld [vmem:[#allocation11 + $0x1c0] sm:$0xff]
    %v1789 = vld [vmem:[#allocation11 + $0x1c8] sm:$0xff]
    %v1790 = vld [vmem:[#allocation11 + $0x1d0] sm:$0xff]
    %v1791 = vld [vmem:[#allocation11 + $0x1d8] sm:$0xff]
    %v1792 = vld [vmem:[#allocation11 + $0x1e0] sm:$0xff]
    %v1793 = vld [vmem:[#allocation11 + $0x1e8] sm:$0xff]
    %v1794 = vld [vmem:[#allocation11 + $0x1f0] sm:$0xff]
    %v1795 = vld [vmem:[#allocation11 + $0x1f8] sm:$0xff]
    %v1796 = vld [vmem:[#allocation11 + $0x200] sm:$0xff]
    %v1797 = vld [vmem:[#allocation11 + $0x208] sm:$0xff]
    %v1798 = vld [vmem:[#allocation11 + $0x210] sm:$0xff]
    %v1799 = vld [vmem:[#allocation11 + $0x218] sm:$0xff]
    %v1800 = vld [vmem:[#allocation11 + $0x220] sm:$0xff]
    %v1801 = vld [vmem:[#allocation11 + $0x228] sm:$0xff]
    %v1802 = vld [vmem:[#allocation11 + $0x230] sm:$0xff]
    %v1803 = vld [vmem:[#allocation11 + $0x238] sm:$0xff]
    %v1805 = vsel %vm181, %v1731, 0
    %1807 = vmatprep.subr.mxu0 %v1733
    %1808 = vmatpush1.msra.mxu0 %v1732
    %1809 = vmatprep.subr.mxu0 %v1735
    %1810 = vmatpush1.msra.mxu0 %v1734
    %1811 = vmatprep.subr.mxu0 %v1737
    %1812 = vmatpush1.msra.mxu0 %v1736
    %1813 = vmatprep.subr.mxu0 %v1739
    %1814 = vmatpush1.msra.mxu0 %v1738
    %1815 = vmatprep.subr.mxu0 %v1741
    %1816 = vmatpush1.msra.mxu0 %v1740
    %1817 = vmatprep.subr.mxu0 %v1743
    %1818 = vmatpush1.msra.mxu0 %v1742
    %1819 = vmatprep.subr.mxu0 %v1745
    %1820 = vmatpush1.msra.mxu0 %v1744
    %1821 = vmatprep.subr.mxu0 %v1747
    %1822 = vmatpush1.msra.mxu0 %v1746
    %1823 = vmatprep.subr.mxu0 %v1749
    %1824 = vmatpush1.msra.mxu0 %v1748
    %1825 = vmatprep.subr.mxu0 %v1751
    %1826 = vmatpush1.msra.mxu0 %v1750
    %1827 = vmatprep.subr.mxu0 %v1753
    %1828 = vmatpush1.msra.mxu0 %v1752
    %1829 = vmatprep.subr.mxu0 %v1755
    %1830 = vmatpush1.msra.mxu0 %v1754
    %1831 = vmatprep.subr.mxu0 %v1757
    %1832 = vmatpush1.msra.mxu0 %v1756
    %1833 = vmatprep.subr.mxu0 %v1759
    %1834 = vmatpush1.msra.mxu0 %v1758
    %1835 = vmatprep.subr.mxu0 %v1761
    %1836 = vmatpush1.msra.mxu0 %v1760
    %1837 = vmatprep.subr.mxu0 %v1763
    %1838 = vmatpush1.msra.mxu0 %v1762
    %1839 = vmatprep.subr.mxu0 %v1765
    %1840 = vmatpush1.msra.mxu0 %v1764
    %1841 = vmatprep.subr.mxu0 %v1767
    %1842 = vmatpush1.msra.mxu0 %v1766
    %1843 = vmatprep.subr.mxu0 %v1769
    %1844 = vmatpush1.msra.mxu0 %v1768
    %1845 = vmatprep.subr.mxu0 %v1771
    %1846 = vmatpush1.msra.mxu0 %v1770
    %1847 = vmatprep.subr.mxu0 %v1773
    %1848 = vmatpush1.msra.mxu0 %v1772
    %1849 = vmatprep.subr.mxu0 %v1775
    %1850 = vmatpush1.msra.mxu0 %v1774
    %1851 = vmatprep.subr.mxu0 %v1777
    %1852 = vmatpush1.msra.mxu0 %v1776
    %1853 = vmatprep.subr.mxu0 %v1779
    %1854 = vmatpush1.msra.mxu0 %v1778
    %1855 = vmatprep.subr.mxu0 %v1781
    %1856 = vmatpush1.msra.mxu0 %v1780
    %1857 = vmatprep.subr.mxu0 %v1783
    %1858 = vmatpush1.msra.mxu0 %v1782
    %1859 = vmatprep.subr.mxu0 %v1785
    %1860 = vmatpush1.msra.mxu0 %v1784
    %1861 = vmatprep.subr.mxu0 %v1787
    %1862 = vmatpush1.msra.mxu0 %v1786
    %1863 = vmatprep.subr.mxu0 %v1789
    %1864 = vmatpush1.msra.mxu0 %v1788
    %1865 = vmatprep.subr.mxu0 %v1791
    %1866 = vmatpush1.msra.mxu0 %v1790
    %1867 = vmatprep.subr.mxu0 %v1793
    %1868 = vmatpush1.msra.mxu0 %v1792
    %1869 = vmatprep.subr.mxu0 %v1795
    %1870 = vmatpush1.msra.mxu0 %v1794
    %1871 = vmatprep.mubr.f32.mxu0 %v1730
    %1872 = vmatmul.mubr.f32.gmra.mrb[0].mxu0 %v1729
    %v1873 = vpop.f32.mrb[0].mxu0
    %v1874 = vadd.f32 0.0, %v1873
    %v1875 = vpop.f32.mrb[0].mxu0
    %v1876 = vadd.f32 0.0, %v1875
    %1877 = vdwg.mxu0
    %1878 = vmatprep.subr.mxu0 %v1797
    %1879 = vmatpush1.msra.mxu0 %v1796
    %1880 = vmatprep.subr.mxu0 %v1799
    %1881 = vmatpush1.msra.mxu0 %v1798
    %1882 = vmatprep.subr.mxu0 %v1801
    %1883 = vmatpush1.msra.mxu0 %v1800
    %1884 = vmatprep.subr.mxu0 %v1803
    %1885 = vmatpush1.msra.mxu0 %v1802
    %1886 = vmatprep.subr.mxu0 0.0
    %1887 = vmatpush1.msra.mxu0 0.0
    %1888 = vmatprep.subr.mxu0 0.0
    %1889 = vmatpush1.msra.mxu0 0.0
    %1890 = vmatprep.subr.mxu0 0.0
    %1891 = vmatpush1.msra.mxu0 0.0
    %1892 = vmatprep.subr.mxu0 0.0
    %1893 = vmatpush1.msra.mxu0 0.0
    %1894 = vmatprep.subr.mxu0 0.0
    %1895 = vmatpush1.msra.mxu0 0.0
    %1896 = vmatprep.subr.mxu0 0.0
    %1897 = vmatpush1.msra.mxu0 0.0
    %1898 = vmatprep.subr.mxu0 0.0
    %1899 = vmatpush1.msra.mxu0 0.0
    %1900 = vmatprep.subr.mxu0 0.0
    %1901 = vmatpush1.msra.mxu0 0.0
    %1902 = vmatprep.subr.mxu0 0.0
    %1903 = vmatpush1.msra.mxu0 0.0
    %1904 = vmatprep.subr.mxu0 0.0
    %1905 = vmatpush1.msra.mxu0 0.0
    %1906 = vmatprep.subr.mxu0 0.0
    %1907 = vmatpush1.msra.mxu0 0.0
    %1908 = vmatprep.subr.mxu0 0.0
    %1909 = vmatpush1.msra.mxu0 0.0
    %1910 = vmatprep.subr.mxu0 0.0
    %1911 = vmatpush1.msra.mxu0 0.0
    %1912 = vmatprep.subr.mxu0 0.0
    %1913 = vmatpush1.msra.mxu0 0.0
    %1914 = vmatprep.subr.mxu0 0.0
    %1915 = vmatpush1.msra.mxu0 0.0
    %1916 = vmatprep.subr.mxu0 0.0
    %1917 = vmatpush1.msra.mxu0 0.0
    %1918 = vmatprep.subr.mxu0 0.0
    %1919 = vmatpush1.msra.mxu0 0.0
    %1920 = vmatprep.subr.mxu0 0.0
    %1921 = vmatpush1.msra.mxu0 0.0
    %1922 = vmatprep.subr.mxu0 0.0
    %1923 = vmatpush1.msra.mxu0 0.0
    %1924 = vmatprep.subr.mxu0 0.0
    %1925 = vmatpush1.msra.mxu0 0.0
    %1926 = vmatprep.subr.mxu0 0.0
    %1927 = vmatpush1.msra.mxu0 0.0
    %1928 = vmatprep.subr.mxu0 0.0
    %1929 = vmatpush1.msra.mxu0 0.0
    %1930 = vmatprep.subr.mxu0 0.0
    %1931 = vmatpush1.msra.mxu0 0.0
    %1932 = vmatprep.subr.mxu0 0.0
    %1933 = vmatpush1.msra.mxu0 0.0
    %1934 = vmatprep.subr.mxu0 0.0
    %1935 = vmatpush1.msra.mxu0 0.0
    %1936 = vmatprep.subr.mxu0 0.0
    %1937 = vmatpush1.msra.mxu0 0.0
    %1938 = vmatprep.subr.mxu0 0.0
    %1939 = vmatpush1.msra.mxu0 0.0
    %1940 = vmatprep.subr.mxu0 0.0
    %1941 = vmatpush1.msra.mxu0 0.0
    %1942 = vmatprep.mubr.f32.mxu0 0.0
    %1943 = vmatmul.mubr.f32.gmra.mrb[0].mxu0 %v1805
    %v1944 = vpop.f32.mrb[0].mxu0
    %v1945 = vadd.f32 %v1874, %v1944
    %v1946 = vpop.f32.mrb[0].mxu0
    %v1947 = vadd.f32 %v1876, %v1946
    %1948 = vdwg.mxu0
    %v1949 = vld [vmem:[%s17] sm:$0x1]
    %v1950 = vld [vmem:[%s18] sm:$0x1]
    %v1951 = vld [vmem:[#allocation12] sm:$0xff]
    %v1952 = vld [vmem:[#allocation12 + $0x8] sm:$0xff]
    %v1953 = vld [vmem:[#allocation12 + $0x10] sm:$0xff]
    %v1954 = vld [vmem:[#allocation12 + $0x18] sm:$0xff]
    %v1955 = vld [vmem:[#allocation12 + $0x20] sm:$0xff]
    %v1956 = vld [vmem:[#allocation12 + $0x28] sm:$0xff]
    %v1957 = vld [vmem:[#allocation12 + $0x30] sm:$0xff]
    %v1958 = vld [vmem:[#allocation12 + $0x38] sm:$0xff]
    %v1959 = vld [vmem:[#allocation12 + $0x40] sm:$0xff]
    %v1960 = vld [vmem:[#allocation12 + $0x48] sm:$0xff]
    %v1961 = vld [vmem:[#allocation12 + $0x50] sm:$0xff]
    %v1962 = vld [vmem:[#allocation12 + $0x58] sm:$0xff]
    %v1963 = vld [vmem:[#allocation12 + $0x60] sm:$0xff]
    %v1964 = vld [vmem:[#allocation12 + $0x68] sm:$0xff]
    %v1965 = vld [vmem:[#allocation12 + $0x70] sm:$0xff]
    %v1966 = vld [vmem:[#allocation12 + $0x78] sm:$0xff]
    %v1967 = vld [vmem:[#allocation12 + $0x80] sm:$0xff]
    %v1968 = vld [vmem:[#allocation12 + $0x88] sm:$0xff]
    %v1969 = vld [vmem:[#allocation12 + $0x90] sm:$0xff]
    %v1970 = vld [vmem:[#allocation12 + $0x98] sm:$0xff]
    %v1971 = vld [vmem:[#allocation12 + $0xa0] sm:$0xff]
    %v1972 = vld [vmem:[#allocation12 + $0xa8] sm:$0xff]
    %v1973 = vld [vmem:[#allocation12 + $0xb0] sm:$0xff]
    %v1974 = vld [vmem:[#allocation12 + $0xb8] sm:$0xff]
    %v1975 = vld [vmem:[#allocation12 + $0xc0] sm:$0xff]
    %v1976 = vld [vmem:[#allocation12 + $0xc8] sm:$0xff]
    %v1977 = vld [vmem:[#allocation12 + $0xd0] sm:$0xff]
    %v1978 = vld [vmem:[#allocation12 + $0xd8] sm:$0xff]
    %v1979 = vld [vmem:[#allocation12 + $0xe0] sm:$0xff]
    %v1980 = vld [vmem:[#allocation12 + $0xe8] sm:$0xff]
    %v1981 = vld [vmem:[#allocation12 + $0xf0] sm:$0xff]
    %v1982 = vld [vmem:[#allocation12 + $0xf8] sm:$0xff]
    %v1983 = vld [vmem:[%s16] sm:$0xff]
    %v1984 = vrot.slane %v1945, 4
    %v1985 = vadd.f32 %v1945, %v1984
    %v1986 = vrot.slane %v1985, 2
    %v1987 = vadd.f32 %v1985, %v1986
    %v1988 = vrot.slane %v1987, 1
    %v1989 = vadd.f32 %v1987, %v1988
    %v1990 = vrot.slane %v1947, 4
    %v1991 = vadd.f32 %v1947, %v1990
    %v1992 = vrot.slane %v1991, 2
    %v1993 = vadd.f32 %v1991, %v1992
    %v1994 = vrot.slane %v1993, 1
    %v1995 = vadd.f32 %v1993, %v1994
    %v1996 = vmul.f32 %v1945, %v1945
    %v1997 = vmul.f32 %v1947, %v1947
    %v1998 = vrot.slane %v1996, 4
    %v1999 = vadd.f32 %v1996, %v1998
    %v2000 = vrot.slane %v1999, 2
    %v2001 = vadd.f32 %v1999, %v2000
    %v2002 = vrot.slane %v2001, 1
    %v2003 = vadd.f32 %v2001, %v2002
    %v2004 = vrot.slane %v1997, 4
    %v2005 = vadd.f32 %v1997, %v2004
    %v2006 = vrot.slane %v2005, 2
    %v2007 = vadd.f32 %v2005, %v2006
    %v2008 = vrot.slane %v2007, 1
    %v2009 = vadd.f32 %v2007, %v2008
    %2010 = vmatprep.subr.mxu0 0.0
    %2011 = vmatpush1.msra.mxu0 %v1951
    %2012 = vmatprep.subr.mxu0 0.0
    %2013 = vmatpush1.msra.mxu0 %v1952
    %2014 = vmatprep.subr.mxu0 0.0
    %2015 = vmatpush1.msra.mxu0 %v1953
    %2016 = vmatprep.subr.mxu0 0.0
    %2017 = vmatpush1.msra.mxu0 %v1954
    %2018 = vmatprep.subr.mxu0 0.0
    %2019 = vmatpush1.msra.mxu0 %v1955
    %2020 = vmatprep.subr.mxu0 0.0
    %2021 = vmatpush1.msra.mxu0 %v1956
    %2022 = vmatprep.subr.mxu0 0.0
    %2023 = vmatpush1.msra.mxu0 %v1957
    %2024 = vmatprep.subr.mxu0 0.0
    %2025 = vmatpush1.msra.mxu0 %v1958
    %2026 = vmatprep.subr.mxu0 0.0
    %2027 = vmatpush1.msra.mxu0 %v1959
    %2028 = vmatprep.subr.mxu0 0.0
    %2029 = vmatpush1.msra.mxu0 %v1960
    %2030 = vmatprep.subr.mxu0 0.0
    %2031 = vmatpush1.msra.mxu0 %v1961
    %2032 = vmatprep.subr.mxu0 0.0
    %2033 = vmatpush1.msra.mxu0 %v1962
    %2034 = vmatprep.subr.mxu0 0.0
    %2035 = vmatpush1.msra.mxu0 %v1963
    %2036 = vmatprep.subr.mxu0 0.0
    %2037 = vmatpush1.msra.mxu0 %v1964
    %2038 = vmatprep.subr.mxu0 0.0
    %2039 = vmatpush1.msra.mxu0 %v1965
    %2040 = vmatprep.subr.mxu0 0.0
    %2041 = vmatpush1.msra.mxu0 %v1966
    %2042 = vmatprep.subr.mxu0 0.0
    %2043 = vmatpush1.msra.mxu0 %v1967
    %2044 = vmatprep.subr.mxu0 0.0
    %2045 = vmatpush1.msra.mxu0 %v1968
    %2046 = vmatprep.subr.mxu0 0.0
    %2047 = vmatpush1.msra.mxu0 %v1969
    %2048 = vmatprep.subr.mxu0 0.0
    %2049 = vmatpush1.msra.mxu0 %v1970
    %2050 = vmatprep.subr.mxu0 0.0
    %2051 = vmatpush1.msra.mxu0 %v1971
    %2052 = vmatprep.subr.mxu0 0.0
    %2053 = vmatpush1.msra.mxu0 %v1972
    %2054 = vmatprep.subr.mxu0 0.0
    %2055 = vmatpush1.msra.mxu0 %v1973
    %2056 = vmatprep.subr.mxu0 0.0
    %2057 = vmatpush1.msra.mxu0 %v1974
    %2058 = vmatprep.subr.mxu0 0.0
    %2059 = vmatpush1.msra.mxu0 %v1975
    %2060 = vmatprep.subr.mxu0 0.0
    %2061 = vmatpush1.msra.mxu0 %v1976
    %2062 = vmatprep.subr.mxu0 0.0
    %2063 = vmatpush1.msra.mxu0 %v1977
    %2064 = vmatprep.subr.mxu0 0.0
    %2065 = vmatpush1.msra.mxu0 %v1978
    %2066 = vmatprep.subr.mxu0 0.0
    %2067 = vmatpush1.msra.mxu0 %v1979
    %2068 = vmatprep.subr.mxu0 0.0
    %2069 = vmatpush1.msra.mxu0 %v1980
    %2070 = vmatprep.subr.mxu0 0.0
    %2071 = vmatpush1.msra.mxu0 %v1981
    %2072 = vmatprep.subr.mxu0 0.0
    %2073 = vmatpush1.msra.mxu0 %v1982
    %2074 = vmatprep.mubr.f32.mxu0 %v1995
    %2075 = vmatmul.mubr.f32.gmra.mrb[0].mxu0 %v1989
    %v2076 = vpop.f32.mrb[0].mxu0
    %v2077 = vadd.f32 0.0, %v2076
    %v2078 = vpop.f32.mrb[0].mxu0
    %2079 = vdwg.mxu0
    %2080 = vmatprep.subr.mxu0 0.0
    %2081 = vmatpush1.msra.mxu0 %v1951
    %2082 = vmatprep.subr.mxu0 0.0
    %2083 = vmatpush1.msra.mxu0 %v1952
    %2084 = vmatprep.subr.mxu0 0.0
    %2085 = vmatpush1.msra.mxu0 %v1953
    %2086 = vmatprep.subr.mxu0 0.0
    %2087 = vmatpush1.msra.mxu0 %v1954
    %2088 = vmatprep.subr.mxu0 0.0
    %2089 = vmatpush1.msra.mxu0 %v1955
    %2090 = vmatprep.subr.mxu0 0.0
    %2091 = vmatpush1.msra.mxu0 %v1956
    %2092 = vmatprep.subr.mxu0 0.0
    %2093 = vmatpush1.msra.mxu0 %v1957
    %2094 = vmatprep.subr.mxu0 0.0
    %2095 = vmatpush1.msra.mxu0 %v1958
    %2096 = vmatprep.subr.mxu0 0.0
    %2097 = vmatpush1.msra.mxu0 %v1959
    %2098 = vmatprep.subr.mxu0 0.0
    %2099 = vmatpush1.msra.mxu0 %v1960
    %2100 = vmatprep.subr.mxu0 0.0
    %2101 = vmatpush1.msra.mxu0 %v1961
    %2102 = vmatprep.subr.mxu0 0.0
    %2103 = vmatpush1.msra.mxu0 %v1962
    %2104 = vmatprep.subr.mxu0 0.0
    %2105 = vmatpush1.msra.mxu0 %v1963
    %2106 = vmatprep.subr.mxu0 0.0
    %2107 = vmatpush1.msra.mxu0 %v1964
    %2108 = vmatprep.subr.mxu0 0.0
    %2109 = vmatpush1.msra.mxu0 %v1965
    %2110 = vmatprep.subr.mxu0 0.0
    %2111 = vmatpush1.msra.mxu0 %v1966
    %2112 = vmatprep.subr.mxu0 0.0
    %2113 = vmatpush1.msra.mxu0 %v1967
    %2114 = vmatprep.subr.mxu0 0.0
    %2115 = vmatpush1.msra.mxu0 %v1968
    %2116 = vmatprep.subr.mxu0 0.0
    %2117 = vmatpush1.msra.mxu0 %v1969
    %2118 = vmatprep.subr.mxu0 0.0
    %2119 = vmatpush1.msra.mxu0 %v1970
    %2120 = vmatprep.subr.mxu0 0.0
    %2121 = vmatpush1.msra.mxu0 %v1971
    %2122 = vmatprep.subr.mxu0 0.0
    %2123 = vmatpush1.msra.mxu0 %v1972
    %2124 = vmatprep.subr.mxu0 0.0
    %2125 = vmatpush1.msra.mxu0 %v1973
    %2126 = vmatprep.subr.mxu0 0.0
    %2127 = vmatpush1.msra.mxu0 %v1974
    %2128 = vmatprep.subr.mxu0 0.0
    %2129 = vmatpush1.msra.mxu0 %v1975
    %2130 = vmatprep.subr.mxu0 0.0
    %2131 = vmatpush1.msra.mxu0 %v1976
    %2132 = vmatprep.subr.mxu0 0.0
    %2133 = vmatpush1.msra.mxu0 %v1977
    %2134 = vmatprep.subr.mxu0 0.0
    %2135 = vmatpush1.msra.mxu0 %v1978
    %2136 = vmatprep.subr.mxu0 0.0
    %2137 = vmatpush1.msra.mxu0 %v1979
    %2138 = vmatprep.subr.mxu0 0.0
    %2139 = vmatpush1.msra.mxu0 %v1980
    %2140 = vmatprep.subr.mxu0 0.0
    %2141 = vmatpush1.msra.mxu0 %v1981
    %2142 = vmatprep.subr.mxu0 0.0
    %2143 = vmatpush1.msra.mxu0 %v1982
    %2144 = vmatprep.mubr.f32.mxu0 %v2009
    %2145 = vmatmul.mubr.f32.gmra.mrb[0].mxu0 %v2003
    %v2146 = vpop.f32.mrb[0].mxu0
    %v2147 = vadd.f32 0.0, %v2146
    %v2148 = vpop.f32.mrb[0].mxu0
    %2149 = vdwg.mxu0
    %v2150 = vmul.f32 %v2077, 0.001953125
    %v2151 = vmul.f32 %v2147, 0.001953125
    %v2152 = vmul.f32 %v2150, %v2150
    %v2153 = vsub.f32 %v2151, %v2152
    %v2154 = vmax.f32 %v2153, 0.0
    %v2155 = vadd.f32 %v2154, 1e-05
    %v2156 = vrsqrt.pop %v2155
    %v2157 = vmul.f32 %v1949, %v2156
    %v2158 = vmul.f32 %v2150, %v2157
    %v2159 = vsub.f32 %v1950, %v2158
    %v2161 = vcombine.high %v1983, %v1983
    %vm2162 = vcmask 31744
    %v2164 = vsel %vm2162, %v2157, 0
    %vm2166 = vcmask 1043456
    %v2167 = vsel %vm2166, %v1983, 0
    %v2169 = vsel %vm2166, %v2161, 0
    %2171 = vmatprep.subr.mxu0 %v2169
    %2172 = vmatpush1.msra.mxu0 %v2167
    %2173 = vmatprep.subr.mxu0 0.0
    %2174 = vmatpush1.msra.mxu0 0.0
    %2175 = vmatprep.subr.mxu0 0.0
    %2176 = vmatpush1.msra.mxu0 0.0
    %2177 = vmatprep.subr.mxu0 0.0
    %2178 = vmatpush1.msra.mxu0 0.0
    %2179 = vmatprep.subr.mxu0 0.0
    %2180 = vmatpush1.msra.mxu0 0.0
    %2181 = vmatprep.subr.mxu0 0.0
    %2182 = vmatpush1.msra.mxu0 0.0
    %2183 = vmatprep.subr.mxu0 0.0
    %2184 = vmatpush1.msra.mxu0 0.0
    %2185 = vmatprep.subr.mxu0 0.0
    %2186 = vmatpush1.msra.mxu0 0.0
    %2187 = vmatprep.subr.mxu0 0.0
    %2188 = vmatpush1.msra.mxu0 0.0
    %2189 = vmatprep.subr.mxu0 0.0
    %2190 = vmatpush1.msra.mxu0 0.0
    %2191 = vmatprep.subr.mxu0 0.0
    %2192 = vmatpush1.msra.mxu0 0.0
    %2193 = vmatprep.subr.mxu0 0.0
    %2194 = vmatpush1.msra.mxu0 0.0
    %2195 = vmatprep.subr.mxu0 0.0
    %2196 = vmatpush1.msra.mxu0 0.0
    %2197 = vmatprep.subr.mxu0 0.0
    %2198 = vmatpush1.msra.mxu0 0.0
    %2199 = vmatprep.subr.mxu0 0.0
    %2200 = vmatpush1.msra.mxu0 0.0
    %2201 = vmatprep.subr.mxu0 0.0
    %2202 = vmatpush1.msra.mxu0 0.0
    %2203 = vmatprep.subr.mxu0 0.0
    %2204 = vmatpush1.msra.mxu0 0.0
    %2205 = vmatprep.subr.mxu0 0.0
    %2206 = vmatpush1.msra.mxu0 0.0
    %2207 = vmatprep.subr.mxu0 0.0
    %2208 = vmatpush1.msra.mxu0 0.0
    %2209 = vmatprep.subr.mxu0 0.0
    %2210 = vmatpush1.msra.mxu0 0.0
    %2211 = vmatprep.subr.mxu0 0.0
    %2212 = vmatpush1.msra.mxu0 0.0
    %2213 = vmatprep.subr.mxu0 0.0
    %2214 = vmatpush1.msra.mxu0 0.0
    %2215 = vmatprep.subr.mxu0 0.0
    %2216 = vmatpush1.msra.mxu0 0.0
    %2217 = vmatprep.subr.mxu0 0.0
    %2218 = vmatpush1.msra.mxu0 0.0
    %2219 = vmatprep.subr.mxu0 0.0
    %2220 = vmatpush1.msra.mxu0 0.0
    %2221 = vmatprep.subr.mxu0 0.0
    %2222 = vmatpush1.msra.mxu0 0.0
    %2223 = vmatprep.subr.mxu0 0.0
    %2224 = vmatpush1.msra.mxu0 0.0
    %2225 = vmatprep.subr.mxu0 0.0
    %2226 = vmatpush1.msra.mxu0 0.0
    %2227 = vmatprep.subr.mxu0 0.0
    %2228 = vmatpush1.msra.mxu0 0.0
    %2229 = vmatprep.subr.mxu0 0.0
    %2230 = vmatpush1.msra.mxu0 0.0
    %2231 = vmatprep.subr.mxu0 0.0
    %2232 = vmatpush1.msra.mxu0 0.0
    %2233 = vmatprep.subr.mxu0 0.0
    %2234 = vmatpush1.msra.mxu0 0.0
    %2235 = vmatprep.mubr.f32.mxu0 0.0
    %2236 = vmatmul.mubr.f32.gmra.mrb[0].mxu0 %v2164
    %v2237 = vpop.f32.mrb[0].mxu0
    %v2238 = vadd.f32 0.0, %v2237
    %v2239 = vpop.f32.mrb[0].mxu0
    %v2240 = vadd.f32 0.0, %v2239
    %2241 = vdwg.mxu0
    %v2243 = vsel %vm2162, %v2159, 0
    %2245 = vmatprep.subr.mxu0 %v2169
    %2246 = vmatpush1.msra.mxu0 %v2167
    %2247 = vmatprep.subr.mxu0 0.0
    %2248 = vmatpush1.msra.mxu0 0.0
    %2249 = vmatprep.subr.mxu0 0.0
    %2250 = vmatpush1.msra.mxu0 0.0
    %2251 = vmatprep.subr.mxu0 0.0
    %2252 = vmatpush1.msra.mxu0 0.0
    %2253 = vmatprep.subr.mxu0 0.0
    %2254 = vmatpush1.msra.mxu0 0.0
    %2255 = vmatprep.subr.mxu0 0.0
    %2256 = vmatpush1.msra.mxu0 0.0
    %2257 = vmatprep.subr.mxu0 0.0
    %2258 = vmatpush1.msra.mxu0 0.0
    %2259 = vmatprep.subr.mxu0 0.0
    %2260 = vmatpush1.msra.mxu0 0.0
    %2261 = vmatprep.subr.mxu0 0.0
    %2262 = vmatpush1.msra.mxu0 0.0
    %2263 = vmatprep.subr.mxu0 0.0
    %2264 = vmatpush1.msra.mxu0 0.0
    %2265 = vmatprep.subr.mxu0 0.0
    %2266 = vmatpush1.msra.mxu0 0.0
    %2267 = vmatprep.subr.mxu0 0.0
    %2268 = vmatpush1.msra.mxu0 0.0
    %2269 = vmatprep.subr.mxu0 0.0
    %2270 = vmatpush1.msra.mxu0 0.0
    %2271 = vmatprep.subr.mxu0 0.0
    %2272 = vmatpush1.msra.mxu0 0.0
    %2273 = vmatprep.subr.mxu0 0.0
    %2274 = vmatpush1.msra.mxu0 0.0
    %2275 = vmatprep.subr.mxu0 0.0
    %2276 = vmatpush1.msra.mxu0 0.0
    %2277 = vmatprep.subr.mxu0 0.0
    %2278 = vmatpush1.msra.mxu0 0.0
    %2279 = vmatprep.subr.mxu0 0.0
    %2280 = vmatpush1.msra.mxu0 0.0
    %2281 = vmatprep.subr.mxu0 0.0
    %2282 = vmatpush1.msra.mxu0 0.0
    %2283 = vmatprep.subr.mxu0 0.0
    %2284 = vmatpush1.msra.mxu0 0.0
    %2285 = vmatprep.subr.mxu0 0.0
    %2286 = vmatpush1.msra.mxu0 0.0
    %2287 = vmatprep.subr.mxu0 0.0
    %2288 = vmatpush1.msra.mxu0 0.0
    %2289 = vmatprep.subr.mxu0 0.0
    %2290 = vmatpush1.msra.mxu0 0.0
    %2291 = vmatprep.subr.mxu0 0.0
    %2292 = vmatpush1.msra.mxu0 0.0
    %2293 = vmatprep.subr.mxu0 0.0
    %2294 = vmatpush1.msra.mxu0 0.0
    %2295 = vmatprep.subr.mxu0 0.0
    %2296 = vmatpush1.msra.mxu0 0.0
    %2297 = vmatprep.subr.mxu0 0.0
    %2298 = vmatpush1.msra.mxu0 0.0
    %2299 = vmatprep.subr.mxu0 0.0
    %2300 = vmatpush1.msra.mxu0 0.0
    %2301 = vmatprep.subr.mxu0 0.0
    %2302 = vmatpush1.msra.mxu0 0.0
    %2303 = vmatprep.subr.mxu0 0.0
    %2304 = vmatpush1.msra.mxu0 0.0
    %2305 = vmatprep.subr.mxu0 0.0
    %2306 = vmatpush1.msra.mxu0 0.0
    %2307 = vmatprep.subr.mxu0 0.0
    %2308 = vmatpush1.msra.mxu0 0.0
    %2309 = vmatprep.mubr.f32.mxu0 0.0
    %2310 = vmatmul.mubr.f32.gmra.mrb[0].mxu0 %v2243
    %v2311 = vpop.f32.mrb[0].mxu0
    %v2312 = vadd.f32 0.0, %v2311
    %v2313 = vpop.f32.mrb[0].mxu0
    %v2314 = vadd.f32 0.0, %v2313
    %2315 = vdwg.mxu0
    %v2316 = vlaneseq
    %v2317 = vshrl.u32 %v2316, 7
    %v2318 = vsub.s32 0, %v2317
    %v2319 = vrot.slane %v2238, %v2318
    %v2320 = vlaneseq
    %v2321 = vshrl.u32 %v2320, 7
    %v2322 = vsub.s32 0, %v2321
    %v2323 = vrot.slane %v2240, %v2322
    %v2324 = vmul.f32 %v1945, %v2319
    %v2325 = vmul.f32 %v1947, %v2323
    %v2326 = vlaneseq
    %v2327 = vshrl.u32 %v2326, 7
    %v2328 = vsub.s32 0, %v2327
    %v2329 = vrot.slane %v2312, %v2328
    %v2330 = vlaneseq
    %v2331 = vshrl.u32 %v2330, 7
    %v2332 = vsub.s32 0, %v2331
    %v2333 = vrot.slane %v2314, %v2332
    %v2334 = vadd.f32 %v2324, %v2329
    %v2335 = vadd.f32 %v2325, %v2333
    %vm2336 = vcmp.ge.f32.partialorder %v2334, 0.0
    %vm2337 = vcmp.ge.f32.partialorder %v2335, 0.0
    %v2338 = vmul.f32 %v2334, 0.2
    %v2339 = vmul.f32 %v2335, 0.2
    %v2340 = vsel %vm2336, %v2334, %v2338
    %v2341 = vsel %vm2337, %v2335, %v2339
    %v2342 = vld [vmem:[#allocation14] sm:$0xff]
    %v2343 = vld [vmem:[#allocation14 + $0x8] sm:$0xff]
    %v2344 = vld [vmem:[#allocation14 + $0x10] sm:$0xff]
    %v2345 = vld [vmem:[#allocation14 + $0x18] sm:$0xff]
    %v2346 = vld [vmem:[#allocation14 + $0x20] sm:$0xff]
    %v2347 = vld [vmem:[#allocation14 + $0x28] sm:$0xff]
    %v2348 = vld [vmem:[#allocation14 + $0x30] sm:$0xff]
    %v2349 = vld [vmem:[#allocation14 + $0x38] sm:$0xff]
    %v2350 = vld [vmem:[#allocation14 + $0x40] sm:$0xff]
    %v2351 = vld [vmem:[#allocation14 + $0x48] sm:$0xff]
    %v2352 = vld [vmem:[#allocation14 + $0x50] sm:$0xff]
    %v2353 = vld [vmem:[#allocation14 + $0x58] sm:$0xff]
    %v2354 = vld [vmem:[#allocation14 + $0x60] sm:$0xff]
    %v2355 = vld [vmem:[#allocation14 + $0x68] sm:$0xff]
    %v2356 = vld [vmem:[#allocation14 + $0x70] sm:$0xff]
    %v2357 = vld [vmem:[#allocation14 + $0x78] sm:$0xff]
    %v2358 = vld [vmem:[#allocation14 + $0x80] sm:$0xff]
    %v2359 = vld [vmem:[#allocation14 + $0x88] sm:$0xff]
    %v2360 = vld [vmem:[#allocation14 + $0x90] sm:$0xff]
    %v2361 = vld [vmem:[#allocation14 + $0x98] sm:$0xff]
    %v2362 = vld [vmem:[#allocation14 + $0xa0] sm:$0xff]
    %v2363 = vld [vmem:[#allocation14 + $0xa8] sm:$0xff]
    %v2364 = vld [vmem:[#allocation14 + $0xb0] sm:$0xff]
    %v2365 = vld [vmem:[#allocation14 + $0xb8] sm:$0xff]
    %v2366 = vld [vmem:[#allocation14 + $0xc0] sm:$0xff]
    %v2367 = vld [vmem:[#allocation14 + $0xc8] sm:$0xff]
    %v2368 = vld [vmem:[#allocation14 + $0xd0] sm:$0xff]
    %v2369 = vld [vmem:[#allocation14 + $0xd8] sm:$0xff]
    %v2370 = vld [vmem:[#allocation14 + $0xe0] sm:$0xff]
    %v2371 = vld [vmem:[#allocation14 + $0xe8] sm:$0xff]
    %v2372 = vld [vmem:[#allocation14 + $0xf0] sm:$0xff]
    %v2373 = vld [vmem:[#allocation14 + $0xf8] sm:$0xff]
    %2374 = vmatprep.subr.mxu0 0.0
    %2375 = vmatpush1.msra.mxu0 %v2342
    %2376 = vmatprep.subr.mxu0 0.0
    %2377 = vmatpush1.msra.mxu0 %v2343
    %2378 = vmatprep.subr.mxu0 0.0
    %2379 = vmatpush1.msra.mxu0 %v2344
    %2380 = vmatprep.subr.mxu0 0.0
    %2381 = vmatpush1.msra.mxu0 %v2345
    %2382 = vmatprep.subr.mxu0 0.0
    %2383 = vmatpush1.msra.mxu0 %v2346
    %2384 = vmatprep.subr.mxu0 0.0
    %2385 = vmatpush1.msra.mxu0 %v2347
    %2386 = vmatprep.subr.mxu0 0.0
    %2387 = vmatpush1.msra.mxu0 %v2348
    %2388 = vmatprep.subr.mxu0 0.0
    %2389 = vmatpush1.msra.mxu0 %v2349
    %2390 = vmatprep.subr.mxu0 0.0
    %2391 = vmatpush1.msra.mxu0 %v2350
    %2392 = vmatprep.subr.mxu0 0.0
    %2393 = vmatpush1.msra.mxu0 %v2351
    %2394 = vmatprep.subr.mxu0 0.0
    %2395 = vmatpush1.msra.mxu0 %v2352
    %2396 = vmatprep.subr.mxu0 0.0
    %2397 = vmatpush1.msra.mxu0 %v2353
    %2398 = vmatprep.subr.mxu0 0.0
    %2399 = vmatpush1.msra.mxu0 %v2354
    %2400 = vmatprep.subr.mxu0 0.0
    %2401 = vmatpush1.msra.mxu0 %v2355
    %2402 = vmatprep.subr.mxu0 0.0
    %2403 = vmatpush1.msra.mxu0 %v2356
    %2404 = vmatprep.subr.mxu0 0.0
    %2405 = vmatpush1.msra.mxu0 %v2357
    %2406 = vmatprep.subr.mxu0 0.0
    %2407 = vmatpush1.msra.mxu0 %v2358
    %2408 = vmatprep.subr.mxu0 0.0
    %2409 = vmatpush1.msra.mxu0 %v2359
    %2410 = vmatprep.subr.mxu0 0.0
    %2411 = vmatpush1.msra.mxu0 %v2360
    %2412 = vmatprep.subr.mxu0 0.0
    %2413 = vmatpush1.msra.mxu0 %v2361
    %2414 = vmatprep.subr.mxu0 0.0
    %2415 = vmatpush1.msra.mxu0 %v2362
    %2416 = vmatprep.subr.mxu0 0.0
    %2417 = vmatpush1.msra.mxu0 %v2363
    %2418 = vmatprep.subr.mxu0 0.0
    %2419 = vmatpush1.msra.mxu0 %v2364
    %2420 = vmatprep.subr.mxu0 0.0
    %2421 = vmatpush1.msra.mxu0 %v2365
    %2422 = vmatprep.subr.mxu0 0.0
    %2423 = vmatpush1.msra.mxu0 %v2366
    %2424 = vmatprep.subr.mxu0 0.0
    %2425 = vmatpush1.msra.mxu0 %v2367
    %2426 = vmatprep.subr.mxu0 0.0
    %2427 = vmatpush1.msra.mxu0 %v2368
    %2428 = vmatprep.subr.mxu0 0.0
    %2429 = vmatpush1.msra.mxu0 %v2369
    %2430 = vmatprep.subr.mxu0 0.0
    %2431 = vmatpush1.msra.mxu0 %v2370
    %2432 = vmatprep.subr.mxu0 0.0
    %2433 = vmatpush1.msra.mxu0 %v2371
    %2434 = vmatprep.subr.mxu0 0.0
    %2435 = vmatpush1.msra.mxu0 %v2372
    %2436 = vmatprep.subr.mxu0 0.0
    %2437 = vmatpush1.msra.mxu0 %v2373
    %2438 = vmatprep.mubr.f32.mxu0 %v2341
    %2439 = vmatmul.mubr.f32.gmra.mrb[0].mxu0 %v2340
    %v2440 = vpop.f32.mrb[0].mxu0
    %v2441 = vadd.f32 0.0, %v2440
    %v2442 = vpop.f32.mrb[0].mxu0
    %2443 = vdwg.mxu0
    %v2444 = vld [vmem:[#allocation2] sm:$0x1]
    %v2445 = vld [vmem:[#allocation3] sm:$0x1]
    %v2446 = vld [vmem:[%s20] sm:$0xff]
    %v2447 = vld [vmem:[%s20 + $0x8] sm:$0xff]
    %v2448 = vld [vmem:[%s20 + $0x10] sm:$0xff]
    %v2449 = vld [vmem:[%s20 + $0x18] sm:$0xff]
    %v2450 = vld [vmem:[%s20 + $0x20] sm:$0xff]
    %v2451 = vld [vmem:[%s20 + $0x28] sm:$0xff]
    %v2452 = vld [vmem:[%s20 + $0x30] sm:$0xff]
    %v2453 = vld [vmem:[%s20 + $0x38] sm:$0xff]
    %v2454 = vld [vmem:[%s20 + $0x40] sm:$0xff]
    %v2455 = vld [vmem:[%s20 + $0x48] sm:$0xff]
    %v2456 = vld [vmem:[%s20 + $0x50] sm:$0xff]
    %v2457 = vld [vmem:[%s20 + $0x58] sm:$0xff]
    %v2458 = vld [vmem:[%s20 + $0x60] sm:$0xf]
    %v2459 = vld [vmem:[%s21] sm:$0x1]
    %vm2460 = vcmask 818176
    %v2461 = vsel %vm2460, %v2441, 0.0
    %v2462 = vrot.slane %v2461, 4
    %v2463 = vadd.f32 %v2461, %v2462
    %v2464 = vrot.slane %v2463, 2
    %v2465 = vadd.f32 %v2463, %v2464
    %v2466 = vrot.slane %v2465, 1
    %v2467 = vadd.f32 %v2465, %v2466
    %v2468 = vmul.f32 %v2441, %v2441
    %v2469 = vsel %vm2460, %v2468, 0.0
    %v2470 = vrot.slane %v2469, 4
    %v2471 = vadd.f32 %v2469, %v2470
    %v2472 = vrot.slane %v2471, 2
    %v2473 = vadd.f32 %v2471, %v2472
    %v2474 = vrot.slane %v2473, 1
    %v2475 = vadd.f32 %v2473, %v2474
    %v2477 = vsel %vm2460, %v2467, 0
    %v2480 = vsel %vm2166, %v2458, 0
    %2482 = vmatprep.subr.mxu0 0.0
    %2483 = vmatpush1.msra.mxu0 %v2446
    %2484 = vmatprep.subr.mxu0 0.0
    %2485 = vmatpush1.msra.mxu0 %v2447
    %2486 = vmatprep.subr.mxu0 0.0
    %2487 = vmatpush1.msra.mxu0 %v2448
    %2488 = vmatprep.subr.mxu0 0.0
    %2489 = vmatpush1.msra.mxu0 %v2449
    %2490 = vmatprep.subr.mxu0 0.0
    %2491 = vmatpush1.msra.mxu0 %v2450
    %2492 = vmatprep.subr.mxu0 0.0
    %2493 = vmatpush1.msra.mxu0 %v2451
    %2494 = vmatprep.subr.mxu0 0.0
    %2495 = vmatpush1.msra.mxu0 %v2452
    %2496 = vmatprep.subr.mxu0 0.0
    %2497 = vmatpush1.msra.mxu0 %v2453
    %2498 = vmatprep.subr.mxu0 0.0
    %2499 = vmatpush1.msra.mxu0 %v2454
    %2500 = vmatprep.subr.mxu0 0.0
    %2501 = vmatpush1.msra.mxu0 %v2455
    %2502 = vmatprep.subr.mxu0 0.0
    %2503 = vmatpush1.msra.mxu0 %v2456
    %2504 = vmatprep.subr.mxu0 0.0
    %2505 = vmatpush1.msra.mxu0 %v2457
    %2506 = vmatprep.subr.mxu0 0.0
    %2507 = vmatpush1.msra.mxu0 %v2480
    %2508 = vmatprep.subr.mxu0 0.0
    %2509 = vmatpush1.msra.mxu0 0.0
    %2510 = vmatprep.subr.mxu0 0.0
    %2511 = vmatpush1.msra.mxu0 0.0
    %2512 = vmatprep.subr.mxu0 0.0
    %2513 = vmatpush1.msra.mxu0 0.0
    %2514 = vmatprep.subr.mxu0 0.0
    %2515 = vmatpush1.msra.mxu0 0.0
    %2516 = vmatprep.subr.mxu0 0.0
    %2517 = vmatpush1.msra.mxu0 0.0
    %2518 = vmatprep.subr.mxu0 0.0
    %2519 = vmatpush1.msra.mxu0 0.0
    %2520 = vmatprep.subr.mxu0 0.0
    %2521 = vmatpush1.msra.mxu0 0.0
    %2522 = vmatprep.subr.mxu0 0.0
    %2523 = vmatpush1.msra.mxu0 0.0
    %2524 = vmatprep.subr.mxu0 0.0
    %2525 = vmatpush1.msra.mxu0 0.0
    %2526 = vmatprep.subr.mxu0 0.0
    %2527 = vmatpush1.msra.mxu0 0.0
    %2528 = vmatprep.subr.mxu0 0.0
    %2529 = vmatpush1.msra.mxu0 0.0
    %2530 = vmatprep.subr.mxu0 0.0
    %2531 = vmatpush1.msra.mxu0 0.0
    %2532 = vmatprep.subr.mxu0 0.0
    %2533 = vmatpush1.msra.mxu0 0.0
    %2534 = vmatprep.subr.mxu0 0.0
    %2535 = vmatpush1.msra.mxu0 0.0
    %2536 = vmatprep.subr.mxu0 0.0
    %2537 = vmatpush1.msra.mxu0 0.0
    %2538 = vmatprep.subr.mxu0 0.0
    %2539 = vmatpush1.msra.mxu0 0.0
    %2540 = vmatprep.subr.mxu0 0.0
    %2541 = vmatpush1.msra.mxu0 0.0
    %2542 = vmatprep.subr.mxu0 0.0
    %2543 = vmatpush1.msra.mxu0 0.0
    %2544 = vmatprep.subr.mxu0 0.0
    %2545 = vmatpush1.msra.mxu0 0.0
    %2546 = vmatprep.mubr.f32.mxu0 0.0
    %2547 = vmatmul.mubr.f32.gmra.mrb[0].mxu0 %v2477
    %v2548 = vpop.f32.mrb[0].mxu0
    %v2549 = vadd.f32 0.0, %v2548
    %v2550 = vpop.f32.mrb[0].mxu0
    %2551 = vdwg.mxu0
    %v2553 = vsel %vm2460, %v2475, 0
    %2555 = vmatprep.subr.mxu0 0.0
    %2556 = vmatpush1.msra.mxu0 %v2446
    %2557 = vmatprep.subr.mxu0 0.0
    %2558 = vmatpush1.msra.mxu0 %v2447
    %2559 = vmatprep.subr.mxu0 0.0
    %2560 = vmatpush1.msra.mxu0 %v2448
    %2561 = vmatprep.subr.mxu0 0.0
    %2562 = vmatpush1.msra.mxu0 %v2449
    %2563 = vmatprep.subr.mxu0 0.0
    %2564 = vmatpush1.msra.mxu0 %v2450
    %2565 = vmatprep.subr.mxu0 0.0
    %2566 = vmatpush1.msra.mxu0 %v2451
    %2567 = vmatprep.subr.mxu0 0.0
    %2568 = vmatpush1.msra.mxu0 %v2452
    %2569 = vmatprep.subr.mxu0 0.0
    %2570 = vmatpush1.msra.mxu0 %v2453
    %2571 = vmatprep.subr.mxu0 0.0
    %2572 = vmatpush1.msra.mxu0 %v2454
    %2573 = vmatprep.subr.mxu0 0.0
    %2574 = vmatpush1.msra.mxu0 %v2455
    %2575 = vmatprep.subr.mxu0 0.0
    %2576 = vmatpush1.msra.mxu0 %v2456
    %2577 = vmatprep.subr.mxu0 0.0
    %2578 = vmatpush1.msra.mxu0 %v2457
    %2579 = vmatprep.subr.mxu0 0.0
    %2580 = vmatpush1.msra.mxu0 %v2480
    %2581 = vmatprep.subr.mxu0 0.0
    %2582 = vmatpush1.msra.mxu0 0.0
    %2583 = vmatprep.subr.mxu0 0.0
    %2584 = vmatpush1.msra.mxu0 0.0
    %2585 = vmatprep.subr.mxu0 0.0
    %2586 = vmatpush1.msra.mxu0 0.0
    %2587 = vmatprep.subr.mxu0 0.0
    %2588 = vmatpush1.msra.mxu0 0.0
    %2589 = vmatprep.subr.mxu0 0.0
    %2590 = vmatpush1.msra.mxu0 0.0
    %2591 = vmatprep.subr.mxu0 0.0
    %2592 = vmatpush1.msra.mxu0 0.0
    %2593 = vmatprep.subr.mxu0 0.0
    %2594 = vmatpush1.msra.mxu0 0.0
    %2595 = vmatprep.subr.mxu0 0.0
    %2596 = vmatpush1.msra.mxu0 0.0
    %2597 = vmatprep.subr.mxu0 0.0
    %2598 = vmatpush1.msra.mxu0 0.0
    %2599 = vmatprep.subr.mxu0 0.0
    %2600 = vmatpush1.msra.mxu0 0.0
    %2601 = vmatprep.subr.mxu0 0.0
    %2602 = vmatpush1.msra.mxu0 0.0
    %2603 = vmatprep.subr.mxu0 0.0
    %2604 = vmatpush1.msra.mxu0 0.0
    %2605 = vmatprep.subr.mxu0 0.0
    %2606 = vmatpush1.msra.mxu0 0.0
    %2607 = vmatprep.subr.mxu0 0.0
    %2608 = vmatpush1.msra.mxu0 0.0
    %2609 = vmatprep.subr.mxu0 0.0
    %2610 = vmatpush1.msra.mxu0 0.0
    %2611 = vmatprep.subr.mxu0 0.0
    %2612 = vmatpush1.msra.mxu0 0.0
    %2613 = vmatprep.subr.mxu0 0.0
    %2614 = vmatpush1.msra.mxu0 0.0
    %2615 = vmatprep.subr.mxu0 0.0
    %2616 = vmatpush1.msra.mxu0 0.0
    %2617 = vmatprep.subr.mxu0 0.0
    %2618 = vmatpush1.msra.mxu0 0.0
    %2619 = vmatprep.mubr.f32.mxu0 0.0
    %2620 = vmatmul.mubr.f32.gmra.mrb[0].mxu0 %v2553
    %v2621 = vpop.f32.mrb[0].mxu0
    %v2622 = vadd.f32 0.0, %v2621
    %v2623 = vpop.f32.mrb[0].mxu0
    %2624 = vdwg.mxu0
    %v2625 = vmul.f32 %v2549, 0.00125
    %v2626 = vmul.f32 %v2622, 0.00125
    %v2627 = vmul.f32 %v2625, %v2625
    %v2628 = vsub.f32 %v2626, %v2627
    %v2629 = vmax.f32 %v2628, 0.0
    %v2630 = vadd.f32 %v2629, 1e-05
    %v2631 = vrsqrt.pop %v2630
    %v2632 = vmul.f32 %v2444, %v2631
    %v2633 = vmul.f32 %v2625, %v2632
    %v2634 = vsub.f32 %v2445, %v2633
    %vm2635 = vcmask 7168
    %v2637 = vsel %vm2635, %v2632, 0
    %vm2639 = vcmask 1040384
    %v2641 = vsel %vm2639, %v2459, 0
    %2643 = vmatprep.subr.mxu0 0.0
    %2644 = vmatpush1.msra.mxu0 %v2641
    %2645 = vmatprep.subr.mxu0 0.0
    %2646 = vmatpush1.msra.mxu0 0.0
    %2647 = vmatprep.subr.mxu0 0.0
    %2648 = vmatpush1.msra.mxu0 0.0
    %2649 = vmatprep.subr.mxu0 0.0
    %2650 = vmatpush1.msra.mxu0 0.0
    %2651 = vmatprep.subr.mxu0 0.0
    %2652 = vmatpush1.msra.mxu0 0.0
    %2653 = vmatprep.subr.mxu0 0.0
    %2654 = vmatpush1.msra.mxu0 0.0
    %2655 = vmatprep.subr.mxu0 0.0
    %2656 = vmatpush1.msra.mxu0 0.0
    %2657 = vmatprep.subr.mxu0 0.0
    %2658 = vmatpush1.msra.mxu0 0.0
    %2659 = vmatprep.subr.mxu0 0.0
    %2660 = vmatpush1.msra.mxu0 0.0
    %2661 = vmatprep.subr.mxu0 0.0
    %2662 = vmatpush1.msra.mxu0 0.0
    %2663 = vmatprep.subr.mxu0 0.0
    %2664 = vmatpush1.msra.mxu0 0.0
    %2665 = vmatprep.subr.mxu0 0.0
    %2666 = vmatpush1.msra.mxu0 0.0
    %2667 = vmatprep.subr.mxu0 0.0
    %2668 = vmatpush1.msra.mxu0 0.0
    %2669 = vmatprep.subr.mxu0 0.0
    %2670 = vmatpush1.msra.mxu0 0.0
    %2671 = vmatprep.subr.mxu0 0.0
    %2672 = vmatpush1.msra.mxu0 0.0
    %2673 = vmatprep.subr.mxu0 0.0
    %2674 = vmatpush1.msra.mxu0 0.0
    %2675 = vmatprep.subr.mxu0 0.0
    %2676 = vmatpush1.msra.mxu0 0.0
    %2677 = vmatprep.subr.mxu0 0.0
    %2678 = vmatpush1.msra.mxu0 0.0
    %2679 = vmatprep.subr.mxu0 0.0
    %2680 = vmatpush1.msra.mxu0 0.0
    %2681 = vmatprep.subr.mxu0 0.0
    %2682 = vmatpush1.msra.mxu0 0.0
    %2683 = vmatprep.subr.mxu0 0.0
    %2684 = vmatpush1.msra.mxu0 0.0
    %2685 = vmatprep.subr.mxu0 0.0
    %2686 = vmatpush1.msra.mxu0 0.0
    %2687 = vmatprep.subr.mxu0 0.0
    %2688 = vmatpush1.msra.mxu0 0.0
    %2689 = vmatprep.subr.mxu0 0.0
    %2690 = vmatpush1.msra.mxu0 0.0
    %2691 = vmatprep.subr.mxu0 0.0
    %2692 = vmatpush1.msra.mxu0 0.0
    %2693 = vmatprep.subr.mxu0 0.0
    %2694 = vmatpush1.msra.mxu0 0.0
    %2695 = vmatprep.subr.mxu0 0.0
    %2696 = vmatpush1.msra.mxu0 0.0
    %2697 = vmatprep.subr.mxu0 0.0
    %2698 = vmatpush1.msra.mxu0 0.0
    %2699 = vmatprep.subr.mxu0 0.0
    %2700 = vmatpush1.msra.mxu0 0.0
    %2701 = vmatprep.subr.mxu0 0.0
    %2702 = vmatpush1.msra.mxu0 0.0
    %2703 = vmatprep.subr.mxu0 0.0
    %2704 = vmatpush1.msra.mxu0 0.0
    %2705 = vmatprep.subr.mxu0 0.0
    %2706 = vmatpush1.msra.mxu0 0.0
    %2707 = vmatprep.mubr.f32.mxu0 0.0
    %2708 = vmatmul.mubr.f32.gmra.mrb[0].mxu0 %v2637
    %v2709 = vpop.f32.mrb[0].mxu0
    %v2710 = vadd.f32 0.0, %v2709
    %v2711 = vpop.f32.mrb[0].mxu0
    %2712 = vdwg.mxu0
    %v2714 = vsel %vm2635, %v2634, 0
    %2716 = vmatprep.subr.mxu0 0.0
    %2717 = vmatpush1.msra.mxu0 %v2641
    %2718 = vmatprep.subr.mxu0 0.0
    %2719 = vmatpush1.msra.mxu0 0.0
    %2720 = vmatprep.subr.mxu0 0.0
    %2721 = vmatpush1.msra.mxu0 0.0
    %2722 = vmatprep.subr.mxu0 0.0
    %2723 = vmatpush1.msra.mxu0 0.0
    %2724 = vmatprep.subr.mxu0 0.0
    %2725 = vmatpush1.msra.mxu0 0.0
    %2726 = vmatprep.subr.mxu0 0.0
    %2727 = vmatpush1.msra.mxu0 0.0
    %2728 = vmatprep.subr.mxu0 0.0
    %2729 = vmatpush1.msra.mxu0 0.0
    %2730 = vmatprep.subr.mxu0 0.0
    %2731 = vmatpush1.msra.mxu0 0.0
    %2732 = vmatprep.subr.mxu0 0.0
    %2733 = vmatpush1.msra.mxu0 0.0
    %2734 = vmatprep.subr.mxu0 0.0
    %2735 = vmatpush1.msra.mxu0 0.0
    %2736 = vmatprep.subr.mxu0 0.0
    %2737 = vmatpush1.msra.mxu0 0.0
    %2738 = vmatprep.subr.mxu0 0.0
    %2739 = vmatpush1.msra.mxu0 0.0
    %2740 = vmatprep.subr.mxu0 0.0
    %2741 = vmatpush1.msra.mxu0 0.0
    %2742 = vmatprep.subr.mxu0 0.0
    %2743 = vmatpush1.msra.mxu0 0.0
    %2744 = vmatprep.subr.mxu0 0.0
    %2745 = vmatpush1.msra.mxu0 0.0
    %2746 = vmatprep.subr.mxu0 0.0
    %2747 = vmatpush1.msra.mxu0 0.0
    %2748 = vmatprep.subr.mxu0 0.0
    %2749 = vmatpush1.msra.mxu0 0.0
    %2750 = vmatprep.subr.mxu0 0.0
    %2751 = vmatpush1.msra.mxu0 0.0
    %2752 = vmatprep.subr.mxu0 0.0
    %2753 = vmatpush1.msra.mxu0 0.0
    %2754 = vmatprep.subr.mxu0 0.0
    %2755 = vmatpush1.msra.mxu0 0.0
    %2756 = vmatprep.subr.mxu0 0.0
    %2757 = vmatpush1.msra.mxu0 0.0
    %2758 = vmatprep.subr.mxu0 0.0
    %2759 = vmatpush1.msra.mxu0 0.0
    %2760 = vmatprep.subr.mxu0 0.0
    %2761 = vmatpush1.msra.mxu0 0.0
    %2762 = vmatprep.subr.mxu0 0.0
    %2763 = vmatpush1.msra.mxu0 0.0
    %2764 = vmatprep.subr.mxu0 0.0
    %2765 = vmatpush1.msra.mxu0 0.0
    %2766 = vmatprep.subr.mxu0 0.0
    %2767 = vmatpush1.msra.mxu0 0.0
    %2768 = vmatprep.subr.mxu0 0.0
    %2769 = vmatpush1.msra.mxu0 0.0
    %2770 = vmatprep.subr.mxu0 0.0
    %2771 = vmatpush1.msra.mxu0 0.0
    %2772 = vmatprep.subr.mxu0 0.0
    %2773 = vmatpush1.msra.mxu0 0.0
    %2774 = vmatprep.subr.mxu0 0.0
    %2775 = vmatpush1.msra.mxu0 0.0
    %2776 = vmatprep.subr.mxu0 0.0
    %2777 = vmatpush1.msra.mxu0 0.0
    %2778 = vmatprep.subr.mxu0 0.0
    %2779 = vmatpush1.msra.mxu0 0.0
    %2780 = vmatprep.mubr.f32.mxu0 0.0
    %2781 = vmatmul.mubr.f32.gmra.mrb[0].mxu0 %v2714
    %v2782 = vpop.f32.mrb[0].mxu0
    %v2783 = vadd.f32 0.0, %v2782
    %v2784 = vpop.f32.mrb[0].mxu0
    %2785 = vdwg.mxu0
    %v2786 = vlaneseq
    %v2787 = vshrl.u32 %v2786, 7
    %v2788 = vsub.s32 0, %v2787
    %v2789 = vrot.slane %v2710, %v2788
    %v2790 = vmul.f32 %v2441, %v2789
    %v2791 = vlaneseq
    %v2792 = vshrl.u32 %v2791, 7
    %v2793 = vsub.s32 0, %v2792
    %v2794 = vrot.slane %v2783, %v2793
    %v2795 = vadd.f32 %v2790, %v2794
    %v2796 = vsub.f32 0.0, %v2795
    %v2797 = vmul.f32 %v2796, 1.442695
    %v2798 = vpow.pop %v2797
    %v2799 = vadd.f32 %v2798, 1.0
    %v2800 = vrcp.pop %v2799
    %v2801 = vmul.f32 1.0, %v2800
    %2802 = vst.msk [vmem:[%s24] sm:$0xff] %vm2460, %v2801
    // Predicated region
    $region126: #{_lambda_.1} parent=1 // pred_check
      _
    $region127: #{_lambda_.1} parent=1 // pred_check_branch
      %2804 = sbr.rel (0) target = $region129
    $region128: #{_lambda_.1} parent=1 // pred_region
      _
    $region129: #{_lambda_.1} parent=1 // pred_fallthru
      _
    // Predicated region
    $region130: #{_lambda_.1} parent=1 // pred_check
      _
    $region131: #{_lambda_.1} parent=1 // pred_check_branch
      %2806 = sbr.rel (0) target = $region133
    $region132: #{_lambda_.1} parent=1 // pred_region
      _
    $region133: #{_lambda_.1} parent=1 // pred_fallthru
      _
    %2807 = vsyncpa [#allocation5], 1
    %2808 = vsyncpa [#allocation7], 1
    %2809 = vsyncpa [#allocation10], 1
    %2810 = vsyncpa [#allocation13], 1

</llo_original>
